<compile_context>
chip_gen: v6e
topology: v6e:2x2x1
jax: 0.10.0
libtpu: 0.0.40
codegen_flags: <defaults>
</compile_context>

<pallas_src>
import functools

import jax
import jax.numpy as jnp
import numpy as np
from jax.experimental import pallas as pl
from jax.experimental.pallas import tpu as pltpu

NUM_HEADS = 5          # cls_score, det_score, ref1, ref2, ref3
DET_HEAD = 1           # det head gets NO class-dim softmax
LANE = 128
NEG_PAD = -1e9         # bias for padded class lanes: exp() underflows to 0,
                       # and the value stays finite in bf16/f32 everywhere.


def _round_up(x, m):
    return ((x + m - 1) // m) * m


def _cdiv(a, b):
    return -(-a // b)


def _choose_tiling(rows, max_tile_rows):
    """TR from step count: minimal padding, even step count (>1) for v7x."""
    steps = _cdiv(rows, max_tile_rows)
    if steps > 1 and steps % 2:
        steps += 1                       # balance the two v7x TensorCores
    tr = _round_up(_cdiv(rows, steps), 8)
    return tr, steps, tr * steps


def _max_rows_for_vmem(C, np5, n_out, budget=24 * 1024 * 1024):
    """Largest row tile keeping double-buffered operands + f32 temporaries in
    `budget` (weights/bias/sel have a constant block index but are still
    double-buffered by the pipeline)."""
    fixed = 2 * (C * np5 * 2 + np5 * 4 + np5 * n_out * 2)
    per_row = 2 * (C * 2 + n_out * 2) + (np5 + n_out) * 4
    avail = budget - fixed
    if avail <= per_row * 8:
        return 8
    return max(8, (avail // per_row) // 8 * 8)


def _oicr_fused_kernel(pooled_ref, w_ref, b_ref, sel_ref, out_ref, *,
                       training, n_pad):
    """pooled_ref: [TR, C] bf16; w_ref: [C, 5*n_pad] bf16;
    b_ref: [1, 5*n_pad] f32; sel_ref: [5*n_pad, n_out] bf16;
    out_ref: [TR, n_out] bf16 (compacted heads, lane-dense)."""
    # One fused MXU matmul for all 5 heads, f32 accumulation.
    logits = jnp.dot(pooled_ref[...], w_ref[...],
                     preferred_element_type=jnp.float32)      # [TR, 5*n_pad]
    logits = logits + b_ref[...]                              # one bias add

    if training:
        vals = logits                                         # raw logits
    else:
        segs = []
        for h in range(NUM_HEADS):
            seg = logits[:, h * n_pad:(h + 1) * n_pad]        # 128-lane aligned
            if h != DET_HEAD:
                # Class-dim softmax; padded lanes hold NEG_PAD so exp -> 0.
                # Exact divide so rows sum to 1 at f32 precision.
                m = jnp.max(seg, axis=-1, keepdims=True)
                e = jnp.exp(seg - m)
                seg = e / jnp.sum(e, axis=-1, keepdims=True)
            segs.append(seg)
        vals = jnp.concatenate(segs, axis=-1)                 # [TR, 5*n_pad]

    # Compact the 5 heads' real classes into one lane-dense slab via a one-hot
    # selection matmul (MXU has slack); padded input lanes map to 0 output.
    compact = jnp.dot(vals.astype(jnp.bfloat16), sel_ref[...],
                      preferred_element_type=jnp.float32)     # [TR, n_out]
    out_ref[...] = compact.astype(out_ref.dtype)              # one bf16 store


def fuse_params(weights, biases):
    """Build the fused kernel operands ONCE; cache across forward calls.

    weights: [5, C, N] (pooled @ W layout), biases: [5, N].
    Returns dict with:
      w   [C, 5*n_pad]      bf16, per-head classes zero-padded to 128 lanes
      b   [1, 5*n_pad]      f32,  padded lanes = NEG_PAD
      sel [5*n_pad, n_out]  bf16, one-hot head/class compaction matrix
    """
    w = np.asarray(weights, np.float32)
    b = np.asarray(biases, np.float32)
    nh, C, N = w.shape
    assert nh == NUM_HEADS and b.shape == (NUM_HEADS, N)
    n_pad = _round_up(N, LANE)
    np5 = NUM_HEADS * n_pad
    n_out = _round_up(NUM_HEADS * N, LANE)

    w_cat = np.zeros((NUM_HEADS, C, n_pad), np.float32)
    w_cat[:, :, :N] = w
    w_cat = w_cat.transpose(1, 0, 2).reshape(C, np5)

    b_cat = np.full((NUM_HEADS, n_pad), NEG_PAD, np.float32)
    b_cat[:, :N] = b
    b_cat = b_cat.reshape(1, np5)

    sel = np.zeros((np5, n_out), np.float32)
    for h in range(NUM_HEADS):
        sel[h * n_pad:h * n_pad + N, h * N:(h + 1) * N] = np.eye(N)

    return dict(w=jnp.asarray(w_cat, jnp.bfloat16),
                b=jnp.asarray(b_cat, jnp.float32),
                sel=jnp.asarray(sel, jnp.bfloat16),
                in_channels=C, num_classes=N, n_pad=n_pad, n_out=n_out)


def oicr_predictor_forward(x, proposal_counts, fused, training=False,
                           max_tile_rows=512):
    """Forward pass of OICRPredictor with fused params from fuse_params().

    Args:
      x: [R, C, H, W] (NCHW) or [R, C] float array of ROI features.
      proposal_counts: python list of ints (proposals per image, sum == R).
      fused: dict from fuse_params().
      training: python bool.

    Returns:
      (cls_logit [R,N], final_det_logit [R,N], [ref1, ref2, ref3] each [R,N])
    """
    C, N = fused["in_channels"], fused["num_classes"]
    n_pad, n_out = fused["n_pad"], fused["n_out"]
    np5 = NUM_HEADS * n_pad

    x = x.astype(jnp.float32)
    if x.ndim == 4:
        pooled = jnp.mean(x, axis=(2, 3))     # AdaptiveAvgPool2d(1) in wrapper
    else:
        assert x.ndim == 2
        pooled = x
    R = pooled.shape[0]
    assert pooled.shape[1] == C
    if sum(int(n) for n in proposal_counts) != R:
        raise ValueError("proposal_counts must sum to the number of proposals")

    max_tr = min(max_tile_rows, _max_rows_for_vmem(C, np5, n_out))
    TR, steps, R_pad = _choose_tiling(R, max_tr)

    pooled_bf = jnp.pad(pooled, ((0, R_pad - R), (0, 0))).astype(jnp.bfloat16)

    kernel = functools.partial(_oicr_fused_kernel,
                               training=training, n_pad=n_pad)
    cost = pl.CostEstimate(
        flops=2 * R_pad * C * np5 + 2 * R_pad * np5 * n_out,
        transcendentals=0 if training else (NUM_HEADS - 1) * R_pad * n_pad,
        bytes_accessed=(R_pad * C * 2 + C * np5 * 2 + np5 * 4
                        + np5 * n_out * 2 + R_pad * n_out * 2))

    out = pl.pallas_call(
        kernel,
        out_shape=jax.ShapeDtypeStruct((R_pad, n_out), jnp.bfloat16),
        grid=(steps,),
        in_specs=[
            pl.BlockSpec((TR, C), lambda i: (i, 0)),        # streamed over R
            pl.BlockSpec((C, np5), lambda i: (0, 0)),       # VMEM-resident W
            pl.BlockSpec((1, np5), lambda i: (0, 0)),       # VMEM-resident b
            pl.BlockSpec((np5, n_out), lambda i: (0, 0)),   # compaction matrix
        ],
        out_specs=pl.BlockSpec((TR, n_out), lambda i: (i, 0)),
        compiler_params=pltpu.CompilerParams(
            dimension_semantics=("parallel",),   # megacore split on v7x
            vmem_limit_bytes=32 * 1024 * 1024),  # safe on v5e/v6e/v7x
        cost_estimate=cost,
    )(pooled_bf, fused["w"], fused["b"], fused["sel"])

    out = out[:R].astype(jnp.float32)            # compact [R, n_out] readback
    heads = [out[:, h * N:(h + 1) * N] for h in range(NUM_HEADS)]
    cls_logit, det_logit = heads[0], heads[1]
    ref_logits = heads[2:]

    if not training:
        # Per-image softmax over the proposal dim (dim=0) for the det head as
        # one fused segment-softmax (no Python slice/softmax/concat loop).
        # TODO(synk): could move in-kernel via PrefetchScalarGridSpec offsets.
        num_images = len(proposal_counts)
        seg_ids = jnp.asarray(
            np.repeat(np.arange(num_images), np.asarray(proposal_counts)),
            jnp.int32)
        seg_max = jax.ops.segment_max(det_logit, seg_ids,
                                      num_segments=num_images)
        e = jnp.exp(det_logit - seg_max[seg_ids])
        seg_sum = jax.ops.segment_sum(e, seg_ids, num_segments=num_images)
        final_det_logit = e / seg_sum[seg_ids]
    else:
        final_det_logit = det_logit

    return cls_logit, final_det_logit, ref_logits


def init_params(key, in_channels, num_classes):
    """nn.init.normal_(weight, mean=0, std=0.001); bias = 0, for all 5 heads."""
    w = jax.random.normal(key, (NUM_HEADS, in_channels, num_classes),
                          dtype=jnp.float32) * 0.001
    b = jnp.zeros((NUM_HEADS, num_classes), dtype=jnp.float32)
    return w, b


def _reference_forward(x, proposal_counts, weights, biases, training=False):
    """Pure-JAX f32 reference matching the PyTorch module."""
    pooled = jnp.mean(x, axis=(2, 3)) if x.ndim == 4 else x
    logits = [pooled @ weights[h] + biases[h] for h in range(NUM_HEADS)]
    cls_l, det_l, r1, r2, r3 = logits
    if not training:
        cls_l = jax.nn.softmax(cls_l, axis=1)
        segs, off = [], 0
        for n in proposal_counts:
            segs.append(jax.nn.softmax(det_l[off:off + n], axis=0))
            off += n
        det_l = jnp.concatenate(segs, axis=0)
        r1, r2, r3 = (jax.nn.softmax(r, axis=1) for r in (r1, r2, r3))
    return cls_l, det_l, [r1, r2, r3]


if __name__ == "__main__":
    key = jax.random.PRNGKey(0)
    kx, kw = jax.random.split(key)

    # 2 images, 576 proposals total, 64-channel 7x7 ROI features.
    # Tiling: steps=2 (even for v7x), TR=288, R_pad=576 -> zero wasted rows.
    in_channels = 64
    num_classes = 21
    proposal_counts = [300, 276]
    R = sum(proposal_counts)
    H = W = 7

    x = jax.random.normal(kx, (R, in_channels, H, W), dtype=jnp.float32)  # NCHW
    weights, biases = init_params(kw, in_channels, num_classes)
    fused = fuse_params(weights, biases)     # built ONCE, reused across calls

    # Inference path (softmaxes applied), as in module.eval().
    cls_logit, final_det_logit, ref_logits = oicr_predictor_forward(
        x, proposal_counts, fused, training=False)
    jax.block_until_ready(cls_logit)
    jax.block_until_ready(final_det_logit)
    for r in ref_logits:
        jax.block_until_ready(r)

    # Shape / semantics sanity checks.
    assert cls_logit.shape == (R, num_classes)
    assert final_det_logit.shape == (R, num_classes)
    assert all(r.shape == (R, num_classes) for r in ref_logits)
    assert jnp.allclose(jnp.sum(cls_logit, axis=1), 1.0, atol=1e-2)
    assert jnp.allclose(
        jnp.sum(final_det_logit[:proposal_counts[0]], axis=0), 1.0, atol=1e-2)

    # Numerical check vs. pure-JAX f32 reference (bf16 MXU operands + bf16
    # output store -> slightly loosened tolerance).
    ref_cls, ref_det, ref_refs = _reference_forward(
        x, proposal_counts, weights, biases, training=False)
    assert jnp.allclose(cls_logit, ref_cls, atol=5e-3)
    assert jnp.allclose(final_det_logit, ref_det, atol=5e-3)
    for a, b in zip(ref_logits, ref_refs):
        assert jnp.allclose(a, b, atol=5e-3)

    # Training path (raw logits) runs through the same kernel.
    tr_cls, tr_det, tr_refs = oicr_predictor_forward(
        x, proposal_counts, fused, training=True)
    jax.block_until_ready(tr_det)
    rtr_cls, rtr_det, _ = _reference_forward(
        x, proposal_counts, weights, biases, training=True)
    assert jnp.allclose(tr_cls, rtr_cls, atol=5e-3)
    assert jnp.allclose(tr_det, rtr_det, atol=5e-3)

    print("KERNEL_OK")
</pallas_src>

<mosaic_0001>
module attributes {stable_mosaic.version = 11 : i64} {
  func.func @_oicr_fused_kernel(%arg0: i32, %arg1: memref<288x64xbf16, #tpu.memory_space<vmem>>, %arg2: memref<64x640xbf16, #tpu.memory_space<vmem>>, %arg3: memref<1x640xf32, #tpu.memory_space<vmem>>, %arg4: memref<640x128xbf16, #tpu.memory_space<vmem>>, %arg5: memref<288x128xbf16, #tpu.memory_space<vmem>>) attributes {dimension_semantics = [#tpu.dimension_semantics<parallel>], iteration_bounds = array<i64: 2>, scalar_prefetch = 0 : i64, scratch_operands = 0 : i64, tpu.core_type = #tpu.core_type<tc>, window_params = [{transform_indices = @transform_0, window_bounds = array<i64: 288, 64>}, {pipeline_mode = #tpu.pipeline_mode<synchronous>, transform_indices = @transform_1, window_bounds = array<i64: 64, 640>}, {pipeline_mode = #tpu.pipeline_mode<synchronous>, transform_indices = @transform_2, window_bounds = array<i64: 1, 640>}, {pipeline_mode = #tpu.pipeline_mode<synchronous>, transform_indices = @transform_3, window_bounds = array<i64: 640, 128>}, {transform_indices = @transform_4, window_bounds = array<i64: 288, 128>}]} {
    %c0 = arith.constant 0 : index
    %c0_0 = arith.constant 0 : index
    %0 = vector.load %arg1[%c0, %c0_0] : memref<288x64xbf16, #tpu.memory_space<vmem>>, vector<288x64xbf16>
    %c0_1 = arith.constant 0 : index
    %c0_2 = arith.constant 0 : index
    %1 = vector.load %arg2[%c0_1, %c0_2] : memref<64x640xbf16, #tpu.memory_space<vmem>>, vector<64x640xbf16>
    %cst = arith.constant dense<0.000000e+00> : vector<288x640xf32>
    %2 = tpu.matmul %0, %1, %cst {dimension_numbers = #tpu.dot_dimension_numbers<[1], [0], [0], [1], [0, 0, 1, 1], [], []>} : vector<288x64xbf16>, vector<64x640xbf16>, vector<288x640xf32> -> vector<288x640xf32>
    %c0_3 = arith.constant 0 : index
    %c0_4 = arith.constant 0 : index
    %3 = vector.load %arg3[%c0_3, %c0_4] : memref<1x640xf32, #tpu.memory_space<vmem>>, vector<1x640xf32>
    %4 = vector.broadcast %3 : vector<1x640xf32> to vector<288x640xf32>
    %5 = arith.addf %2, %4 : vector<288x640xf32>
    %6 = vector.extract_strided_slice %5 {offsets = [0, 0], sizes = [288, 128], strides = [1, 1]} : vector<288x640xf32> to vector<288x128xf32>
    %cst_5 = arith.constant dense<0xFF800000> : vector<288xf32>
    %7 = vector.multi_reduction <maximumf>, %6, %cst_5 [1] : vector<288x128xf32> to vector<288xf32>
    %8 = vector.shape_cast %7 : vector<288xf32> to vector<288x1xf32>
    %9 = vector.broadcast %8 : vector<288x1xf32> to vector<288x128xf32>
    %10 = arith.subf %6, %9 : vector<288x128xf32>
    %11 = math.exp %10 : vector<288x128xf32>
    %cst_6 = arith.constant dense<0.000000e+00> : vector<288xf32>
    %12 = vector.multi_reduction <add>, %11, %cst_6 [1] : vector<288x128xf32> to vector<288xf32>
    %13 = vector.shape_cast %12 : vector<288xf32> to vector<288x1xf32>
    %14 = vector.broadcast %13 : vector<288x1xf32> to vector<288x128xf32>
    %15 = arith.divf %11, %14 : vector<288x128xf32>
    %16 = vector.extract_strided_slice %5 {offsets = [0, 128], sizes = [288, 128], strides = [1, 1]} : vector<288x640xf32> to vector<288x128xf32>
    %17 = vector.extract_strided_slice %5 {offsets = [0, 256], sizes = [288, 128], strides = [1, 1]} : vector<288x640xf32> to vector<288x128xf32>
    %cst_7 = arith.constant dense<0xFF800000> : vector<288xf32>
    %18 = vector.multi_reduction <maximumf>, %17, %cst_7 [1] : vector<288x128xf32> to vector<288xf32>
    %19 = vector.shape_cast %18 : vector<288xf32> to vector<288x1xf32>
    %20 = vector.broadcast %19 : vector<288x1xf32> to vector<288x128xf32>
    %21 = arith.subf %17, %20 : vector<288x128xf32>
    %22 = math.exp %21 : vector<288x128xf32>
    %cst_8 = arith.constant dense<0.000000e+00> : vector<288xf32>
    %23 = vector.multi_reduction <add>, %22, %cst_8 [1] : vector<288x128xf32> to vector<288xf32>
    %24 = vector.shape_cast %23 : vector<288xf32> to vector<288x1xf32>
    %25 = vector.broadcast %24 : vector<288x1xf32> to vector<288x128xf32>
    %26 = arith.divf %22, %25 : vector<288x128xf32>
    %27 = vector.extract_strided_slice %5 {offsets = [0, 384], sizes = [288, 128], strides = [1, 1]} : vector<288x640xf32> to vector<288x128xf32>
    %cst_9 = arith.constant dense<0xFF800000> : vector<288xf32>
    %28 = vector.multi_reduction <maximumf>, %27, %cst_9 [1] : vector<288x128xf32> to vector<288xf32>
    %29 = vector.shape_cast %28 : vector<288xf32> to vector<288x1xf32>
    %30 = vector.broadcast %29 : vector<288x1xf32> to vector<288x128xf32>
    %31 = arith.subf %27, %30 : vector<288x128xf32>
    %32 = math.exp %31 : vector<288x128xf32>
    %cst_10 = arith.constant dense<0.000000e+00> : vector<288xf32>
    %33 = vector.multi_reduction <add>, %32, %cst_10 [1] : vector<288x128xf32> to vector<288xf32>
    %34 = vector.shape_cast %33 : vector<288xf32> to vector<288x1xf32>
    %35 = vector.broadcast %34 : vector<288x1xf32> to vector<288x128xf32>
    %36 = arith.divf %32, %35 : vector<288x128xf32>
    %37 = vector.extract_strided_slice %5 {offsets = [0, 512], sizes = [288, 128], strides = [1, 1]} : vector<288x640xf32> to vector<288x128xf32>
    %cst_11 = arith.constant dense<0xFF800000> : vector<288xf32>
    %38 = vector.multi_reduction <maximumf>, %37, %cst_11 [1] : vector<288x128xf32> to vector<288xf32>
    %39 = vector.shape_cast %38 : vector<288xf32> to vector<288x1xf32>
    %40 = vector.broadcast %39 : vector<288x1xf32> to vector<288x128xf32>
    %41 = arith.subf %37, %40 : vector<288x128xf32>
    %42 = math.exp %41 : vector<288x128xf32>
    %cst_12 = arith.constant dense<0.000000e+00> : vector<288xf32>
    %43 = vector.multi_reduction <add>, %42, %cst_12 [1] : vector<288x128xf32> to vector<288xf32>
    %44 = vector.shape_cast %43 : vector<288xf32> to vector<288x1xf32>
    %45 = vector.broadcast %44 : vector<288x1xf32> to vector<288x128xf32>
    %46 = arith.divf %42, %45 : vector<288x128xf32>
    %47 = tpu.concatenate %15, %16, %26, %36, %46 in 1 : vector<288x128xf32>, vector<288x128xf32>, vector<288x128xf32>, vector<288x128xf32>, vector<288x128xf32> -> vector<288x640xf32>
    %48 = arith.truncf %47 : vector<288x640xf32> to vector<288x640xbf16>
    %c0_13 = arith.constant 0 : index
    %c0_14 = arith.constant 0 : index
    %49 = vector.load %arg4[%c0_13, %c0_14] : memref<640x128xbf16, #tpu.memory_space<vmem>>, vector<640x128xbf16>
    %cst_15 = arith.constant dense<0.000000e+00> : vector<288x128xf32>
    %50 = tpu.matmul %48, %49, %cst_15 {dimension_numbers = #tpu.dot_dimension_numbers<[1], [0], [0], [1], [0, 0, 1, 1], [], []>} : vector<288x640xbf16>, vector<640x128xbf16>, vector<288x128xf32> -> vector<288x128xf32>
    %51 = arith.truncf %50 : vector<288x128xf32> to vector<288x128xbf16>
    %c0_16 = arith.constant 0 : index
    %c0_17 = arith.constant 0 : index
    %52 = vector.load %arg5[%c0_16, %c0_17] : memref<288x128xbf16, #tpu.memory_space<vmem>>, vector<288x128xbf16>
    tpu.vector_store %arg5[%c0_16, %c0_17], %51 {strides = array<i32>} : memref<288x128xbf16, #tpu.memory_space<vmem>>, vector<288x128xbf16>,
    return
  }
  func.func @transform_0(%arg0: i32) -> (i32, i32) {
    %c0_i32 = arith.constant 0 : i32
    %c0_i32_0 = arith.constant 0 : i32
    return %arg0, %c0_i32 : i32, i32
  }
  func.func @transform_1(%arg0: i32) -> (i32, i32) {
    %c0_i32 = arith.constant 0 : i32
    %c0_i32_0 = arith.constant 0 : i32
    %c0_i32_1 = arith.constant 0 : i32
    return %c0_i32, %c0_i32_0 : i32, i32
  }
  func.func @transform_2(%arg0: i32) -> (i32, i32) {
    %c0_i32 = arith.constant 0 : i32
    %c0_i32_0 = arith.constant 0 : i32
    %c0_i32_1 = arith.constant 0 : i32
    return %c0_i32, %c0_i32_0 : i32, i32
  }
  func.func @transform_3(%arg0: i32) -> (i32, i32) {
    %c0_i32 = arith.constant 0 : i32
    %c0_i32_0 = arith.constant 0 : i32
    %c0_i32_1 = arith.constant 0 : i32
    return %c0_i32, %c0_i32_0 : i32, i32
  }
  func.func @transform_4(%arg0: i32) -> (i32, i32) {
    %c0_i32 = arith.constant 0 : i32
    %c0_i32_0 = arith.constant 0 : i32
    return %arg0, %c0_i32 : i32, i32
  }
}

</mosaic_0001>

<llo_original>
// kernel: tpu_custom_call.1
$region0: #{tpu_custom_call.1}
  #allocation0 [shape = 'u32[]', space=smem, size = 0x4, offset = 0x4, fixed_abs, tag = 'smem constant byte address 0x4 - core index']
  #allocation1 [shape = 'u32[144,128]{1,0:T(1,128)}', space=vmem, size = 0x12000, scoped, tag = 'internal scratch']
  %s0 = inlined_call_operand.vmem [shape: bf16[576,64], index: 0, kind: input, shape index: {}]
  %s1 = inlined_call_operand.hbm [shape: bf16[64,640], index: 1, kind: input, shape index: {}]
  %s2 = inlined_call_operand.vmem [shape: f32[1,640], index: 2, kind: input, shape index: {}]
  %s3 = inlined_call_operand.vmem [shape: bf16[640,128], index: 3, kind: input, shape index: {}]
  %s4 = inlined_call_operand.hbm [shape: bf16[576,128], index: 4, kind: output, shape index: {}]
  %s5 = sld [smem:[#allocation0]]
  $region53: #{tpu_custom_call.1} parent=0
    _
  %s7 = ssub.s32 1, %s5
  %s8 = scalar_select 0, %s7, %s5
  $region1: #{tpu_custom_call.1} parent=0
    #allocation2 [shape = 'u8[81920]{0}', space=vmem, size = 0x14000, scoped, tag = 'input window, operand 1, single buffered']
    #allocation3 [shape = 's32[2]{0}', space=sflag, size = 0x8, scoped, tag = 'scoped memory for tpu_custom_call.1']
    #allocation4 [shape = 's32[2]{0}', space=sflag, size = 0x8, scoped, tag = 'scoped memory for tpu_custom_call.1']
    #allocation5 [shape = 'u8[147456]{0}', space=vmem, size = 0x24000, scoped, tag = 'output window, operand 0']
    %9 = vsyncpa [#allocation3], 0
    %10 = vsyncpa [#allocation4], 0
    %s11 = scalar_lea.sflag [#allocation4], 1
    %12 = vsyncpa %s11, 0
    loop: start=0, step=1, limit=4
    $region2: #{tpu_custom_call.1} parent=1 // loop_pre_header
      _
    $region3: #{tpu_custom_call.1} parent=1 // loop_header
      %s14 = sphi 0, %s18
      %p15 = scmp.ge.s32.totalorder %s14, 4
      %s24 = sphi 0, %s26
      %s27 = sphi 0, %s24
      %s28 = sphi 0, %s27
      %s44 = sphi 0, %s28
      %s48 = sphi 0, %s48
      %s50 = sphi 0, %s48
      %s51 = sphi 0, %s50
      %s65 = sphi 0, %s51
      %s69 = sphi 0, %s69
      %s71 = sphi 0, %s69
      %s72 = sphi 0, %s71
      %s86 = sphi 0, %s72
      %s90 = sphi 0, %s90
      %s92 = sphi 0, %s90
      %s93 = sphi 0, %s92
      %s107 = sphi 0, %s93
      %s113 = sphi 0, %s115
      %s116 = sphi 0, %s113
      %s117 = sphi 0, %s116
      %s133 = sphi 0, %s117
    $region4: #{tpu_custom_call.1} parent=1 // loop_header_branch
      %17 = sbr.rel (%p15) target = $region8
    $region5: #{tpu_custom_call.1} parent=1 // loop_body
      %s19 = ssub.s32 %s14, 1
      %s20 = ssub.s32 %s14, 2
      %s21 = sadd.s32 %s14, 1
      %s22 = ssub.s32 %s14, %s21
      %p23 = scmp.eq.s32.totalorder %s22, 0
      %s25 = sadd.s32 %s24, 1
      %s26 = scalar_select %p23, %s24, %s25
      %p29 = pneg %p23
      %p30 = scmp.eq.s32.totalorder %s14, 1
      %p31 = por %p29, %p30
      %p32 = scmp.ne.s32.totalorder %s24, %s27
      %p33 = scmp.eq.s32.totalorder %s14, 0
      %p34 = por %p32, %p33
      %p35 = scmp.ne.s32.totalorder %s24, %s27
      %p36 = scmp.eq.s32.totalorder %s19, 1
      %p37 = por %p35, %p36
      %p38 = scmp.ne.s32.totalorder %s27, %s28
      %p39 = scmp.eq.s32.totalorder %s19, 0
      %p40 = por %p38, %p39
      %p41 = scmp.ne.s32.totalorder %s27, %s28
      %p42 = scmp.eq.s32.totalorder %s20, 1
      %p43 = por %p41, %p42
      %p45 = scmp.ne.s32.totalorder %s28, %s44
      %p46 = scmp.eq.s32.totalorder %s20, 0
      %p47 = por %p45, %p46
      %s49 = sadd.s32 %s48, 1
      %p52 = scmp.eq.s32.totalorder %s14, 1
      %p53 = scmp.ne.s32.totalorder %s48, %s50
      %p54 = scmp.eq.s32.totalorder %s14, 0
      %p55 = por %p53, %p54
      %p56 = scmp.ne.s32.totalorder %s48, %s50
      %p57 = scmp.eq.s32.totalorder %s19, 1
      %p58 = por %p56, %p57
      %p59 = scmp.ne.s32.totalorder %s50, %s51
      %p60 = scmp.eq.s32.totalorder %s19, 0
      %p61 = por %p59, %p60
      %p62 = scmp.ne.s32.totalorder %s50, %s51
      %p63 = scmp.eq.s32.totalorder %s20, 1
      %p64 = por %p62, %p63
      %p66 = scmp.ne.s32.totalorder %s51, %s65
      %p67 = scmp.eq.s32.totalorder %s20, 0
      %p68 = por %p66, %p67
      %s70 = sadd.s32 %s69, 1
      %p73 = scmp.eq.s32.totalorder %s14, 1
      %p74 = scmp.ne.s32.totalorder %s69, %s71
      %p75 = scmp.eq.s32.totalorder %s14, 0
      %p76 = por %p74, %p75
      %p77 = scmp.ne.s32.totalorder %s69, %s71
      %p78 = scmp.eq.s32.totalorder %s19, 1
      %p79 = por %p77, %p78
      %p80 = scmp.ne.s32.totalorder %s71, %s72
      %p81 = scmp.eq.s32.totalorder %s19, 0
      %p82 = por %p80, %p81
      %p83 = scmp.ne.s32.totalorder %s71, %s72
      %p84 = scmp.eq.s32.totalorder %s20, 1
      %p85 = por %p83, %p84
      %p87 = scmp.ne.s32.totalorder %s72, %s86
      %p88 = scmp.eq.s32.totalorder %s20, 0
      %p89 = por %p87, %p88
      %s91 = sadd.s32 %s90, 1
      %p94 = scmp.eq.s32.totalorder %s14, 1
      %p95 = scmp.ne.s32.totalorder %s90, %s92
      %p96 = scmp.eq.s32.totalorder %s14, 0
      %p97 = por %p95, %p96
      %p98 = scmp.ne.s32.totalorder %s90, %s92
      %p99 = scmp.eq.s32.totalorder %s19, 1
      %p100 = por %p98, %p99
      %p101 = scmp.ne.s32.totalorder %s92, %s93
      %p102 = scmp.eq.s32.totalorder %s19, 0
      %p103 = por %p101, %p102
      %p104 = scmp.ne.s32.totalorder %s92, %s93
      %p105 = scmp.eq.s32.totalorder %s20, 1
      %p106 = por %p104, %p105
      %p108 = scmp.ne.s32.totalorder %s93, %s107
      %p109 = scmp.eq.s32.totalorder %s20, 0
      %p110 = por %p108, %p109
      %s111 = ssub.s32 %s14, %s21
      %p112 = scmp.eq.s32.totalorder %s111, 0
      %s114 = sadd.s32 %s113, 1
      %s115 = scalar_select %p112, %s113, %s114
      %p118 = pneg %p112
      %p119 = scmp.eq.s32.totalorder %s14, 1
      %p120 = por %p118, %p119
      %p121 = scmp.ne.s32.totalorder %s113, %s116
      %p122 = scmp.eq.s32.totalorder %s14, 0
      %p123 = por %p121, %p122
      %p124 = scmp.ne.s32.totalorder %s113, %s116
      %p125 = scmp.eq.s32.totalorder %s19, 1
      %p126 = por %p124, %p125
      %p127 = scmp.ne.s32.totalorder %s116, %s117
      %p128 = scmp.eq.s32.totalorder %s19, 0
      %p129 = por %p127, %p128
      %p130 = scmp.ne.s32.totalorder %s116, %s117
      %p131 = scmp.eq.s32.totalorder %s20, 1
      %p132 = por %p130, %p131
      %p134 = scmp.ne.s32.totalorder %s117, %s133
      %p135 = scmp.eq.s32.totalorder %s20, 0
      %p136 = por %p134, %p135
      %p137 = scmp.le.s32.totalorder 1, %s14
      %p138 = scmp.lt.s32.totalorder %s14, 3
      %p139 = pnand %p137, %p138
      %p140 = pneg %p139
      // Predicated region
      $region9: #{tpu_custom_call.1} parent=5 // pred_check
        _
      $region10: #{tpu_custom_call.1} parent=5 // pred_check_branch
        %142 = sbr.rel (%p139) target = $region12
      $region11: #{tpu_custom_call.1} parent=5 // pred_region
        %s143 = ssub.s32 %s14, 1
        // Predicated region
        $region13: #{tpu_custom_call.1} parent=11 // pred_check
          %p144 = pneg %p61
        $region14: #{tpu_custom_call.1} parent=11 // pred_check_branch
          %146 = sbr.rel (%p144) target = $region16
        $region15: #{tpu_custom_call.1} parent=11 // pred_region
          %s148 = ssub.s32 2560, 2560
          %149 = vsyncadd [#allocation3], %s148
          %s150 = sshll.u32 [#allocation2], 4
          %s151 = int_to_ptr.vmem [resolvable:$true] %s150
          %156 = dma.hbm_to_vmem [thread:$0]  %s1, 2560, %s151, [#allocation3], 320, 320, 20
        $region16: #{tpu_custom_call.1} parent=11 // pred_fallthru
          _
        // Predicated region
        $region17: #{tpu_custom_call.1} parent=11 // pred_check
          %p157 = pneg %p82
        $region18: #{tpu_custom_call.1} parent=11 // pred_check_branch
          %159 = sbr.rel (%p157) target = $region20
        $region19: #{tpu_custom_call.1} parent=11 // pred_region
          _
        $region20: #{tpu_custom_call.1} parent=11 // pred_fallthru
          _
        // Predicated region
        $region21: #{tpu_custom_call.1} parent=11 // pred_check
          %p160 = pneg %p103
        $region22: #{tpu_custom_call.1} parent=11 // pred_check_branch
          %162 = sbr.rel (%p160) target = $region24
        $region23: #{tpu_custom_call.1} parent=11 // pred_region
          _
        $region24: #{tpu_custom_call.1} parent=11 // pred_fallthru
          _
      $region12: #{tpu_custom_call.1} parent=5 // pred_fallthru
        _
      %p163 = scmp.lt.s32.totalorder %s14, 2
      // Predicated region
      $region25: #{tpu_custom_call.1} parent=5 // pred_check
        %p164 = pneg %p163
      $region26: #{tpu_custom_call.1} parent=5 // pred_check_branch
        %166 = sbr.rel (%p164) target = $region28
      $region27: #{tpu_custom_call.1} parent=5 // pred_region
        // Predicated region
        $region29: #{tpu_custom_call.1} parent=27 // pred_check
          %p167 = pneg %p34
        $region30: #{tpu_custom_call.1} parent=27 // pred_check_branch
          %169 = sbr.rel (%p167) target = $region32
        $region31: #{tpu_custom_call.1} parent=27 // pred_region
          %s170 = smul.u32 36, %s14
          %p171 = scmp.lt.s32.totalorder %s170, 71
          %s172 = scalar_select %p171, %s170, 71
          %s173 = smul.addr %s172, 4
          %s174 = scalar_lea.vmem %s0, %s173
          %s175 = smul.u32 36, %s14
        $region32: #{tpu_custom_call.1} parent=27 // pred_fallthru
          _
      $region28: #{tpu_custom_call.1} parent=5 // pred_fallthru
        _
      %p176 = scmp.le.s32.totalorder 1, %s14
      %p177 = scmp.lt.s32.totalorder %s14, 3
      %p178 = pnand %p176, %p177
      %p179 = pneg %p178
      // Predicated region
      $region33: #{tpu_custom_call.1} parent=5 // pred_check
        _
      $region34: #{tpu_custom_call.1} parent=5 // pred_check_branch
        %181 = sbr.rel (%p178) target = $region36
      $region35: #{tpu_custom_call.1} parent=5 // pred_region
        %s182 = ssub.s32 %s14, 1
        // Predicated region
        $region37: #{tpu_custom_call.1} parent=35 // pred_check
          %p183 = pneg %p61
        $region38: #{tpu_custom_call.1} parent=35 // pred_check_branch
          %185 = sbr.rel (%p183) target = $region40
        $region39: #{tpu_custom_call.1} parent=35 // pred_region
          %186 = dma.done [#allocation3], 2560
        $region40: #{tpu_custom_call.1} parent=35 // pred_fallthru
          _
        %s187 = smul.u32 36, %s19
        %p188 = scmp.lt.s32.totalorder %s187, 71
        %s189 = scalar_select %p188, %s187, 71
        %s190 = smul.addr %s189, 4
        %s191 = scalar_lea.vmem %s0, %s190
        %p192 = pneg %p40
        %p193 = pneg %p37
        %p194 = pneg %p61
        %p195 = pneg %p58
        %p196 = pneg %p82
        %p197 = pneg %p79
        %p198 = pneg %p103
        %p199 = pneg %p100
        %p200 = pneg %p129
        %p201 = pneg %p126
        %s202 = sand.u32 %s116, 1
        %s203 = scalar_lea.sflag [#allocation4], %s202
        %s204 = sand.u32 %s116, 1
        %s205 = smul.addr %s204, 144
        %s206 = scalar_lea.vmem [#allocation5], %s205
        %s207 = smul.u32 36, %s19
        %p208 = scmp.lt.s32.totalorder %s207, 71
        %s209 = scalar_select %p208, %s207, 71
        %s210 = smul.addr %s209, 4
        %s211 = scalar_lea.vmem %s0, %s210
        %s212 = smul.u32 36, %s19
        %s213 = smul.u32 36, %s19
        %v215 = vld [vmem:[%s211] sm:$0xf]
        %v216 = vld [vmem:[%s211 + $0x4] sm:$0xf]
        %v217 = vld [vmem:[%s211 + $0x8] sm:$0xf]
        %v218 = vld [vmem:[%s211 + $0xc] sm:$0xf]
        %v219 = vld [vmem:[%s211 + $0x10] sm:$0xf]
        %v220 = vld [vmem:[%s211 + $0x14] sm:$0xf]
        %v221 = vld [vmem:[%s211 + $0x18] sm:$0xf]
        %v222 = vld [vmem:[%s211 + $0x1c] sm:$0xf]
        %v223 = vld [vmem:[%s211 + $0x20] sm:$0xf]
        %v224 = vld [vmem:[%s211 + $0x24] sm:$0xf]
        %v225 = vld [vmem:[%s211 + $0x28] sm:$0xf]
        %v226 = vld [vmem:[%s211 + $0x2c] sm:$0xf]
        %v227 = vld [vmem:[%s211 + $0x30] sm:$0xf]
        %v228 = vld [vmem:[%s211 + $0x34] sm:$0xf]
        %v229 = vld [vmem:[%s211 + $0x38] sm:$0xf]
        %v230 = vld [vmem:[%s211 + $0x3c] sm:$0xf]
        %v231 = vld [vmem:[%s211 + $0x40] sm:$0xf]
        %v232 = vld [vmem:[%s211 + $0x44] sm:$0xf]
        %v233 = vld [vmem:[%s211 + $0x48] sm:$0xf]
        %v234 = vld [vmem:[%s211 + $0x4c] sm:$0xf]
        %v235 = vld [vmem:[%s211 + $0x50] sm:$0xf]
        %v236 = vld [vmem:[%s211 + $0x54] sm:$0xf]
        %v237 = vld [vmem:[%s211 + $0x58] sm:$0xf]
        %v238 = vld [vmem:[%s211 + $0x5c] sm:$0xf]
        %v239 = vld [vmem:[%s211 + $0x60] sm:$0xf]
        %v240 = vld [vmem:[%s211 + $0x64] sm:$0xf]
        %v241 = vld [vmem:[%s211 + $0x68] sm:$0xf]
        %v242 = vld [vmem:[%s211 + $0x6c] sm:$0xf]
        %v243 = vld [vmem:[%s211 + $0x70] sm:$0xf]
        %v244 = vld [vmem:[%s211 + $0x74] sm:$0xf]
        %v245 = vld [vmem:[%s211 + $0x78] sm:$0xf]
        %v246 = vld [vmem:[%s211 + $0x7c] sm:$0xf]
        %v247 = vld [vmem:[%s211 + $0x80] sm:$0xf]
        %v248 = vld [vmem:[%s211 + $0x84] sm:$0xf]
        %v249 = vld [vmem:[%s211 + $0x88] sm:$0xf]
        %v250 = vld [vmem:[%s211 + $0x8c] sm:$0xf]
        %v251 = vld [vmem:[#allocation2] sm:$0xff]
        %v252 = vld [vmem:[#allocation2 + $0x8] sm:$0xff]
        %v253 = vld [vmem:[#allocation2 + $0x10] sm:$0xf]
        %v254 = vld [vmem:[#allocation2 + $0x14] sm:$0xff]
        %v255 = vld [vmem:[#allocation2 + $0x1c] sm:$0xff]
        %v256 = vld [vmem:[#allocation2 + $0x24] sm:$0xf]
        %v257 = vld [vmem:[#allocation2 + $0x28] sm:$0xff]
        %v258 = vld [vmem:[#allocation2 + $0x30] sm:$0xff]
        %v259 = vld [vmem:[#allocation2 + $0x38] sm:$0xf]
        %v260 = vld [vmem:[#allocation2 + $0x3c] sm:$0xff]
        %v261 = vld [vmem:[#allocation2 + $0x44] sm:$0xff]
        %v262 = vld [vmem:[#allocation2 + $0x4c] sm:$0xf]
        %v263 = vld [vmem:[#allocation2 + $0x50] sm:$0xff]
        %v264 = vld [vmem:[#allocation2 + $0x58] sm:$0xff]
        %v265 = vld [vmem:[#allocation2 + $0x60] sm:$0xf]
        %v266 = vld [vmem:[#allocation2 + $0x64] sm:$0xff]
        %v267 = vld [vmem:[#allocation2 + $0x6c] sm:$0xff]
        %v268 = vld [vmem:[#allocation2 + $0x74] sm:$0xf]
        %v269 = vld [vmem:[#allocation2 + $0x78] sm:$0xff]
        %v270 = vld [vmem:[#allocation2 + $0x80] sm:$0xff]
        %v271 = vld [vmem:[#allocation2 + $0x88] sm:$0xf]
        %v272 = vld [vmem:[#allocation2 + $0x8c] sm:$0xff]
        %v273 = vld [vmem:[#allocation2 + $0x94] sm:$0xff]
        %v274 = vld [vmem:[#allocation2 + $0x9c] sm:$0xf]
        %v275 = vld [vmem:[%s2] sm:$0x1f]
        %v277 = vlaneseq
        %v278 = vshrl.u32 %v277, 7
        %v279 = vsub.s32 0, %v278
        %v280 = vrot.slane %v275, %v279
        %v281 = vlaneseq
        %v282 = vshrl.u32 %v281, 7
        %v283 = vsub.s32 1, %v282
        %v284 = vrot.slane %v275, %v283
        %v285 = vlaneseq
        %v286 = vshrl.u32 %v285, 7
        %v287 = vsub.s32 2, %v286
        %v288 = vrot.slane %v275, %v287
        %v289 = vlaneseq
        %v290 = vshrl.u32 %v289, 7
        %v291 = vsub.s32 3, %v290
        %v292 = vrot.slane %v275, %v291
        %v293 = vlaneseq
        %v294 = vshrl.u32 %v293, 7
        %v295 = vsub.s32 4, %v294
        %v296 = vrot.slane %v275, %v295
        %v338 = vunpack.c.l.b16 %v215
        %v339 = vunpack.c.l.b16 %v216
        %v340 = vunpack.c.l.b16 %v217
        %v341 = vunpack.c.l.b16 %v218
        %v342 = vunpack.c.l.b16 %v219
        %v343 = vunpack.c.l.b16 %v220
        %v344 = vunpack.c.l.b16 %v221
        %v345 = vunpack.c.l.b16 %v222
        %v346 = vunpack.c.l.b16 %v223
        %v347 = vunpack.c.l.b16 %v224
        %v348 = vunpack.c.l.b16 %v225
        %v349 = vunpack.c.l.b16 %v226
        %v350 = vunpack.c.l.b16 %v227
        %v351 = vunpack.c.l.b16 %v228
        %v352 = vunpack.c.l.b16 %v229
        %v353 = vunpack.c.l.b16 %v230
        %v354 = vunpack.c.l.b16 %v231
        %v355 = vunpack.c.l.b16 %v232
        %v356 = vunpack.c.l.b16 %v233
        %v357 = vunpack.c.l.b16 %v234
        %v358 = vunpack.c.l.b16 %v235
        %v359 = vunpack.c.l.b16 %v236
        %v360 = vunpack.c.l.b16 %v237
        %v361 = vunpack.c.l.b16 %v238
        %v362 = vunpack.c.l.b16 %v239
        %v363 = vunpack.c.l.b16 %v240
        %v364 = vunpack.c.l.b16 %v241
        %v365 = vunpack.c.l.b16 %v242
        %v366 = vunpack.c.l.b16 %v243
        %v367 = vunpack.c.l.b16 %v244
        %v368 = vunpack.c.l.b16 %v245
        %v369 = vunpack.c.l.b16 %v246
        %v370 = vunpack.c.l.b16 %v247
        %v371 = vunpack.c.l.b16 %v248
        %v372 = vunpack.c.l.b16 %v249
        %v373 = vunpack.c.l.b16 %v250
        %v374 = vpack.c.b16 %v339, %v338
        %v375 = vpack.c.b16 %v341, %v340
        %v376 = vpack.c.b16 %v343, %v342
        %v377 = vpack.c.b16 %v345, %v344
        %v378 = vpack.c.b16 %v347, %v346
        %v379 = vpack.c.b16 %v349, %v348
        %v380 = vpack.c.b16 %v351, %v350
        %v381 = vpack.c.b16 %v353, %v352
        %v382 = vpack.c.b16 %v355, %v354
        %v383 = vpack.c.b16 %v357, %v356
        %v384 = vpack.c.b16 %v359, %v358
        %v385 = vpack.c.b16 %v361, %v360
        %v386 = vpack.c.b16 %v363, %v362
        %v387 = vpack.c.b16 %v365, %v364
        %v388 = vpack.c.b16 %v367, %v366
        %v389 = vpack.c.b16 %v369, %v368
        %v390 = vpack.c.b16 %v371, %v370
        %v391 = vpack.c.b16 %v373, %v372
        %v416 = vunpack.c.l.b16 %v251
        %v417 = vunpack.c.h.b16 %v251
        %v418 = vunpack.c.l.b16 %v252
        %v419 = vunpack.c.h.b16 %v252
        %v420 = vunpack.c.l.b16 %v253
        %v421 = vunpack.c.l.b16 %v254
        %v422 = vunpack.c.h.b16 %v254
        %v423 = vunpack.c.l.b16 %v255
        %v424 = vunpack.c.h.b16 %v255
        %v425 = vunpack.c.l.b16 %v256
        %v426 = vunpack.c.l.b16 %v257
        %v427 = vunpack.c.h.b16 %v257
        %v428 = vunpack.c.l.b16 %v258
        %v429 = vunpack.c.h.b16 %v258
        %v430 = vunpack.c.l.b16 %v259
        %v431 = vunpack.c.l.b16 %v260
        %v432 = vunpack.c.h.b16 %v260
        %v433 = vunpack.c.l.b16 %v261
        %v434 = vunpack.c.h.b16 %v261
        %v435 = vunpack.c.l.b16 %v262
        %v436 = vunpack.c.l.b16 %v263
        %v437 = vunpack.c.h.b16 %v263
        %v438 = vunpack.c.l.b16 %v264
        %v439 = vunpack.c.h.b16 %v264
        %v440 = vunpack.c.l.b16 %v265
        %v441 = vunpack.c.l.b16 %v266
        %v442 = vunpack.c.h.b16 %v266
        %v443 = vunpack.c.l.b16 %v267
        %v444 = vunpack.c.h.b16 %v267
        %v445 = vunpack.c.l.b16 %v268
        %v446 = vunpack.c.l.b16 %v269
        %v447 = vunpack.c.h.b16 %v269
        %v448 = vunpack.c.l.b16 %v270
        %v449 = vunpack.c.h.b16 %v270
        %v450 = vunpack.c.l.b16 %v271
        %v451 = vunpack.c.l.b16 %v272
        %v452 = vunpack.c.h.b16 %v272
        %v453 = vunpack.c.l.b16 %v273
        %v454 = vunpack.c.h.b16 %v273
        %v455 = vunpack.c.l.b16 %v274
        %v456 = vpack.c.b16 %v421, %v416
        %v457 = vpack.c.b16 %v422, %v417
        %v458 = vpack.c.b16 %v423, %v418
        %v459 = vpack.c.b16 %v424, %v419
        %v460 = vpack.c.b16 %v425, %v420
        %v461 = vpack.c.b16 %v431, %v426
        %v462 = vpack.c.b16 %v432, %v427
        %v463 = vpack.c.b16 %v433, %v428
        %v464 = vpack.c.b16 %v434, %v429
        %v465 = vpack.c.b16 %v435, %v430
        %v466 = vpack.c.b16 %v441, %v436
        %v467 = vpack.c.b16 %v442, %v437
        %v468 = vpack.c.b16 %v443, %v438
        %v469 = vpack.c.b16 %v444, %v439
        %v470 = vpack.c.b16 %v445, %v440
        %v471 = vpack.c.b16 %v451, %v446
        %v472 = vpack.c.b16 %v452, %v447
        %v473 = vpack.c.b16 %v453, %v448
        %v474 = vpack.c.b16 %v454, %v449
        %v475 = vpack.c.b16 %v455, %v450
        %vm496 = vcmask 523264
        %v498 = vsel %vm496, %v374, 0
        %v501 = vsel %vm496, %v375, 0
        %v504 = vsel %vm496, %v376, 0
        %v507 = vsel %vm496, %v377, 0
        %v510 = vsel %vm496, %v378, 0
        %v513 = vsel %vm496, %v379, 0
        %v516 = vsel %vm496, %v380, 0
        %v519 = vsel %vm496, %v381, 0
        %v522 = vsel %vm496, %v382, 0
        %v525 = vsel %vm496, %v383, 0
        %v528 = vsel %vm496, %v384, 0
        %v531 = vsel %vm496, %v385, 0
        %v534 = vsel %vm496, %v386, 0
        %v537 = vsel %vm496, %v387, 0
        %v540 = vsel %vm496, %v388, 0
        %v543 = vsel %vm496, %v389, 0
        %v546 = vsel %vm496, %v390, 0
        %v549 = vsel %vm496, %v391, 0
        %551 = vmatprep.subr.bf16.mxu0 0
        %552 = vmatpush1.bf16.msra.mxu0 0
        %553 = vmatprep.subr.bf16.mxu0 0
        %554 = vmatpush1.bf16.msra.mxu0 0
        %555 = vmatprep.subr.bf16.mxu0 0
        %556 = vmatpush1.bf16.msra.mxu0 0
        %557 = vmatprep.subr.bf16.mxu0 0
        %558 = vmatpush1.bf16.msra.mxu0 0
        %559 = vmatprep.subr.bf16.mxu0 %v472
        %560 = vmatpush1.bf16.msra.mxu0 %v471
        %561 = vmatprep.subr.bf16.mxu0 %v467
        %562 = vmatpush1.bf16.msra.mxu0 %v466
        %563 = vmatprep.subr.bf16.mxu0 %v462
        %564 = vmatpush1.bf16.msra.mxu0 %v461
        %565 = vmatprep.subr.bf16.mxu0 %v457
        %566 = vmatpush1.bf16.msra.mxu0 %v456
        %567 = vmatprep.subr.bf16.mxu0 0
        %568 = vmatpush2.bf16.msra.mxu0 0
        %569 = vmatprep.subr.bf16.mxu0 0
        %570 = vmatpush2.bf16.msra.mxu0 0
        %571 = vmatprep.subr.bf16.mxu0 0
        %572 = vmatpush2.bf16.msra.mxu0 0
        %573 = vmatprep.subr.bf16.mxu0 0
        %574 = vmatpush2.bf16.msra.mxu0 0
        %575 = vmatprep.subr.bf16.mxu0 0
        %576 = vmatpush2.bf16.msra.mxu0 0
        %577 = vmatprep.subr.bf16.mxu0 0
        %578 = vmatpush2.bf16.msra.mxu0 0
        %579 = vmatprep.subr.bf16.mxu0 0
        %580 = vmatpush2.bf16.msra.mxu0 0
        %581 = vmatprep.subr.bf16.mxu0 0
        %582 = vmatpush2.bf16.msra.mxu0 0
        %583 = vmatprep.mubr.bf16.mxu0 0
        %584 = vmatmul.mubr.bf16.gmra.mxu0 %v498
        %v585 = vpop.f32.mrf.mxu0
        %v586 = vadd.f32 %v280, %v585
        %v587 = vpop.f32.mrf.mxu0
        %v588 = vadd.f32 %v284, %v587
        %v589 = vpop.f32.mrf.mxu0
        %v590 = vadd.f32 %v280, %v589
        %v591 = vpop.f32.mrf.mxu0
        %v592 = vadd.f32 %v284, %v591
        %593 = vmatprep.mubr.bf16.mxu0 0
        %594 = vmatmul.mubr.bf16.gmra.mxu0 %v501
        %v595 = vpop.f32.mrf.mxu0
        %v596 = vadd.f32 %v280, %v595
        %v597 = vpop.f32.mrf.mxu0
        %v598 = vadd.f32 %v284, %v597
        %v599 = vpop.f32.mrf.mxu0
        %v600 = vadd.f32 %v280, %v599
        %v601 = vpop.f32.mrf.mxu0
        %v602 = vadd.f32 %v284, %v601
        %603 = vmatprep.mubr.bf16.mxu0 0
        %604 = vmatmul.mubr.bf16.gmra.mxu0 %v504
        %v605 = vpop.f32.mrf.mxu0
        %v606 = vadd.f32 %v280, %v605
        %v607 = vpop.f32.mrf.mxu0
        %v608 = vadd.f32 %v284, %v607
        %v609 = vpop.f32.mrf.mxu0
        %v610 = vadd.f32 %v280, %v609
        %v611 = vpop.f32.mrf.mxu0
        %v612 = vadd.f32 %v284, %v611
        %613 = vmatprep.mubr.bf16.mxu0 0
        %614 = vmatmul.mubr.bf16.gmra.mxu0 %v507
        %v615 = vpop.f32.mrf.mxu0
        %v616 = vadd.f32 %v280, %v615
        %v617 = vpop.f32.mrf.mxu0
        %v618 = vadd.f32 %v284, %v617
        %v619 = vpop.f32.mrf.mxu0
        %v620 = vadd.f32 %v280, %v619
        %v621 = vpop.f32.mrf.mxu0
        %v622 = vadd.f32 %v284, %v621
        %623 = vmatprep.mubr.bf16.mxu0 0
        %624 = vmatmul.mubr.bf16.gmra.mxu0 %v510
        %v625 = vpop.f32.mrf.mxu0
        %v626 = vadd.f32 %v280, %v625
        %v627 = vpop.f32.mrf.mxu0
        %v628 = vadd.f32 %v284, %v627
        %v629 = vpop.f32.mrf.mxu0
        %v630 = vadd.f32 %v280, %v629
        %v631 = vpop.f32.mrf.mxu0
        %v632 = vadd.f32 %v284, %v631
        %633 = vmatprep.mubr.bf16.mxu0 0
        %634 = vmatmul.mubr.bf16.gmra.mxu0 %v513
        %v635 = vpop.f32.mrf.mxu0
        %v636 = vadd.f32 %v280, %v635
        %v637 = vpop.f32.mrf.mxu0
        %v638 = vadd.f32 %v284, %v637
        %v639 = vpop.f32.mrf.mxu0
        %v640 = vadd.f32 %v280, %v639
        %v641 = vpop.f32.mrf.mxu0
        %v642 = vadd.f32 %v284, %v641
        %643 = vmatprep.mubr.bf16.mxu0 0
        %644 = vmatmul.mubr.bf16.gmra.mxu0 %v516
        %v645 = vpop.f32.mrf.mxu0
        %v646 = vadd.f32 %v280, %v645
        %v647 = vpop.f32.mrf.mxu0
        %v648 = vadd.f32 %v284, %v647
        %v649 = vpop.f32.mrf.mxu0
        %v650 = vadd.f32 %v280, %v649
        %v651 = vpop.f32.mrf.mxu0
        %v652 = vadd.f32 %v284, %v651
        %653 = vmatprep.mubr.bf16.mxu0 0
        %654 = vmatmul.mubr.bf16.gmra.mxu0 %v519
        %v655 = vpop.f32.mrf.mxu0
        %v656 = vadd.f32 %v280, %v655
        %v657 = vpop.f32.mrf.mxu0
        %v658 = vadd.f32 %v284, %v657
        %v659 = vpop.f32.mrf.mxu0
        %v660 = vadd.f32 %v280, %v659
        %v661 = vpop.f32.mrf.mxu0
        %v662 = vadd.f32 %v284, %v661
        %663 = vmatprep.mubr.bf16.mxu0 0
        %664 = vmatmul.mubr.bf16.gmra.mxu0 %v522
        %v665 = vpop.f32.mrf.mxu0
        %v666 = vadd.f32 %v280, %v665
        %v667 = vpop.f32.mrf.mxu0
        %v668 = vadd.f32 %v284, %v667
        %v669 = vpop.f32.mrf.mxu0
        %v670 = vadd.f32 %v280, %v669
        %v671 = vpop.f32.mrf.mxu0
        %v672 = vadd.f32 %v284, %v671
        %673 = vmatprep.mubr.bf16.mxu0 0
        %674 = vmatmul.mubr.bf16.gmra.mxu0 %v525
        %v675 = vpop.f32.mrf.mxu0
        %v676 = vadd.f32 %v280, %v675
        %v677 = vpop.f32.mrf.mxu0
        %v678 = vadd.f32 %v284, %v677
        %v679 = vpop.f32.mrf.mxu0
        %v680 = vadd.f32 %v280, %v679
        %v681 = vpop.f32.mrf.mxu0
        %v682 = vadd.f32 %v284, %v681
        %683 = vmatprep.mubr.bf16.mxu0 0
        %684 = vmatmul.mubr.bf16.gmra.mxu0 %v528
        %v685 = vpop.f32.mrf.mxu0
        %v686 = vadd.f32 %v280, %v685
        %v687 = vpop.f32.mrf.mxu0
        %v688 = vadd.f32 %v284, %v687
        %v689 = vpop.f32.mrf.mxu0
        %v690 = vadd.f32 %v280, %v689
        %v691 = vpop.f32.mrf.mxu0
        %v692 = vadd.f32 %v284, %v691
        %693 = vmatprep.mubr.bf16.mxu0 0
        %694 = vmatmul.mubr.bf16.gmra.mxu0 %v531
        %v695 = vpop.f32.mrf.mxu0
        %v696 = vadd.f32 %v280, %v695
        %v697 = vpop.f32.mrf.mxu0
        %v698 = vadd.f32 %v284, %v697
        %v699 = vpop.f32.mrf.mxu0
        %v700 = vadd.f32 %v280, %v699
        %v701 = vpop.f32.mrf.mxu0
        %v702 = vadd.f32 %v284, %v701
        %703 = vmatprep.mubr.bf16.mxu0 0
        %704 = vmatmul.mubr.bf16.gmra.mxu0 %v534
        %v705 = vpop.f32.mrf.mxu0
        %v706 = vadd.f32 %v280, %v705
        %v707 = vpop.f32.mrf.mxu0
        %v708 = vadd.f32 %v284, %v707
        %v709 = vpop.f32.mrf.mxu0
        %v710 = vadd.f32 %v280, %v709
        %v711 = vpop.f32.mrf.mxu0
        %v712 = vadd.f32 %v284, %v711
        %713 = vmatprep.mubr.bf16.mxu0 0
        %714 = vmatmul.mubr.bf16.gmra.mxu0 %v537
        %v715 = vpop.f32.mrf.mxu0
        %v716 = vadd.f32 %v280, %v715
        %v717 = vpop.f32.mrf.mxu0
        %v718 = vadd.f32 %v284, %v717
        %v719 = vpop.f32.mrf.mxu0
        %v720 = vadd.f32 %v280, %v719
        %v721 = vpop.f32.mrf.mxu0
        %v722 = vadd.f32 %v284, %v721
        %723 = vmatprep.mubr.bf16.mxu0 0
        %724 = vmatmul.mubr.bf16.gmra.mxu0 %v540
        %v725 = vpop.f32.mrf.mxu0
        %v726 = vadd.f32 %v280, %v725
        %v727 = vpop.f32.mrf.mxu0
        %v728 = vadd.f32 %v284, %v727
        %v729 = vpop.f32.mrf.mxu0
        %v730 = vadd.f32 %v280, %v729
        %v731 = vpop.f32.mrf.mxu0
        %v732 = vadd.f32 %v284, %v731
        %733 = vmatprep.mubr.bf16.mxu0 0
        %734 = vmatmul.mubr.bf16.gmra.mxu0 %v543
        %v735 = vpop.f32.mrf.mxu0
        %v736 = vadd.f32 %v280, %v735
        %v737 = vpop.f32.mrf.mxu0
        %v738 = vadd.f32 %v284, %v737
        %v739 = vpop.f32.mrf.mxu0
        %v740 = vadd.f32 %v280, %v739
        %v741 = vpop.f32.mrf.mxu0
        %v742 = vadd.f32 %v284, %v741
        %743 = vmatprep.mubr.bf16.mxu0 0
        %744 = vmatmul.mubr.bf16.gmra.mxu0 %v546
        %v745 = vpop.f32.mrf.mxu0
        %v746 = vadd.f32 %v280, %v745
        %v747 = vpop.f32.mrf.mxu0
        %v748 = vadd.f32 %v284, %v747
        %v749 = vpop.f32.mrf.mxu0
        %v750 = vadd.f32 %v280, %v749
        %v751 = vpop.f32.mrf.mxu0
        %v752 = vadd.f32 %v284, %v751
        %753 = vmatprep.mubr.bf16.mxu0 0
        %754 = vmatmul.mubr.bf16.gmra.mxu0 %v549
        %v755 = vpop.f32.mrf.mxu0
        %v756 = vadd.f32 %v280, %v755
        %v757 = vpop.f32.mrf.mxu0
        %v758 = vadd.f32 %v284, %v757
        %v759 = vpop.f32.mrf.mxu0
        %v760 = vadd.f32 %v280, %v759
        %v761 = vpop.f32.mrf.mxu0
        %v762 = vadd.f32 %v284, %v761
        %763 = vdwg.mxu0
        %764 = vmatprep.subr.bf16.mxu0 0
        %765 = vmatpush1.bf16.msra.mxu0 0
        %766 = vmatprep.subr.bf16.mxu0 0
        %767 = vmatpush1.bf16.msra.mxu0 0
        %768 = vmatprep.subr.bf16.mxu0 0
        %769 = vmatpush1.bf16.msra.mxu0 0
        %770 = vmatprep.subr.bf16.mxu0 0
        %771 = vmatpush1.bf16.msra.mxu0 0
        %772 = vmatprep.subr.bf16.mxu0 %v474
        %773 = vmatpush1.bf16.msra.mxu0 %v473
        %774 = vmatprep.subr.bf16.mxu0 %v469
        %775 = vmatpush1.bf16.msra.mxu0 %v468
        %776 = vmatprep.subr.bf16.mxu0 %v464
        %777 = vmatpush1.bf16.msra.mxu0 %v463
        %778 = vmatprep.subr.bf16.mxu0 %v459
        %779 = vmatpush1.bf16.msra.mxu0 %v458
        %780 = vmatprep.subr.bf16.mxu0 0
        %781 = vmatpush2.bf16.msra.mxu0 0
        %782 = vmatprep.subr.bf16.mxu0 0
        %783 = vmatpush2.bf16.msra.mxu0 0
        %784 = vmatprep.subr.bf16.mxu0 0
        %785 = vmatpush2.bf16.msra.mxu0 0
        %786 = vmatprep.subr.bf16.mxu0 0
        %787 = vmatpush2.bf16.msra.mxu0 0
        %788 = vmatprep.subr.bf16.mxu0 0
        %789 = vmatpush2.bf16.msra.mxu0 0
        %790 = vmatprep.subr.bf16.mxu0 0
        %791 = vmatpush2.bf16.msra.mxu0 0
        %792 = vmatprep.subr.bf16.mxu0 0
        %793 = vmatpush2.bf16.msra.mxu0 0
        %794 = vmatprep.subr.bf16.mxu0 0
        %795 = vmatpush2.bf16.msra.mxu0 0
        %796 = vmatprep.mubr.bf16.mxu0 0
        %797 = vmatmul.mubr.bf16.gmra.mxu0 %v498
        %v798 = vpop.f32.mrf.mxu0
        %v799 = vadd.f32 %v288, %v798
        %v800 = vpop.f32.mrf.mxu0
        %v801 = vadd.f32 %v292, %v800
        %v802 = vpop.f32.mrf.mxu0
        %v803 = vadd.f32 %v288, %v802
        %v804 = vpop.f32.mrf.mxu0
        %v805 = vadd.f32 %v292, %v804
        %806 = vmatprep.mubr.bf16.mxu0 0
        %807 = vmatmul.mubr.bf16.gmra.mxu0 %v501
        %v808 = vpop.f32.mrf.mxu0
        %v809 = vadd.f32 %v288, %v808
        %v810 = vpop.f32.mrf.mxu0
        %v811 = vadd.f32 %v292, %v810
        %v812 = vpop.f32.mrf.mxu0
        %v813 = vadd.f32 %v288, %v812
        %v814 = vpop.f32.mrf.mxu0
        %v815 = vadd.f32 %v292, %v814
        %816 = vmatprep.mubr.bf16.mxu0 0
        %817 = vmatmul.mubr.bf16.gmra.mxu0 %v504
        %v818 = vpop.f32.mrf.mxu0
        %v819 = vadd.f32 %v288, %v818
        %v820 = vpop.f32.mrf.mxu0
        %v821 = vadd.f32 %v292, %v820
        %v822 = vpop.f32.mrf.mxu0
        %v823 = vadd.f32 %v288, %v822
        %v824 = vpop.f32.mrf.mxu0
        %v825 = vadd.f32 %v292, %v824
        %826 = vmatprep.mubr.bf16.mxu0 0
        %827 = vmatmul.mubr.bf16.gmra.mxu0 %v507
        %v828 = vpop.f32.mrf.mxu0
        %v829 = vadd.f32 %v288, %v828
        %v830 = vpop.f32.mrf.mxu0
        %v831 = vadd.f32 %v292, %v830
        %v832 = vpop.f32.mrf.mxu0
        %v833 = vadd.f32 %v288, %v832
        %v834 = vpop.f32.mrf.mxu0
        %v835 = vadd.f32 %v292, %v834
        %836 = vmatprep.mubr.bf16.mxu0 0
        %837 = vmatmul.mubr.bf16.gmra.mxu0 %v510
        %v838 = vpop.f32.mrf.mxu0
        %v839 = vadd.f32 %v288, %v838
        %v840 = vpop.f32.mrf.mxu0
        %v841 = vadd.f32 %v292, %v840
        %v842 = vpop.f32.mrf.mxu0
        %v843 = vadd.f32 %v288, %v842
        %v844 = vpop.f32.mrf.mxu0
        %v845 = vadd.f32 %v292, %v844
        %846 = vmatprep.mubr.bf16.mxu0 0
        %847 = vmatmul.mubr.bf16.gmra.mxu0 %v513
        %v848 = vpop.f32.mrf.mxu0
        %v849 = vadd.f32 %v288, %v848
        %v850 = vpop.f32.mrf.mxu0
        %v851 = vadd.f32 %v292, %v850
        %v852 = vpop.f32.mrf.mxu0
        %v853 = vadd.f32 %v288, %v852
        %v854 = vpop.f32.mrf.mxu0
        %v855 = vadd.f32 %v292, %v854
        %856 = vmatprep.mubr.bf16.mxu0 0
        %857 = vmatmul.mubr.bf16.gmra.mxu0 %v516
        %v858 = vpop.f32.mrf.mxu0
        %v859 = vadd.f32 %v288, %v858
        %v860 = vpop.f32.mrf.mxu0
        %v861 = vadd.f32 %v292, %v860
        %v862 = vpop.f32.mrf.mxu0
        %v863 = vadd.f32 %v288, %v862
        %v864 = vpop.f32.mrf.mxu0
        %v865 = vadd.f32 %v292, %v864
        %866 = vmatprep.mubr.bf16.mxu0 0
        %867 = vmatmul.mubr.bf16.gmra.mxu0 %v519
        %v868 = vpop.f32.mrf.mxu0
        %v869 = vadd.f32 %v288, %v868
        %v870 = vpop.f32.mrf.mxu0
        %v871 = vadd.f32 %v292, %v870
        %v872 = vpop.f32.mrf.mxu0
        %v873 = vadd.f32 %v288, %v872
        %v874 = vpop.f32.mrf.mxu0
        %v875 = vadd.f32 %v292, %v874
        %876 = vmatprep.mubr.bf16.mxu0 0
        %877 = vmatmul.mubr.bf16.gmra.mxu0 %v522
        %v878 = vpop.f32.mrf.mxu0
        %v879 = vadd.f32 %v288, %v878
        %v880 = vpop.f32.mrf.mxu0
        %v881 = vadd.f32 %v292, %v880
        %v882 = vpop.f32.mrf.mxu0
        %v883 = vadd.f32 %v288, %v882
        %v884 = vpop.f32.mrf.mxu0
        %v885 = vadd.f32 %v292, %v884
        %886 = vmatprep.mubr.bf16.mxu0 0
        %887 = vmatmul.mubr.bf16.gmra.mxu0 %v525
        %v888 = vpop.f32.mrf.mxu0
        %v889 = vadd.f32 %v288, %v888
        %v890 = vpop.f32.mrf.mxu0
        %v891 = vadd.f32 %v292, %v890
        %v892 = vpop.f32.mrf.mxu0
        %v893 = vadd.f32 %v288, %v892
        %v894 = vpop.f32.mrf.mxu0
        %v895 = vadd.f32 %v292, %v894
        %896 = vmatprep.mubr.bf16.mxu0 0
        %897 = vmatmul.mubr.bf16.gmra.mxu0 %v528
        %v898 = vpop.f32.mrf.mxu0
        %v899 = vadd.f32 %v288, %v898
        %v900 = vpop.f32.mrf.mxu0
        %v901 = vadd.f32 %v292, %v900
        %v902 = vpop.f32.mrf.mxu0
        %v903 = vadd.f32 %v288, %v902
        %v904 = vpop.f32.mrf.mxu0
        %v905 = vadd.f32 %v292, %v904
        %906 = vmatprep.mubr.bf16.mxu0 0
        %907 = vmatmul.mubr.bf16.gmra.mxu0 %v531
        %v908 = vpop.f32.mrf.mxu0
        %v909 = vadd.f32 %v288, %v908
        %v910 = vpop.f32.mrf.mxu0
        %v911 = vadd.f32 %v292, %v910
        %v912 = vpop.f32.mrf.mxu0
        %v913 = vadd.f32 %v288, %v912
        %v914 = vpop.f32.mrf.mxu0
        %v915 = vadd.f32 %v292, %v914
        %916 = vmatprep.mubr.bf16.mxu0 0
        %917 = vmatmul.mubr.bf16.gmra.mxu0 %v534
        %v918 = vpop.f32.mrf.mxu0
        %v919 = vadd.f32 %v288, %v918
        %v920 = vpop.f32.mrf.mxu0
        %v921 = vadd.f32 %v292, %v920
        %v922 = vpop.f32.mrf.mxu0
        %v923 = vadd.f32 %v288, %v922
        %v924 = vpop.f32.mrf.mxu0
        %v925 = vadd.f32 %v292, %v924
        %926 = vmatprep.mubr.bf16.mxu0 0
        %927 = vmatmul.mubr.bf16.gmra.mxu0 %v537
        %v928 = vpop.f32.mrf.mxu0
        %v929 = vadd.f32 %v288, %v928
        %v930 = vpop.f32.mrf.mxu0
        %v931 = vadd.f32 %v292, %v930
        %v932 = vpop.f32.mrf.mxu0
        %v933 = vadd.f32 %v288, %v932
        %v934 = vpop.f32.mrf.mxu0
        %v935 = vadd.f32 %v292, %v934
        %936 = vmatprep.mubr.bf16.mxu0 0
        %937 = vmatmul.mubr.bf16.gmra.mxu0 %v540
        %v938 = vpop.f32.mrf.mxu0
        %v939 = vadd.f32 %v288, %v938
        %v940 = vpop.f32.mrf.mxu0
        %v941 = vadd.f32 %v292, %v940
        %v942 = vpop.f32.mrf.mxu0
        %v943 = vadd.f32 %v288, %v942
        %v944 = vpop.f32.mrf.mxu0
        %v945 = vadd.f32 %v292, %v944
        %946 = vmatprep.mubr.bf16.mxu0 0
        %947 = vmatmul.mubr.bf16.gmra.mxu0 %v543
        %v948 = vpop.f32.mrf.mxu0
        %v949 = vadd.f32 %v288, %v948
        %v950 = vpop.f32.mrf.mxu0
        %v951 = vadd.f32 %v292, %v950
        %v952 = vpop.f32.mrf.mxu0
        %v953 = vadd.f32 %v288, %v952
        %v954 = vpop.f32.mrf.mxu0
        %v955 = vadd.f32 %v292, %v954
        %956 = vmatprep.mubr.bf16.mxu0 0
        %957 = vmatmul.mubr.bf16.gmra.mxu0 %v546
        %v958 = vpop.f32.mrf.mxu0
        %v959 = vadd.f32 %v288, %v958
        %v960 = vpop.f32.mrf.mxu0
        %v961 = vadd.f32 %v292, %v960
        %v962 = vpop.f32.mrf.mxu0
        %v963 = vadd.f32 %v288, %v962
        %v964 = vpop.f32.mrf.mxu0
        %v965 = vadd.f32 %v292, %v964
        %966 = vmatprep.mubr.bf16.mxu0 0
        %967 = vmatmul.mubr.bf16.gmra.mxu0 %v549
        %v968 = vpop.f32.mrf.mxu0
        %v969 = vadd.f32 %v288, %v968
        %v970 = vpop.f32.mrf.mxu0
        %v971 = vadd.f32 %v292, %v970
        %v972 = vpop.f32.mrf.mxu0
        %v973 = vadd.f32 %v288, %v972
        %v974 = vpop.f32.mrf.mxu0
        %v975 = vadd.f32 %v292, %v974
        %976 = vdwg.mxu0
        %977 = vmatprep.subr.bf16.mxu0 0
        %978 = vmatpush1.bf16.msra.mxu0 0
        %979 = vmatprep.subr.bf16.mxu0 0
        %980 = vmatpush1.bf16.msra.mxu0 0
        %981 = vmatprep.subr.bf16.mxu0 0
        %982 = vmatpush1.bf16.msra.mxu0 0
        %983 = vmatprep.subr.bf16.mxu0 0
        %984 = vmatpush1.bf16.msra.mxu0 0
        %985 = vmatprep.subr.bf16.mxu0 0
        %986 = vmatpush1.bf16.msra.mxu0 %v475
        %987 = vmatprep.subr.bf16.mxu0 0
        %988 = vmatpush1.bf16.msra.mxu0 %v470
        %989 = vmatprep.subr.bf16.mxu0 0
        %990 = vmatpush1.bf16.msra.mxu0 %v465
        %991 = vmatprep.subr.bf16.mxu0 0
        %992 = vmatpush1.bf16.msra.mxu0 %v460
        %993 = vmatprep.subr.bf16.mxu0 0
        %994 = vmatpush2.bf16.msra.mxu0 0
        %995 = vmatprep.subr.bf16.mxu0 0
        %996 = vmatpush2.bf16.msra.mxu0 0
        %997 = vmatprep.subr.bf16.mxu0 0
        %998 = vmatpush2.bf16.msra.mxu0 0
        %999 = vmatprep.subr.bf16.mxu0 0
        %1000 = vmatpush2.bf16.msra.mxu0 0
        %1001 = vmatprep.subr.bf16.mxu0 0
        %1002 = vmatpush2.bf16.msra.mxu0 0
        %1003 = vmatprep.subr.bf16.mxu0 0
        %1004 = vmatpush2.bf16.msra.mxu0 0
        %1005 = vmatprep.subr.bf16.mxu0 0
        %1006 = vmatpush2.bf16.msra.mxu0 0
        %1007 = vmatprep.subr.bf16.mxu0 0
        %1008 = vmatpush2.bf16.msra.mxu0 0
        %1009 = vmatprep.mubr.bf16.mxu0 0
        %1010 = vmatmul.mubr.bf16.gmra.mxu0 %v498
        %v1011 = vpop.f32.mrf.mxu0
        %v1012 = vadd.f32 %v296, %v1011
        %v1013 = vpop.f32.mrf.mxu0
        %v1014 = vpop.f32.mrf.mxu0
        %v1015 = vadd.f32 %v296, %v1014
        %v1016 = vpop.f32.mrf.mxu0
        %1017 = vmatprep.mubr.bf16.mxu0 0
        %1018 = vmatmul.mubr.bf16.gmra.mxu0 %v501
        %v1019 = vpop.f32.mrf.mxu0
        %v1020 = vadd.f32 %v296, %v1019
        %v1021 = vpop.f32.mrf.mxu0
        %v1022 = vpop.f32.mrf.mxu0
        %v1023 = vadd.f32 %v296, %v1022
        %v1024 = vpop.f32.mrf.mxu0
        %1025 = vmatprep.mubr.bf16.mxu0 0
        %1026 = vmatmul.mubr.bf16.gmra.mxu0 %v504
        %v1027 = vpop.f32.mrf.mxu0
        %v1028 = vadd.f32 %v296, %v1027
        %v1029 = vpop.f32.mrf.mxu0
        %v1030 = vpop.f32.mrf.mxu0
        %v1031 = vadd.f32 %v296, %v1030
        %v1032 = vpop.f32.mrf.mxu0
        %1033 = vmatprep.mubr.bf16.mxu0 0
        %1034 = vmatmul.mubr.bf16.gmra.mxu0 %v507
        %v1035 = vpop.f32.mrf.mxu0
        %v1036 = vadd.f32 %v296, %v1035
        %v1037 = vpop.f32.mrf.mxu0
        %v1038 = vpop.f32.mrf.mxu0
        %v1039 = vadd.f32 %v296, %v1038
        %v1040 = vpop.f32.mrf.mxu0
        %1041 = vmatprep.mubr.bf16.mxu0 0
        %1042 = vmatmul.mubr.bf16.gmra.mxu0 %v510
        %v1043 = vpop.f32.mrf.mxu0
        %v1044 = vadd.f32 %v296, %v1043
        %v1045 = vpop.f32.mrf.mxu0
        %v1046 = vpop.f32.mrf.mxu0
        %v1047 = vadd.f32 %v296, %v1046
        %v1048 = vpop.f32.mrf.mxu0
        %1049 = vmatprep.mubr.bf16.mxu0 0
        %1050 = vmatmul.mubr.bf16.gmra.mxu0 %v513
        %v1051 = vpop.f32.mrf.mxu0
        %v1052 = vadd.f32 %v296, %v1051
        %v1053 = vpop.f32.mrf.mxu0
        %v1054 = vpop.f32.mrf.mxu0
        %v1055 = vadd.f32 %v296, %v1054
        %v1056 = vpop.f32.mrf.mxu0
        %1057 = vmatprep.mubr.bf16.mxu0 0
        %1058 = vmatmul.mubr.bf16.gmra.mxu0 %v516
        %v1059 = vpop.f32.mrf.mxu0
        %v1060 = vadd.f32 %v296, %v1059
        %v1061 = vpop.f32.mrf.mxu0
        %v1062 = vpop.f32.mrf.mxu0
        %v1063 = vadd.f32 %v296, %v1062
        %v1064 = vpop.f32.mrf.mxu0
        %1065 = vmatprep.mubr.bf16.mxu0 0
        %1066 = vmatmul.mubr.bf16.gmra.mxu0 %v519
        %v1067 = vpop.f32.mrf.mxu0
        %v1068 = vadd.f32 %v296, %v1067
        %v1069 = vpop.f32.mrf.mxu0
        %v1070 = vpop.f32.mrf.mxu0
        %v1071 = vadd.f32 %v296, %v1070
        %v1072 = vpop.f32.mrf.mxu0
        %1073 = vmatprep.mubr.bf16.mxu0 0
        %1074 = vmatmul.mubr.bf16.gmra.mxu0 %v522
        %v1075 = vpop.f32.mrf.mxu0
        %v1076 = vadd.f32 %v296, %v1075
        %v1077 = vpop.f32.mrf.mxu0
        %v1078 = vpop.f32.mrf.mxu0
        %v1079 = vadd.f32 %v296, %v1078
        %v1080 = vpop.f32.mrf.mxu0
        %1081 = vmatprep.mubr.bf16.mxu0 0
        %1082 = vmatmul.mubr.bf16.gmra.mxu0 %v525
        %v1083 = vpop.f32.mrf.mxu0
        %v1084 = vadd.f32 %v296, %v1083
        %v1085 = vpop.f32.mrf.mxu0
        %v1086 = vpop.f32.mrf.mxu0
        %v1087 = vadd.f32 %v296, %v1086
        %v1088 = vpop.f32.mrf.mxu0
        %1089 = vmatprep.mubr.bf16.mxu0 0
        %1090 = vmatmul.mubr.bf16.gmra.mxu0 %v528
        %v1091 = vpop.f32.mrf.mxu0
        %v1092 = vadd.f32 %v296, %v1091
        %v1093 = vpop.f32.mrf.mxu0
        %v1094 = vpop.f32.mrf.mxu0
        %v1095 = vadd.f32 %v296, %v1094
        %v1096 = vpop.f32.mrf.mxu0
        %1097 = vmatprep.mubr.bf16.mxu0 0
        %1098 = vmatmul.mubr.bf16.gmra.mxu0 %v531
        %v1099 = vpop.f32.mrf.mxu0
        %v1100 = vadd.f32 %v296, %v1099
        %v1101 = vpop.f32.mrf.mxu0
        %v1102 = vpop.f32.mrf.mxu0
        %v1103 = vadd.f32 %v296, %v1102
        %v1104 = vpop.f32.mrf.mxu0
        %1105 = vmatprep.mubr.bf16.mxu0 0
        %1106 = vmatmul.mubr.bf16.gmra.mxu0 %v534
        %v1107 = vpop.f32.mrf.mxu0
        %v1108 = vadd.f32 %v296, %v1107
        %v1109 = vpop.f32.mrf.mxu0
        %v1110 = vpop.f32.mrf.mxu0
        %v1111 = vadd.f32 %v296, %v1110
        %v1112 = vpop.f32.mrf.mxu0
        %1113 = vmatprep.mubr.bf16.mxu0 0
        %1114 = vmatmul.mubr.bf16.gmra.mxu0 %v537
        %v1115 = vpop.f32.mrf.mxu0
        %v1116 = vadd.f32 %v296, %v1115
        %v1117 = vpop.f32.mrf.mxu0
        %v1118 = vpop.f32.mrf.mxu0
        %v1119 = vadd.f32 %v296, %v1118
        %v1120 = vpop.f32.mrf.mxu0
        %1121 = vmatprep.mubr.bf16.mxu0 0
        %1122 = vmatmul.mubr.bf16.gmra.mxu0 %v540
        %v1123 = vpop.f32.mrf.mxu0
        %v1124 = vadd.f32 %v296, %v1123
        %v1125 = vpop.f32.mrf.mxu0
        %v1126 = vpop.f32.mrf.mxu0
        %v1127 = vadd.f32 %v296, %v1126
        %v1128 = vpop.f32.mrf.mxu0
        %1129 = vmatprep.mubr.bf16.mxu0 0
        %1130 = vmatmul.mubr.bf16.gmra.mxu0 %v543
        %v1131 = vpop.f32.mrf.mxu0
        %v1132 = vadd.f32 %v296, %v1131
        %v1133 = vpop.f32.mrf.mxu0
        %v1134 = vpop.f32.mrf.mxu0
        %v1135 = vadd.f32 %v296, %v1134
        %v1136 = vpop.f32.mrf.mxu0
        %1137 = vmatprep.mubr.bf16.mxu0 0
        %1138 = vmatmul.mubr.bf16.gmra.mxu0 %v546
        %v1139 = vpop.f32.mrf.mxu0
        %v1140 = vadd.f32 %v296, %v1139
        %v1141 = vpop.f32.mrf.mxu0
        %v1142 = vpop.f32.mrf.mxu0
        %v1143 = vadd.f32 %v296, %v1142
        %v1144 = vpop.f32.mrf.mxu0
        %1145 = vmatprep.mubr.bf16.mxu0 0
        %1146 = vmatmul.mubr.bf16.gmra.mxu0 %v549
        %v1147 = vpop.f32.mrf.mxu0
        %v1148 = vadd.f32 %v296, %v1147
        %v1149 = vpop.f32.mrf.mxu0
        %v1150 = vpop.f32.mrf.mxu0
        %v1151 = vadd.f32 %v296, %v1150
        %v1152 = vpop.f32.mrf.mxu0
        %1153 = vdwg.mxu0
        %1154 = vmax.xlane.f32.xlu0 %v586
        %v1155 = vpop.xlane.xlu0 %1154
        %1156 = vmax.xlane.f32.xlu0 %v590
        %v1157 = vpop.xlane.xlu0 %1156
        %1158 = vmax.xlane.f32.xlu0 %v596
        %v1159 = vpop.xlane.xlu0 %1158
        %1160 = vmax.xlane.f32.xlu0 %v600
        %v1161 = vpop.xlane.xlu0 %1160
        %1162 = vmax.xlane.f32.xlu0 %v606
        %v1163 = vpop.xlane.xlu0 %1162
        %1164 = vmax.xlane.f32.xlu0 %v610
        %v1165 = vpop.xlane.xlu0 %1164
        %1166 = vmax.xlane.f32.xlu0 %v616
        %v1167 = vpop.xlane.xlu0 %1166
        %1168 = vmax.xlane.f32.xlu0 %v620
        %v1169 = vpop.xlane.xlu0 %1168
        %1170 = vmax.xlane.f32.xlu0 %v626
        %v1171 = vpop.xlane.xlu0 %1170
        %1172 = vmax.xlane.f32.xlu0 %v630
        %v1173 = vpop.xlane.xlu0 %1172
        %1174 = vmax.xlane.f32.xlu0 %v636
        %v1175 = vpop.xlane.xlu0 %1174
        %1176 = vmax.xlane.f32.xlu0 %v640
        %v1177 = vpop.xlane.xlu0 %1176
        %1178 = vmax.xlane.f32.xlu0 %v646
        %v1179 = vpop.xlane.xlu0 %1178
        %1180 = vmax.xlane.f32.xlu0 %v650
        %v1181 = vpop.xlane.xlu0 %1180
        %1182 = vmax.xlane.f32.xlu0 %v656
        %v1183 = vpop.xlane.xlu0 %1182
        %1184 = vmax.xlane.f32.xlu0 %v660
        %v1185 = vpop.xlane.xlu0 %1184
        %1186 = vmax.xlane.f32.xlu0 %v666
        %v1187 = vpop.xlane.xlu0 %1186
        %1188 = vmax.xlane.f32.xlu0 %v670
        %v1189 = vpop.xlane.xlu0 %1188
        %1190 = vmax.xlane.f32.xlu0 %v676
        %v1191 = vpop.xlane.xlu0 %1190
        %1192 = vmax.xlane.f32.xlu0 %v680
        %v1193 = vpop.xlane.xlu0 %1192
        %1194 = vmax.xlane.f32.xlu0 %v686
        %v1195 = vpop.xlane.xlu0 %1194
        %1196 = vmax.xlane.f32.xlu0 %v690
        %v1197 = vpop.xlane.xlu0 %1196
        %1198 = vmax.xlane.f32.xlu0 %v696
        %v1199 = vpop.xlane.xlu0 %1198
        %1200 = vmax.xlane.f32.xlu0 %v700
        %v1201 = vpop.xlane.xlu0 %1200
        %1202 = vmax.xlane.f32.xlu0 %v706
        %v1203 = vpop.xlane.xlu0 %1202
        %1204 = vmax.xlane.f32.xlu0 %v710
        %v1205 = vpop.xlane.xlu0 %1204
        %1206 = vmax.xlane.f32.xlu0 %v716
        %v1207 = vpop.xlane.xlu0 %1206
        %1208 = vmax.xlane.f32.xlu0 %v720
        %v1209 = vpop.xlane.xlu0 %1208
        %1210 = vmax.xlane.f32.xlu0 %v726
        %v1211 = vpop.xlane.xlu0 %1210
        %1212 = vmax.xlane.f32.xlu0 %v730
        %v1213 = vpop.xlane.xlu0 %1212
        %1214 = vmax.xlane.f32.xlu0 %v736
        %v1215 = vpop.xlane.xlu0 %1214
        %1216 = vmax.xlane.f32.xlu0 %v740
        %v1217 = vpop.xlane.xlu0 %1216
        %1218 = vmax.xlane.f32.xlu0 %v746
        %v1219 = vpop.xlane.xlu0 %1218
        %1220 = vmax.xlane.f32.xlu0 %v750
        %v1221 = vpop.xlane.xlu0 %1220
        %1222 = vmax.xlane.f32.xlu0 %v756
        %v1223 = vpop.xlane.xlu0 %1222
        %1224 = vmax.xlane.f32.xlu0 %v760
        %v1225 = vpop.xlane.xlu0 %1224
        %v1226 = vsub.f32 %v586, %v1155
        %v1227 = vsub.f32 %v590, %v1157
        %v1228 = vsub.f32 %v596, %v1159
        %v1229 = vsub.f32 %v600, %v1161
        %v1230 = vsub.f32 %v606, %v1163
        %v1231 = vsub.f32 %v610, %v1165
        %v1232 = vsub.f32 %v616, %v1167
        %v1233 = vsub.f32 %v620, %v1169
        %v1234 = vsub.f32 %v626, %v1171
        %v1235 = vsub.f32 %v630, %v1173
        %v1236 = vsub.f32 %v636, %v1175
        %v1237 = vsub.f32 %v640, %v1177
        %v1238 = vsub.f32 %v646, %v1179
        %v1239 = vsub.f32 %v650, %v1181
        %v1240 = vsub.f32 %v656, %v1183
        %v1241 = vsub.f32 %v660, %v1185
        %v1242 = vsub.f32 %v666, %v1187
        %v1243 = vsub.f32 %v670, %v1189
        %v1244 = vsub.f32 %v676, %v1191
        %v1245 = vsub.f32 %v680, %v1193
        %v1246 = vsub.f32 %v686, %v1195
        %v1247 = vsub.f32 %v690, %v1197
        %v1248 = vsub.f32 %v696, %v1199
        %v1249 = vsub.f32 %v700, %v1201
        %v1250 = vsub.f32 %v706, %v1203
        %v1251 = vsub.f32 %v710, %v1205
        %v1252 = vsub.f32 %v716, %v1207
        %v1253 = vsub.f32 %v720, %v1209
        %v1254 = vsub.f32 %v726, %v1211
        %v1255 = vsub.f32 %v730, %v1213
        %v1256 = vsub.f32 %v736, %v1215
        %v1257 = vsub.f32 %v740, %v1217
        %v1258 = vsub.f32 %v746, %v1219
        %v1259 = vsub.f32 %v750, %v1221
        %v1260 = vsub.f32 %v756, %v1223
        %v1261 = vsub.f32 %v760, %v1225
        %v1262 = vmul.f32 %v1226, 1.442695
        %v1263 = vpow.pop %v1262
        %v1264 = vmul.f32 %v1227, 1.442695
        %v1265 = vpow.pop %v1264
        %v1266 = vmul.f32 %v1228, 1.442695
        %v1267 = vpow.pop %v1266
        %v1268 = vmul.f32 %v1229, 1.442695
        %v1269 = vpow.pop %v1268
        %v1270 = vmul.f32 %v1230, 1.442695
        %v1271 = vpow.pop %v1270
        %v1272 = vmul.f32 %v1231, 1.442695
        %v1273 = vpow.pop %v1272
        %v1274 = vmul.f32 %v1232, 1.442695
        %v1275 = vpow.pop %v1274
        %v1276 = vmul.f32 %v1233, 1.442695
        %v1277 = vpow.pop %v1276
        %v1278 = vmul.f32 %v1234, 1.442695
        %v1279 = vpow.pop %v1278
        %v1280 = vmul.f32 %v1235, 1.442695
        %v1281 = vpow.pop %v1280
        %v1282 = vmul.f32 %v1236, 1.442695
        %v1283 = vpow.pop %v1282
        %v1284 = vmul.f32 %v1237, 1.442695
        %v1285 = vpow.pop %v1284
        %v1286 = vmul.f32 %v1238, 1.442695
        %v1287 = vpow.pop %v1286
        %v1288 = vmul.f32 %v1239, 1.442695
        %v1289 = vpow.pop %v1288
        %v1290 = vmul.f32 %v1240, 1.442695
        %v1291 = vpow.pop %v1290
        %v1292 = vmul.f32 %v1241, 1.442695
        %v1293 = vpow.pop %v1292
        %v1294 = vmul.f32 %v1242, 1.442695
        %v1295 = vpow.pop %v1294
        %v1296 = vmul.f32 %v1243, 1.442695
        %v1297 = vpow.pop %v1296
        %v1298 = vmul.f32 %v1244, 1.442695
        %v1299 = vpow.pop %v1298
        %v1300 = vmul.f32 %v1245, 1.442695
        %v1301 = vpow.pop %v1300
        %v1302 = vmul.f32 %v1246, 1.442695
        %v1303 = vpow.pop %v1302
        %v1304 = vmul.f32 %v1247, 1.442695
        %v1305 = vpow.pop %v1304
        %v1306 = vmul.f32 %v1248, 1.442695
        %v1307 = vpow.pop %v1306
        %v1308 = vmul.f32 %v1249, 1.442695
        %v1309 = vpow.pop %v1308
        %v1310 = vmul.f32 %v1250, 1.442695
        %v1311 = vpow.pop %v1310
        %v1312 = vmul.f32 %v1251, 1.442695
        %v1313 = vpow.pop %v1312
        %v1314 = vmul.f32 %v1252, 1.442695
        %v1315 = vpow.pop %v1314
        %v1316 = vmul.f32 %v1253, 1.442695
        %v1317 = vpow.pop %v1316
        %v1318 = vmul.f32 %v1254, 1.442695
        %v1319 = vpow.pop %v1318
        %v1320 = vmul.f32 %v1255, 1.442695
        %v1321 = vpow.pop %v1320
        %v1322 = vmul.f32 %v1256, 1.442695
        %v1323 = vpow.pop %v1322
        %v1324 = vmul.f32 %v1257, 1.442695
        %v1325 = vpow.pop %v1324
        %v1326 = vmul.f32 %v1258, 1.442695
        %v1327 = vpow.pop %v1326
        %v1328 = vmul.f32 %v1259, 1.442695
        %v1329 = vpow.pop %v1328
        %v1330 = vmul.f32 %v1260, 1.442695
        %v1331 = vpow.pop %v1330
        %v1332 = vmul.f32 %v1261, 1.442695
        %v1333 = vpow.pop %v1332
        %1334 = vadd.xlane.f32.xlu0 %v1263
        %v1335 = vpop.xlane.xlu0 %1334
        %1336 = vadd.xlane.f32.xlu0 %v1265
        %v1337 = vpop.xlane.xlu0 %1336
        %1338 = vadd.xlane.f32.xlu0 %v1267
        %v1339 = vpop.xlane.xlu0 %1338
        %1340 = vadd.xlane.f32.xlu0 %v1269
        %v1341 = vpop.xlane.xlu0 %1340
        %1342 = vadd.xlane.f32.xlu0 %v1271
        %v1343 = vpop.xlane.xlu0 %1342
        %1344 = vadd.xlane.f32.xlu0 %v1273
        %v1345 = vpop.xlane.xlu0 %1344
        %1346 = vadd.xlane.f32.xlu0 %v1275
        %v1347 = vpop.xlane.xlu0 %1346
        %1348 = vadd.xlane.f32.xlu0 %v1277
        %v1349 = vpop.xlane.xlu0 %1348
        %1350 = vadd.xlane.f32.xlu0 %v1279
        %v1351 = vpop.xlane.xlu0 %1350
        %1352 = vadd.xlane.f32.xlu0 %v1281
        %v1353 = vpop.xlane.xlu0 %1352
        %1354 = vadd.xlane.f32.xlu0 %v1283
        %v1355 = vpop.xlane.xlu0 %1354
        %1356 = vadd.xlane.f32.xlu0 %v1285
        %v1357 = vpop.xlane.xlu0 %1356
        %1358 = vadd.xlane.f32.xlu0 %v1287
        %v1359 = vpop.xlane.xlu0 %1358
        %1360 = vadd.xlane.f32.xlu0 %v1289
        %v1361 = vpop.xlane.xlu0 %1360
        %1362 = vadd.xlane.f32.xlu0 %v1291
        %v1363 = vpop.xlane.xlu0 %1362
        %1364 = vadd.xlane.f32.xlu0 %v1293
        %v1365 = vpop.xlane.xlu0 %1364
        %1366 = vadd.xlane.f32.xlu0 %v1295
        %v1367 = vpop.xlane.xlu0 %1366
        %1368 = vadd.xlane.f32.xlu0 %v1297
        %v1369 = vpop.xlane.xlu0 %1368
        %1370 = vadd.xlane.f32.xlu0 %v1299
        %v1371 = vpop.xlane.xlu0 %1370
        %1372 = vadd.xlane.f32.xlu0 %v1301
        %v1373 = vpop.xlane.xlu0 %1372
        %1374 = vadd.xlane.f32.xlu0 %v1303
        %v1375 = vpop.xlane.xlu0 %1374
        %1376 = vadd.xlane.f32.xlu0 %v1305
        %v1377 = vpop.xlane.xlu0 %1376
        %1378 = vadd.xlane.f32.xlu0 %v1307
        %v1379 = vpop.xlane.xlu0 %1378
        %1380 = vadd.xlane.f32.xlu0 %v1309
        %v1381 = vpop.xlane.xlu0 %1380
        %1382 = vadd.xlane.f32.xlu0 %v1311
        %v1383 = vpop.xlane.xlu0 %1382
        %1384 = vadd.xlane.f32.xlu0 %v1313
        %v1385 = vpop.xlane.xlu0 %1384
        %1386 = vadd.xlane.f32.xlu0 %v1315
        %v1387 = vpop.xlane.xlu0 %1386
        %1388 = vadd.xlane.f32.xlu0 %v1317
        %v1389 = vpop.xlane.xlu0 %1388
        %1390 = vadd.xlane.f32.xlu0 %v1319
        %v1391 = vpop.xlane.xlu0 %1390
        %1392 = vadd.xlane.f32.xlu0 %v1321
        %v1393 = vpop.xlane.xlu0 %1392
        %1394 = vadd.xlane.f32.xlu0 %v1323
        %v1395 = vpop.xlane.xlu0 %1394
        %1396 = vadd.xlane.f32.xlu0 %v1325
        %v1397 = vpop.xlane.xlu0 %1396
        %1398 = vadd.xlane.f32.xlu0 %v1327
        %v1399 = vpop.xlane.xlu0 %1398
        %1400 = vadd.xlane.f32.xlu0 %v1329
        %v1401 = vpop.xlane.xlu0 %1400
        %1402 = vadd.xlane.f32.xlu0 %v1331
        %v1403 = vpop.xlane.xlu0 %1402
        %1404 = vadd.xlane.f32.xlu0 %v1333
        %v1405 = vpop.xlane.xlu0 %1404
        %v1406 = vrcp.pop %v1335
        %v1407 = vmul.f32 %v1263, %v1406
        %v1408 = vrcp.pop %v1337
        %v1409 = vmul.f32 %v1265, %v1408
        %v1410 = vrcp.pop %v1339
        %v1411 = vmul.f32 %v1267, %v1410
        %v1412 = vrcp.pop %v1341
        %v1413 = vmul.f32 %v1269, %v1412
        %v1414 = vrcp.pop %v1343
        %v1415 = vmul.f32 %v1271, %v1414
        %v1416 = vrcp.pop %v1345
        %v1417 = vmul.f32 %v1273, %v1416
        %v1418 = vrcp.pop %v1347
        %v1419 = vmul.f32 %v1275, %v1418
        %v1420 = vrcp.pop %v1349
        %v1421 = vmul.f32 %v1277, %v1420
        %v1422 = vrcp.pop %v1351
        %v1423 = vmul.f32 %v1279, %v1422
        %v1424 = vrcp.pop %v1353
        %v1425 = vmul.f32 %v1281, %v1424
        %v1426 = vrcp.pop %v1355
        %v1427 = vmul.f32 %v1283, %v1426
        %v1428 = vrcp.pop %v1357
        %v1429 = vmul.f32 %v1285, %v1428
        %v1430 = vrcp.pop %v1359
        %v1431 = vmul.f32 %v1287, %v1430
        %v1432 = vrcp.pop %v1361
        %v1433 = vmul.f32 %v1289, %v1432
        %v1434 = vrcp.pop %v1363
        %v1435 = vmul.f32 %v1291, %v1434
        %v1436 = vrcp.pop %v1365
        %v1437 = vmul.f32 %v1293, %v1436
        %v1438 = vrcp.pop %v1367
        %v1439 = vmul.f32 %v1295, %v1438
        %v1440 = vrcp.pop %v1369
        %v1441 = vmul.f32 %v1297, %v1440
        %v1442 = vrcp.pop %v1371
        %v1443 = vmul.f32 %v1299, %v1442
        %v1444 = vrcp.pop %v1373
        %v1445 = vmul.f32 %v1301, %v1444
        %v1446 = vrcp.pop %v1375
        %v1447 = vmul.f32 %v1303, %v1446
        %v1448 = vrcp.pop %v1377
        %v1449 = vmul.f32 %v1305, %v1448
        %v1450 = vrcp.pop %v1379
        %v1451 = vmul.f32 %v1307, %v1450
        %v1452 = vrcp.pop %v1381
        %v1453 = vmul.f32 %v1309, %v1452
        %v1454 = vrcp.pop %v1383
        %v1455 = vmul.f32 %v1311, %v1454
        %v1456 = vrcp.pop %v1385
        %v1457 = vmul.f32 %v1313, %v1456
        %v1458 = vrcp.pop %v1387
        %v1459 = vmul.f32 %v1315, %v1458
        %v1460 = vrcp.pop %v1389
        %v1461 = vmul.f32 %v1317, %v1460
        %v1462 = vrcp.pop %v1391
        %v1463 = vmul.f32 %v1319, %v1462
        %v1464 = vrcp.pop %v1393
        %v1465 = vmul.f32 %v1321, %v1464
        %v1466 = vrcp.pop %v1395
        %v1467 = vmul.f32 %v1323, %v1466
        %v1468 = vrcp.pop %v1397
        %v1469 = vmul.f32 %v1325, %v1468
        %v1470 = vrcp.pop %v1399
        %v1471 = vmul.f32 %v1327, %v1470
        %v1472 = vrcp.pop %v1401
        %v1473 = vmul.f32 %v1329, %v1472
        %v1474 = vrcp.pop %v1403
        %v1475 = vmul.f32 %v1331, %v1474
        %v1476 = vrcp.pop %v1405
        %v1477 = vmul.f32 %v1333, %v1476
        %1478 = vmax.xlane.f32.xlu0 %v799
        %v1479 = vpop.xlane.xlu0 %1478
        %1480 = vmax.xlane.f32.xlu0 %v803
        %v1481 = vpop.xlane.xlu0 %1480
        %1482 = vmax.xlane.f32.xlu0 %v809
        %v1483 = vpop.xlane.xlu0 %1482
        %1484 = vmax.xlane.f32.xlu0 %v813
        %v1485 = vpop.xlane.xlu0 %1484
        %1486 = vmax.xlane.f32.xlu0 %v819
        %v1487 = vpop.xlane.xlu0 %1486
        %1488 = vmax.xlane.f32.xlu0 %v823
        %v1489 = vpop.xlane.xlu0 %1488
        %1490 = vmax.xlane.f32.xlu0 %v829
        %v1491 = vpop.xlane.xlu0 %1490
        %1492 = vmax.xlane.f32.xlu0 %v833
        %v1493 = vpop.xlane.xlu0 %1492
        %1494 = vmax.xlane.f32.xlu0 %v839
        %v1495 = vpop.xlane.xlu0 %1494
        %1496 = vmax.xlane.f32.xlu0 %v843
        %v1497 = vpop.xlane.xlu0 %1496
        %1498 = vmax.xlane.f32.xlu0 %v849
        %v1499 = vpop.xlane.xlu0 %1498
        %1500 = vmax.xlane.f32.xlu0 %v853
        %v1501 = vpop.xlane.xlu0 %1500
        %1502 = vmax.xlane.f32.xlu0 %v859
        %v1503 = vpop.xlane.xlu0 %1502
        %1504 = vmax.xlane.f32.xlu0 %v863
        %v1505 = vpop.xlane.xlu0 %1504
        %1506 = vmax.xlane.f32.xlu0 %v869
        %v1507 = vpop.xlane.xlu0 %1506
        %1508 = vmax.xlane.f32.xlu0 %v873
        %v1509 = vpop.xlane.xlu0 %1508
        %1510 = vmax.xlane.f32.xlu0 %v879
        %v1511 = vpop.xlane.xlu0 %1510
        %1512 = vmax.xlane.f32.xlu0 %v883
        %v1513 = vpop.xlane.xlu0 %1512
        %1514 = vmax.xlane.f32.xlu0 %v889
        %v1515 = vpop.xlane.xlu0 %1514
        %1516 = vmax.xlane.f32.xlu0 %v893
        %v1517 = vpop.xlane.xlu0 %1516
        %1518 = vmax.xlane.f32.xlu0 %v899
        %v1519 = vpop.xlane.xlu0 %1518
        %1520 = vmax.xlane.f32.xlu0 %v903
        %v1521 = vpop.xlane.xlu0 %1520
        %1522 = vmax.xlane.f32.xlu0 %v909
        %v1523 = vpop.xlane.xlu0 %1522
        %1524 = vmax.xlane.f32.xlu0 %v913
        %v1525 = vpop.xlane.xlu0 %1524
        %1526 = vmax.xlane.f32.xlu0 %v919
        %v1527 = vpop.xlane.xlu0 %1526
        %1528 = vmax.xlane.f32.xlu0 %v923
        %v1529 = vpop.xlane.xlu0 %1528
        %1530 = vmax.xlane.f32.xlu0 %v929
        %v1531 = vpop.xlane.xlu0 %1530
        %1532 = vmax.xlane.f32.xlu0 %v933
        %v1533 = vpop.xlane.xlu0 %1532
        %1534 = vmax.xlane.f32.xlu0 %v939
        %v1535 = vpop.xlane.xlu0 %1534
        %1536 = vmax.xlane.f32.xlu0 %v943
        %v1537 = vpop.xlane.xlu0 %1536
        %1538 = vmax.xlane.f32.xlu0 %v949
        %v1539 = vpop.xlane.xlu0 %1538
        %1540 = vmax.xlane.f32.xlu0 %v953
        %v1541 = vpop.xlane.xlu0 %1540
        %1542 = vmax.xlane.f32.xlu0 %v959
        %v1543 = vpop.xlane.xlu0 %1542
        %1544 = vmax.xlane.f32.xlu0 %v963
        %v1545 = vpop.xlane.xlu0 %1544
        %1546 = vmax.xlane.f32.xlu0 %v969
        %v1547 = vpop.xlane.xlu0 %1546
        %1548 = vmax.xlane.f32.xlu0 %v973
        %v1549 = vpop.xlane.xlu0 %1548
        %v1550 = vsub.f32 %v799, %v1479
        %v1551 = vsub.f32 %v803, %v1481
        %v1552 = vsub.f32 %v809, %v1483
        %v1553 = vsub.f32 %v813, %v1485
        %v1554 = vsub.f32 %v819, %v1487
        %v1555 = vsub.f32 %v823, %v1489
        %v1556 = vsub.f32 %v829, %v1491
        %v1557 = vsub.f32 %v833, %v1493
        %v1558 = vsub.f32 %v839, %v1495
        %v1559 = vsub.f32 %v843, %v1497
        %v1560 = vsub.f32 %v849, %v1499
        %v1561 = vsub.f32 %v853, %v1501
        %v1562 = vsub.f32 %v859, %v1503
        %v1563 = vsub.f32 %v863, %v1505
        %v1564 = vsub.f32 %v869, %v1507
        %v1565 = vsub.f32 %v873, %v1509
        %v1566 = vsub.f32 %v879, %v1511
        %v1567 = vsub.f32 %v883, %v1513
        %v1568 = vsub.f32 %v889, %v1515
        %v1569 = vsub.f32 %v893, %v1517
        %v1570 = vsub.f32 %v899, %v1519
        %v1571 = vsub.f32 %v903, %v1521
        %v1572 = vsub.f32 %v909, %v1523
        %v1573 = vsub.f32 %v913, %v1525
        %v1574 = vsub.f32 %v919, %v1527
        %v1575 = vsub.f32 %v923, %v1529
        %v1576 = vsub.f32 %v929, %v1531
        %v1577 = vsub.f32 %v933, %v1533
        %v1578 = vsub.f32 %v939, %v1535
        %v1579 = vsub.f32 %v943, %v1537
        %v1580 = vsub.f32 %v949, %v1539
        %v1581 = vsub.f32 %v953, %v1541
        %v1582 = vsub.f32 %v959, %v1543
        %v1583 = vsub.f32 %v963, %v1545
        %v1584 = vsub.f32 %v969, %v1547
        %v1585 = vsub.f32 %v973, %v1549
        %v1586 = vmul.f32 %v1550, 1.442695
        %v1587 = vpow.pop %v1586
        %v1588 = vmul.f32 %v1551, 1.442695
        %v1589 = vpow.pop %v1588
        %v1590 = vmul.f32 %v1552, 1.442695
        %v1591 = vpow.pop %v1590
        %v1592 = vmul.f32 %v1553, 1.442695
        %v1593 = vpow.pop %v1592
        %v1594 = vmul.f32 %v1554, 1.442695
        %v1595 = vpow.pop %v1594
        %v1596 = vmul.f32 %v1555, 1.442695
        %v1597 = vpow.pop %v1596
        %v1598 = vmul.f32 %v1556, 1.442695
        %v1599 = vpow.pop %v1598
        %v1600 = vmul.f32 %v1557, 1.442695
        %v1601 = vpow.pop %v1600
        %v1602 = vmul.f32 %v1558, 1.442695
        %v1603 = vpow.pop %v1602
        %v1604 = vmul.f32 %v1559, 1.442695
        %v1605 = vpow.pop %v1604
        %v1606 = vmul.f32 %v1560, 1.442695
        %v1607 = vpow.pop %v1606
        %v1608 = vmul.f32 %v1561, 1.442695
        %v1609 = vpow.pop %v1608
        %v1610 = vmul.f32 %v1562, 1.442695
        %v1611 = vpow.pop %v1610
        %v1612 = vmul.f32 %v1563, 1.442695
        %v1613 = vpow.pop %v1612
        %v1614 = vmul.f32 %v1564, 1.442695
        %v1615 = vpow.pop %v1614
        %v1616 = vmul.f32 %v1565, 1.442695
        %v1617 = vpow.pop %v1616
        %v1618 = vmul.f32 %v1566, 1.442695
        %v1619 = vpow.pop %v1618
        %v1620 = vmul.f32 %v1567, 1.442695
        %v1621 = vpow.pop %v1620
        %v1622 = vmul.f32 %v1568, 1.442695
        %v1623 = vpow.pop %v1622
        %v1624 = vmul.f32 %v1569, 1.442695
        %v1625 = vpow.pop %v1624
        %v1626 = vmul.f32 %v1570, 1.442695
        %v1627 = vpow.pop %v1626
        %v1628 = vmul.f32 %v1571, 1.442695
        %v1629 = vpow.pop %v1628
        %v1630 = vmul.f32 %v1572, 1.442695
        %v1631 = vpow.pop %v1630
        %v1632 = vmul.f32 %v1573, 1.442695
        %v1633 = vpow.pop %v1632
        %v1634 = vmul.f32 %v1574, 1.442695
        %v1635 = vpow.pop %v1634
        %v1636 = vmul.f32 %v1575, 1.442695
        %v1637 = vpow.pop %v1636
        %v1638 = vmul.f32 %v1576, 1.442695
        %v1639 = vpow.pop %v1638
        %v1640 = vmul.f32 %v1577, 1.442695
        %v1641 = vpow.pop %v1640
        %v1642 = vmul.f32 %v1578, 1.442695
        %v1643 = vpow.pop %v1642
        %v1644 = vmul.f32 %v1579, 1.442695
        %v1645 = vpow.pop %v1644
        %v1646 = vmul.f32 %v1580, 1.442695
        %v1647 = vpow.pop %v1646
        %v1648 = vmul.f32 %v1581, 1.442695
        %v1649 = vpow.pop %v1648
        %v1650 = vmul.f32 %v1582, 1.442695
        %v1651 = vpow.pop %v1650
        %v1652 = vmul.f32 %v1583, 1.442695
        %v1653 = vpow.pop %v1652
        %v1654 = vmul.f32 %v1584, 1.442695
        %v1655 = vpow.pop %v1654
        %v1656 = vmul.f32 %v1585, 1.442695
        %v1657 = vpow.pop %v1656
        %1658 = vadd.xlane.f32.xlu0 %v1587
        %v1659 = vpop.xlane.xlu0 %1658
        %1660 = vadd.xlane.f32.xlu0 %v1589
        %v1661 = vpop.xlane.xlu0 %1660
        %1662 = vadd.xlane.f32.xlu0 %v1591
        %v1663 = vpop.xlane.xlu0 %1662
        %1664 = vadd.xlane.f32.xlu0 %v1593
        %v1665 = vpop.xlane.xlu0 %1664
        %1666 = vadd.xlane.f32.xlu0 %v1595
        %v1667 = vpop.xlane.xlu0 %1666
        %1668 = vadd.xlane.f32.xlu0 %v1597
        %v1669 = vpop.xlane.xlu0 %1668
        %1670 = vadd.xlane.f32.xlu0 %v1599
        %v1671 = vpop.xlane.xlu0 %1670
        %1672 = vadd.xlane.f32.xlu0 %v1601
        %v1673 = vpop.xlane.xlu0 %1672
        %1674 = vadd.xlane.f32.xlu0 %v1603
        %v1675 = vpop.xlane.xlu0 %1674
        %1676 = vadd.xlane.f32.xlu0 %v1605
        %v1677 = vpop.xlane.xlu0 %1676
        %1678 = vadd.xlane.f32.xlu0 %v1607
        %v1679 = vpop.xlane.xlu0 %1678
        %1680 = vadd.xlane.f32.xlu0 %v1609
        %v1681 = vpop.xlane.xlu0 %1680
        %1682 = vadd.xlane.f32.xlu0 %v1611
        %v1683 = vpop.xlane.xlu0 %1682
        %1684 = vadd.xlane.f32.xlu0 %v1613
        %v1685 = vpop.xlane.xlu0 %1684
        %1686 = vadd.xlane.f32.xlu0 %v1615
        %v1687 = vpop.xlane.xlu0 %1686
        %1688 = vadd.xlane.f32.xlu0 %v1617
        %v1689 = vpop.xlane.xlu0 %1688
        %1690 = vadd.xlane.f32.xlu0 %v1619
        %v1691 = vpop.xlane.xlu0 %1690
        %1692 = vadd.xlane.f32.xlu0 %v1621
        %v1693 = vpop.xlane.xlu0 %1692
        %1694 = vadd.xlane.f32.xlu0 %v1623
        %v1695 = vpop.xlane.xlu0 %1694
        %1696 = vadd.xlane.f32.xlu0 %v1625
        %v1697 = vpop.xlane.xlu0 %1696
        %1698 = vadd.xlane.f32.xlu0 %v1627
        %v1699 = vpop.xlane.xlu0 %1698
        %1700 = vadd.xlane.f32.xlu0 %v1629
        %v1701 = vpop.xlane.xlu0 %1700
        %1702 = vadd.xlane.f32.xlu0 %v1631
        %v1703 = vpop.xlane.xlu0 %1702
        %1704 = vadd.xlane.f32.xlu0 %v1633
        %v1705 = vpop.xlane.xlu0 %1704
        %1706 = vadd.xlane.f32.xlu0 %v1635
        %v1707 = vpop.xlane.xlu0 %1706
        %1708 = vadd.xlane.f32.xlu0 %v1637
        %v1709 = vpop.xlane.xlu0 %1708
        %1710 = vadd.xlane.f32.xlu0 %v1639
        %v1711 = vpop.xlane.xlu0 %1710
        %1712 = vadd.xlane.f32.xlu0 %v1641
        %v1713 = vpop.xlane.xlu0 %1712
        %1714 = vadd.xlane.f32.xlu0 %v1643
        %v1715 = vpop.xlane.xlu0 %1714
        %1716 = vadd.xlane.f32.xlu0 %v1645
        %v1717 = vpop.xlane.xlu0 %1716
        %1718 = vadd.xlane.f32.xlu0 %v1647
        %v1719 = vpop.xlane.xlu0 %1718
        %1720 = vadd.xlane.f32.xlu0 %v1649
        %v1721 = vpop.xlane.xlu0 %1720
        %1722 = vadd.xlane.f32.xlu0 %v1651
        %v1723 = vpop.xlane.xlu0 %1722
        %1724 = vadd.xlane.f32.xlu0 %v1653
        %v1725 = vpop.xlane.xlu0 %1724
        %1726 = vadd.xlane.f32.xlu0 %v1655
        %v1727 = vpop.xlane.xlu0 %1726
        %1728 = vadd.xlane.f32.xlu0 %v1657
        %v1729 = vpop.xlane.xlu0 %1728
        %v1730 = vrcp.pop %v1659
        %v1731 = vmul.f32 %v1587, %v1730
        %v1732 = vrcp.pop %v1661
        %v1733 = vmul.f32 %v1589, %v1732
        %v1734 = vrcp.pop %v1663
        %v1735 = vmul.f32 %v1591, %v1734
        %v1736 = vrcp.pop %v1665
        %v1737 = vmul.f32 %v1593, %v1736
        %v1738 = vrcp.pop %v1667
        %v1739 = vmul.f32 %v1595, %v1738
        %v1740 = vrcp.pop %v1669
        %v1741 = vmul.f32 %v1597, %v1740
        %v1742 = vrcp.pop %v1671
        %v1743 = vmul.f32 %v1599, %v1742
        %v1744 = vrcp.pop %v1673
        %v1745 = vmul.f32 %v1601, %v1744
        %v1746 = vrcp.pop %v1675
        %v1747 = vmul.f32 %v1603, %v1746
        %v1748 = vrcp.pop %v1677
        %v1749 = vmul.f32 %v1605, %v1748
        %v1750 = vrcp.pop %v1679
        %v1751 = vmul.f32 %v1607, %v1750
        %v1752 = vrcp.pop %v1681
        %v1753 = vmul.f32 %v1609, %v1752
        %v1754 = vrcp.pop %v1683
        %v1755 = vmul.f32 %v1611, %v1754
        %v1756 = vrcp.pop %v1685
        %v1757 = vmul.f32 %v1613, %v1756
        %v1758 = vrcp.pop %v1687
        %v1759 = vmul.f32 %v1615, %v1758
        %v1760 = vrcp.pop %v1689
        %v1761 = vmul.f32 %v1617, %v1760
        %v1762 = vrcp.pop %v1691
        %v1763 = vmul.f32 %v1619, %v1762
        %v1764 = vrcp.pop %v1693
        %v1765 = vmul.f32 %v1621, %v1764
        %v1766 = vrcp.pop %v1695
        %v1767 = vmul.f32 %v1623, %v1766
        %v1768 = vrcp.pop %v1697
        %v1769 = vmul.f32 %v1625, %v1768
        %v1770 = vrcp.pop %v1699
        %v1771 = vmul.f32 %v1627, %v1770
        %v1772 = vrcp.pop %v1701
        %v1773 = vmul.f32 %v1629, %v1772
        %v1774 = vrcp.pop %v1703
        %v1775 = vmul.f32 %v1631, %v1774
        %v1776 = vrcp.pop %v1705
        %v1777 = vmul.f32 %v1633, %v1776
        %v1778 = vrcp.pop %v1707
        %v1779 = vmul.f32 %v1635, %v1778
        %v1780 = vrcp.pop %v1709
        %v1781 = vmul.f32 %v1637, %v1780
        %v1782 = vrcp.pop %v1711
        %v1783 = vmul.f32 %v1639, %v1782
        %v1784 = vrcp.pop %v1713
        %v1785 = vmul.f32 %v1641, %v1784
        %v1786 = vrcp.pop %v1715
        %v1787 = vmul.f32 %v1643, %v1786
        %v1788 = vrcp.pop %v1717
        %v1789 = vmul.f32 %v1645, %v1788
        %v1790 = vrcp.pop %v1719
        %v1791 = vmul.f32 %v1647, %v1790
        %v1792 = vrcp.pop %v1721
        %v1793 = vmul.f32 %v1649, %v1792
        %v1794 = vrcp.pop %v1723
        %v1795 = vmul.f32 %v1651, %v1794
        %v1796 = vrcp.pop %v1725
        %v1797 = vmul.f32 %v1653, %v1796
        %v1798 = vrcp.pop %v1727
        %v1799 = vmul.f32 %v1655, %v1798
        %v1800 = vrcp.pop %v1729
        %v1801 = vmul.f32 %v1657, %v1800
        %1802 = vmax.xlane.f32.xlu0 %v801
        %v1803 = vpop.xlane.xlu0 %1802
        %1804 = vmax.xlane.f32.xlu0 %v805
        %v1805 = vpop.xlane.xlu0 %1804
        %1806 = vmax.xlane.f32.xlu0 %v811
        %v1807 = vpop.xlane.xlu0 %1806
        %1808 = vmax.xlane.f32.xlu0 %v815
        %v1809 = vpop.xlane.xlu0 %1808
        %1810 = vmax.xlane.f32.xlu0 %v821
        %v1811 = vpop.xlane.xlu0 %1810
        %1812 = vmax.xlane.f32.xlu0 %v825
        %v1813 = vpop.xlane.xlu0 %1812
        %1814 = vmax.xlane.f32.xlu0 %v831
        %v1815 = vpop.xlane.xlu0 %1814
        %1816 = vmax.xlane.f32.xlu0 %v835
        %v1817 = vpop.xlane.xlu0 %1816
        %1818 = vmax.xlane.f32.xlu0 %v841
        %v1819 = vpop.xlane.xlu0 %1818
        %1820 = vmax.xlane.f32.xlu0 %v845
        %v1821 = vpop.xlane.xlu0 %1820
        %1822 = vmax.xlane.f32.xlu0 %v851
        %v1823 = vpop.xlane.xlu0 %1822
        %1824 = vmax.xlane.f32.xlu0 %v855
        %v1825 = vpop.xlane.xlu0 %1824
        %1826 = vmax.xlane.f32.xlu0 %v861
        %v1827 = vpop.xlane.xlu0 %1826
        %1828 = vmax.xlane.f32.xlu0 %v865
        %v1829 = vpop.xlane.xlu0 %1828
        %1830 = vmax.xlane.f32.xlu0 %v871
        %v1831 = vpop.xlane.xlu0 %1830
        %1832 = vmax.xlane.f32.xlu0 %v875
        %v1833 = vpop.xlane.xlu0 %1832
        %1834 = vmax.xlane.f32.xlu0 %v881
        %v1835 = vpop.xlane.xlu0 %1834
        %1836 = vmax.xlane.f32.xlu0 %v885
        %v1837 = vpop.xlane.xlu0 %1836
        %1838 = vmax.xlane.f32.xlu0 %v891
        %v1839 = vpop.xlane.xlu0 %1838
        %1840 = vmax.xlane.f32.xlu0 %v895
        %v1841 = vpop.xlane.xlu0 %1840
        %1842 = vmax.xlane.f32.xlu0 %v901
        %v1843 = vpop.xlane.xlu0 %1842
        %1844 = vmax.xlane.f32.xlu0 %v905
        %v1845 = vpop.xlane.xlu0 %1844
        %1846 = vmax.xlane.f32.xlu0 %v911
        %v1847 = vpop.xlane.xlu0 %1846
        %1848 = vmax.xlane.f32.xlu0 %v915
        %v1849 = vpop.xlane.xlu0 %1848
        %1850 = vmax.xlane.f32.xlu0 %v921
        %v1851 = vpop.xlane.xlu0 %1850
        %1852 = vmax.xlane.f32.xlu0 %v925
        %v1853 = vpop.xlane.xlu0 %1852
        %1854 = vmax.xlane.f32.xlu0 %v931
        %v1855 = vpop.xlane.xlu0 %1854
        %1856 = vmax.xlane.f32.xlu0 %v935
        %v1857 = vpop.xlane.xlu0 %1856
        %1858 = vmax.xlane.f32.xlu0 %v941
        %v1859 = vpop.xlane.xlu0 %1858
        %1860 = vmax.xlane.f32.xlu0 %v945
        %v1861 = vpop.xlane.xlu0 %1860
        %1862 = vmax.xlane.f32.xlu0 %v951
        %v1863 = vpop.xlane.xlu0 %1862
        %1864 = vmax.xlane.f32.xlu0 %v955
        %v1865 = vpop.xlane.xlu0 %1864
        %1866 = vmax.xlane.f32.xlu0 %v961
        %v1867 = vpop.xlane.xlu0 %1866
        %1868 = vmax.xlane.f32.xlu0 %v965
        %v1869 = vpop.xlane.xlu0 %1868
        %1870 = vmax.xlane.f32.xlu0 %v971
        %v1871 = vpop.xlane.xlu0 %1870
        %1872 = vmax.xlane.f32.xlu0 %v975
        %v1873 = vpop.xlane.xlu0 %1872
        %v1874 = vsub.f32 %v801, %v1803
        %v1875 = vsub.f32 %v805, %v1805
        %v1876 = vsub.f32 %v811, %v1807
        %v1877 = vsub.f32 %v815, %v1809
        %v1878 = vsub.f32 %v821, %v1811
        %v1879 = vsub.f32 %v825, %v1813
        %v1880 = vsub.f32 %v831, %v1815
        %v1881 = vsub.f32 %v835, %v1817
        %v1882 = vsub.f32 %v841, %v1819
        %v1883 = vsub.f32 %v845, %v1821
        %v1884 = vsub.f32 %v851, %v1823
        %v1885 = vsub.f32 %v855, %v1825
        %v1886 = vsub.f32 %v861, %v1827
        %v1887 = vsub.f32 %v865, %v1829
        %v1888 = vsub.f32 %v871, %v1831
        %v1889 = vsub.f32 %v875, %v1833
        %v1890 = vsub.f32 %v881, %v1835
        %v1891 = vsub.f32 %v885, %v1837
        %v1892 = vsub.f32 %v891, %v1839
        %v1893 = vsub.f32 %v895, %v1841
        %v1894 = vsub.f32 %v901, %v1843
        %v1895 = vsub.f32 %v905, %v1845
        %v1896 = vsub.f32 %v911, %v1847
        %v1897 = vsub.f32 %v915, %v1849
        %v1898 = vsub.f32 %v921, %v1851
        %v1899 = vsub.f32 %v925, %v1853
        %v1900 = vsub.f32 %v931, %v1855
        %v1901 = vsub.f32 %v935, %v1857
        %v1902 = vsub.f32 %v941, %v1859
        %v1903 = vsub.f32 %v945, %v1861
        %v1904 = vsub.f32 %v951, %v1863
        %v1905 = vsub.f32 %v955, %v1865
        %v1906 = vsub.f32 %v961, %v1867
        %v1907 = vsub.f32 %v965, %v1869
        %v1908 = vsub.f32 %v971, %v1871
        %v1909 = vsub.f32 %v975, %v1873
        %v1910 = vmul.f32 %v1874, 1.442695
        %v1911 = vpow.pop %v1910
        %v1912 = vmul.f32 %v1875, 1.442695
        %v1913 = vpow.pop %v1912
        %v1914 = vmul.f32 %v1876, 1.442695
        %v1915 = vpow.pop %v1914
        %v1916 = vmul.f32 %v1877, 1.442695
        %v1917 = vpow.pop %v1916
        %v1918 = vmul.f32 %v1878, 1.442695
        %v1919 = vpow.pop %v1918
        %v1920 = vmul.f32 %v1879, 1.442695
        %v1921 = vpow.pop %v1920
        %v1922 = vmul.f32 %v1880, 1.442695
        %v1923 = vpow.pop %v1922
        %v1924 = vmul.f32 %v1881, 1.442695
        %v1925 = vpow.pop %v1924
        %v1926 = vmul.f32 %v1882, 1.442695
        %v1927 = vpow.pop %v1926
        %v1928 = vmul.f32 %v1883, 1.442695
        %v1929 = vpow.pop %v1928
        %v1930 = vmul.f32 %v1884, 1.442695
        %v1931 = vpow.pop %v1930
        %v1932 = vmul.f32 %v1885, 1.442695
        %v1933 = vpow.pop %v1932
        %v1934 = vmul.f32 %v1886, 1.442695
        %v1935 = vpow.pop %v1934
        %v1936 = vmul.f32 %v1887, 1.442695
        %v1937 = vpow.pop %v1936
        %v1938 = vmul.f32 %v1888, 1.442695
        %v1939 = vpow.pop %v1938
        %v1940 = vmul.f32 %v1889, 1.442695
        %v1941 = vpow.pop %v1940
        %v1942 = vmul.f32 %v1890, 1.442695
        %v1943 = vpow.pop %v1942
        %v1944 = vmul.f32 %v1891, 1.442695
        %v1945 = vpow.pop %v1944
        %v1946 = vmul.f32 %v1892, 1.442695
        %v1947 = vpow.pop %v1946
        %v1948 = vmul.f32 %v1893, 1.442695
        %v1949 = vpow.pop %v1948
        %v1950 = vmul.f32 %v1894, 1.442695
        %v1951 = vpow.pop %v1950
        %v1952 = vmul.f32 %v1895, 1.442695
        %v1953 = vpow.pop %v1952
        %v1954 = vmul.f32 %v1896, 1.442695
        %v1955 = vpow.pop %v1954
        %v1956 = vmul.f32 %v1897, 1.442695
        %v1957 = vpow.pop %v1956
        %v1958 = vmul.f32 %v1898, 1.442695
        %v1959 = vpow.pop %v1958
        %v1960 = vmul.f32 %v1899, 1.442695
        %v1961 = vpow.pop %v1960
        %v1962 = vmul.f32 %v1900, 1.442695
        %v1963 = vpow.pop %v1962
        %v1964 = vmul.f32 %v1901, 1.442695
        %v1965 = vpow.pop %v1964
        %v1966 = vmul.f32 %v1902, 1.442695
        %v1967 = vpow.pop %v1966
        %v1968 = vmul.f32 %v1903, 1.442695
        %v1969 = vpow.pop %v1968
        %v1970 = vmul.f32 %v1904, 1.442695
        %v1971 = vpow.pop %v1970
        %v1972 = vmul.f32 %v1905, 1.442695
        %v1973 = vpow.pop %v1972
        %v1974 = vmul.f32 %v1906, 1.442695
        %v1975 = vpow.pop %v1974
        %v1976 = vmul.f32 %v1907, 1.442695
        %v1977 = vpow.pop %v1976
        %v1978 = vmul.f32 %v1908, 1.442695
        %v1979 = vpow.pop %v1978
        %v1980 = vmul.f32 %v1909, 1.442695
        %v1981 = vpow.pop %v1980
        %1982 = vadd.xlane.f32.xlu0 %v1911
        %v1983 = vpop.xlane.xlu0 %1982
        %1984 = vadd.xlane.f32.xlu0 %v1913
        %v1985 = vpop.xlane.xlu0 %1984
        %1986 = vadd.xlane.f32.xlu0 %v1915
        %v1987 = vpop.xlane.xlu0 %1986
        %1988 = vadd.xlane.f32.xlu0 %v1917
        %v1989 = vpop.xlane.xlu0 %1988
        %1990 = vadd.xlane.f32.xlu0 %v1919
        %v1991 = vpop.xlane.xlu0 %1990
        %1992 = vadd.xlane.f32.xlu0 %v1921
        %v1993 = vpop.xlane.xlu0 %1992
        %1994 = vadd.xlane.f32.xlu0 %v1923
        %v1995 = vpop.xlane.xlu0 %1994
        %1996 = vadd.xlane.f32.xlu0 %v1925
        %v1997 = vpop.xlane.xlu0 %1996
        %1998 = vadd.xlane.f32.xlu0 %v1927
        %v1999 = vpop.xlane.xlu0 %1998
        %2000 = vadd.xlane.f32.xlu0 %v1929
        %v2001 = vpop.xlane.xlu0 %2000
        %2002 = vadd.xlane.f32.xlu0 %v1931
        %v2003 = vpop.xlane.xlu0 %2002
        %2004 = vadd.xlane.f32.xlu0 %v1933
        %v2005 = vpop.xlane.xlu0 %2004
        %2006 = vadd.xlane.f32.xlu0 %v1935
        %v2007 = vpop.xlane.xlu0 %2006
        %2008 = vadd.xlane.f32.xlu0 %v1937
        %v2009 = vpop.xlane.xlu0 %2008
        %2010 = vadd.xlane.f32.xlu0 %v1939
        %v2011 = vpop.xlane.xlu0 %2010
        %2012 = vadd.xlane.f32.xlu0 %v1941
        %v2013 = vpop.xlane.xlu0 %2012
        %2014 = vadd.xlane.f32.xlu0 %v1943
        %v2015 = vpop.xlane.xlu0 %2014
        %2016 = vadd.xlane.f32.xlu0 %v1945
        %v2017 = vpop.xlane.xlu0 %2016
        %2018 = vadd.xlane.f32.xlu0 %v1947
        %v2019 = vpop.xlane.xlu0 %2018
        %2020 = vadd.xlane.f32.xlu0 %v1949
        %v2021 = vpop.xlane.xlu0 %2020
        %2022 = vadd.xlane.f32.xlu0 %v1951
        %v2023 = vpop.xlane.xlu0 %2022
        %2024 = vadd.xlane.f32.xlu0 %v1953
        %v2025 = vpop.xlane.xlu0 %2024
        %2026 = vadd.xlane.f32.xlu0 %v1955
        %v2027 = vpop.xlane.xlu0 %2026
        %2028 = vadd.xlane.f32.xlu0 %v1957
        %v2029 = vpop.xlane.xlu0 %2028
        %2030 = vadd.xlane.f32.xlu0 %v1959
        %v2031 = vpop.xlane.xlu0 %2030
        %2032 = vadd.xlane.f32.xlu0 %v1961
        %v2033 = vpop.xlane.xlu0 %2032
        %2034 = vadd.xlane.f32.xlu0 %v1963
        %v2035 = vpop.xlane.xlu0 %2034
        %2036 = vadd.xlane.f32.xlu0 %v1965
        %v2037 = vpop.xlane.xlu0 %2036
        %2038 = vadd.xlane.f32.xlu0 %v1967
        %v2039 = vpop.xlane.xlu0 %2038
        %2040 = vadd.xlane.f32.xlu0 %v1969
        %v2041 = vpop.xlane.xlu0 %2040
        %2042 = vadd.xlane.f32.xlu0 %v1971
        %v2043 = vpop.xlane.xlu0 %2042
        %2044 = vadd.xlane.f32.xlu0 %v1973
        %v2045 = vpop.xlane.xlu0 %2044
        %2046 = vadd.xlane.f32.xlu0 %v1975
        %v2047 = vpop.xlane.xlu0 %2046
        %2048 = vadd.xlane.f32.xlu0 %v1977
        %v2049 = vpop.xlane.xlu0 %2048
        %2050 = vadd.xlane.f32.xlu0 %v1979
        %v2051 = vpop.xlane.xlu0 %2050
        %2052 = vadd.xlane.f32.xlu0 %v1981
        %v2053 = vpop.xlane.xlu0 %2052
        %v2054 = vrcp.pop %v1983
        %v2055 = vmul.f32 %v1911, %v2054
        %v2056 = vrcp.pop %v1985
        %v2057 = vmul.f32 %v1913, %v2056
        %v2058 = vrcp.pop %v1987
        %v2059 = vmul.f32 %v1915, %v2058
        %v2060 = vrcp.pop %v1989
        %v2061 = vmul.f32 %v1917, %v2060
        %v2062 = vrcp.pop %v1991
        %v2063 = vmul.f32 %v1919, %v2062
        %v2064 = vrcp.pop %v1993
        %v2065 = vmul.f32 %v1921, %v2064
        %v2066 = vrcp.pop %v1995
        %v2067 = vmul.f32 %v1923, %v2066
        %v2068 = vrcp.pop %v1997
        %v2069 = vmul.f32 %v1925, %v2068
        %v2070 = vrcp.pop %v1999
        %v2071 = vmul.f32 %v1927, %v2070
        %v2072 = vrcp.pop %v2001
        %v2073 = vmul.f32 %v1929, %v2072
        %v2074 = vrcp.pop %v2003
        %v2075 = vmul.f32 %v1931, %v2074
        %v2076 = vrcp.pop %v2005
        %v2077 = vmul.f32 %v1933, %v2076
        %v2078 = vrcp.pop %v2007
        %v2079 = vmul.f32 %v1935, %v2078
        %v2080 = vrcp.pop %v2009
        %v2081 = vmul.f32 %v1937, %v2080
        %v2082 = vrcp.pop %v2011
        %v2083 = vmul.f32 %v1939, %v2082
        %v2084 = vrcp.pop %v2013
        %v2085 = vmul.f32 %v1941, %v2084
        %v2086 = vrcp.pop %v2015
        %v2087 = vmul.f32 %v1943, %v2086
        %v2088 = vrcp.pop %v2017
        %v2089 = vmul.f32 %v1945, %v2088
        %v2090 = vrcp.pop %v2019
        %v2091 = vmul.f32 %v1947, %v2090
        %v2092 = vrcp.pop %v2021
        %v2093 = vmul.f32 %v1949, %v2092
        %v2094 = vrcp.pop %v2023
        %v2095 = vmul.f32 %v1951, %v2094
        %v2096 = vrcp.pop %v2025
        %v2097 = vmul.f32 %v1953, %v2096
        %v2098 = vrcp.pop %v2027
        %v2099 = vmul.f32 %v1955, %v2098
        %v2100 = vrcp.pop %v2029
        %v2101 = vmul.f32 %v1957, %v2100
        %v2102 = vrcp.pop %v2031
        %v2103 = vmul.f32 %v1959, %v2102
        %v2104 = vrcp.pop %v2033
        %v2105 = vmul.f32 %v1961, %v2104
        %v2106 = vrcp.pop %v2035
        %v2107 = vmul.f32 %v1963, %v2106
        %v2108 = vrcp.pop %v2037
        %v2109 = vmul.f32 %v1965, %v2108
        %v2110 = vrcp.pop %v2039
        %v2111 = vmul.f32 %v1967, %v2110
        %v2112 = vrcp.pop %v2041
        %v2113 = vmul.f32 %v1969, %v2112
        %v2114 = vrcp.pop %v2043
        %v2115 = vmul.f32 %v1971, %v2114
        %v2116 = vrcp.pop %v2045
        %v2117 = vmul.f32 %v1973, %v2116
        %v2118 = vrcp.pop %v2047
        %v2119 = vmul.f32 %v1975, %v2118
        %v2120 = vrcp.pop %v2049
        %v2121 = vmul.f32 %v1977, %v2120
        %v2122 = vrcp.pop %v2051
        %v2123 = vmul.f32 %v1979, %v2122
        %v2124 = vrcp.pop %v2053
        %v2125 = vmul.f32 %v1981, %v2124
        %2126 = vmax.xlane.f32.xlu0 %v1012
        %v2127 = vpop.xlane.xlu0 %2126
        %2128 = vmax.xlane.f32.xlu0 %v1015
        %v2129 = vpop.xlane.xlu0 %2128
        %2130 = vmax.xlane.f32.xlu0 %v1020
        %v2131 = vpop.xlane.xlu0 %2130
        %2132 = vmax.xlane.f32.xlu0 %v1023
        %v2133 = vpop.xlane.xlu0 %2132
        %2134 = vmax.xlane.f32.xlu0 %v1028
        %v2135 = vpop.xlane.xlu0 %2134
        %2136 = vmax.xlane.f32.xlu0 %v1031
        %v2137 = vpop.xlane.xlu0 %2136
        %2138 = vmax.xlane.f32.xlu0 %v1036
        %v2139 = vpop.xlane.xlu0 %2138
        %2140 = vmax.xlane.f32.xlu0 %v1039
        %v2141 = vpop.xlane.xlu0 %2140
        %2142 = vmax.xlane.f32.xlu0 %v1044
        %v2143 = vpop.xlane.xlu0 %2142
        %2144 = vmax.xlane.f32.xlu0 %v1047
        %v2145 = vpop.xlane.xlu0 %2144
        %2146 = vmax.xlane.f32.xlu0 %v1052
        %v2147 = vpop.xlane.xlu0 %2146
        %2148 = vmax.xlane.f32.xlu0 %v1055
        %v2149 = vpop.xlane.xlu0 %2148
        %2150 = vmax.xlane.f32.xlu0 %v1060
        %v2151 = vpop.xlane.xlu0 %2150
        %2152 = vmax.xlane.f32.xlu0 %v1063
        %v2153 = vpop.xlane.xlu0 %2152
        %2154 = vmax.xlane.f32.xlu0 %v1068
        %v2155 = vpop.xlane.xlu0 %2154
        %2156 = vmax.xlane.f32.xlu0 %v1071
        %v2157 = vpop.xlane.xlu0 %2156
        %2158 = vmax.xlane.f32.xlu0 %v1076
        %v2159 = vpop.xlane.xlu0 %2158
        %2160 = vmax.xlane.f32.xlu0 %v1079
        %v2161 = vpop.xlane.xlu0 %2160
        %2162 = vmax.xlane.f32.xlu0 %v1084
        %v2163 = vpop.xlane.xlu0 %2162
        %2164 = vmax.xlane.f32.xlu0 %v1087
        %v2165 = vpop.xlane.xlu0 %2164
        %2166 = vmax.xlane.f32.xlu0 %v1092
        %v2167 = vpop.xlane.xlu0 %2166
        %2168 = vmax.xlane.f32.xlu0 %v1095
        %v2169 = vpop.xlane.xlu0 %2168
        %2170 = vmax.xlane.f32.xlu0 %v1100
        %v2171 = vpop.xlane.xlu0 %2170
        %2172 = vmax.xlane.f32.xlu0 %v1103
        %v2173 = vpop.xlane.xlu0 %2172
        %2174 = vmax.xlane.f32.xlu0 %v1108
        %v2175 = vpop.xlane.xlu0 %2174
        %2176 = vmax.xlane.f32.xlu0 %v1111
        %v2177 = vpop.xlane.xlu0 %2176
        %2178 = vmax.xlane.f32.xlu0 %v1116
        %v2179 = vpop.xlane.xlu0 %2178
        %2180 = vmax.xlane.f32.xlu0 %v1119
        %v2181 = vpop.xlane.xlu0 %2180
        %2182 = vmax.xlane.f32.xlu0 %v1124
        %v2183 = vpop.xlane.xlu0 %2182
        %2184 = vmax.xlane.f32.xlu0 %v1127
        %v2185 = vpop.xlane.xlu0 %2184
        %2186 = vmax.xlane.f32.xlu0 %v1132
        %v2187 = vpop.xlane.xlu0 %2186
        %2188 = vmax.xlane.f32.xlu0 %v1135
        %v2189 = vpop.xlane.xlu0 %2188
        %2190 = vmax.xlane.f32.xlu0 %v1140
        %v2191 = vpop.xlane.xlu0 %2190
        %2192 = vmax.xlane.f32.xlu0 %v1143
        %v2193 = vpop.xlane.xlu0 %2192
        %2194 = vmax.xlane.f32.xlu0 %v1148
        %v2195 = vpop.xlane.xlu0 %2194
        %2196 = vmax.xlane.f32.xlu0 %v1151
        %v2197 = vpop.xlane.xlu0 %2196
        %v2198 = vsub.f32 %v1012, %v2127
        %v2199 = vsub.f32 %v1015, %v2129
        %v2200 = vsub.f32 %v1020, %v2131
        %v2201 = vsub.f32 %v1023, %v2133
        %v2202 = vsub.f32 %v1028, %v2135
        %v2203 = vsub.f32 %v1031, %v2137
        %v2204 = vsub.f32 %v1036, %v2139
        %v2205 = vsub.f32 %v1039, %v2141
        %v2206 = vsub.f32 %v1044, %v2143
        %v2207 = vsub.f32 %v1047, %v2145
        %v2208 = vsub.f32 %v1052, %v2147
        %v2209 = vsub.f32 %v1055, %v2149
        %v2210 = vsub.f32 %v1060, %v2151
        %v2211 = vsub.f32 %v1063, %v2153
        %v2212 = vsub.f32 %v1068, %v2155
        %v2213 = vsub.f32 %v1071, %v2157
        %v2214 = vsub.f32 %v1076, %v2159
        %v2215 = vsub.f32 %v1079, %v2161
        %v2216 = vsub.f32 %v1084, %v2163
        %v2217 = vsub.f32 %v1087, %v2165
        %v2218 = vsub.f32 %v1092, %v2167
        %v2219 = vsub.f32 %v1095, %v2169
        %v2220 = vsub.f32 %v1100, %v2171
        %v2221 = vsub.f32 %v1103, %v2173
        %v2222 = vsub.f32 %v1108, %v2175
        %v2223 = vsub.f32 %v1111, %v2177
        %v2224 = vsub.f32 %v1116, %v2179
        %v2225 = vsub.f32 %v1119, %v2181
        %v2226 = vsub.f32 %v1124, %v2183
        %v2227 = vsub.f32 %v1127, %v2185
        %v2228 = vsub.f32 %v1132, %v2187
        %v2229 = vsub.f32 %v1135, %v2189
        %v2230 = vsub.f32 %v1140, %v2191
        %v2231 = vsub.f32 %v1143, %v2193
        %v2232 = vsub.f32 %v1148, %v2195
        %v2233 = vsub.f32 %v1151, %v2197
        %v2234 = vmul.f32 %v2198, 1.442695
        %v2235 = vpow.pop %v2234
        %v2236 = vmul.f32 %v2199, 1.442695
        %v2237 = vpow.pop %v2236
        %v2238 = vmul.f32 %v2200, 1.442695
        %v2239 = vpow.pop %v2238
        %v2240 = vmul.f32 %v2201, 1.442695
        %v2241 = vpow.pop %v2240
        %v2242 = vmul.f32 %v2202, 1.442695
        %v2243 = vpow.pop %v2242
        %v2244 = vmul.f32 %v2203, 1.442695
        %v2245 = vpow.pop %v2244
        %v2246 = vmul.f32 %v2204, 1.442695
        %v2247 = vpow.pop %v2246
        %v2248 = vmul.f32 %v2205, 1.442695
        %v2249 = vpow.pop %v2248
        %v2250 = vmul.f32 %v2206, 1.442695
        %v2251 = vpow.pop %v2250
        %v2252 = vmul.f32 %v2207, 1.442695
        %v2253 = vpow.pop %v2252
        %v2254 = vmul.f32 %v2208, 1.442695
        %v2255 = vpow.pop %v2254
        %v2256 = vmul.f32 %v2209, 1.442695
        %v2257 = vpow.pop %v2256
        %v2258 = vmul.f32 %v2210, 1.442695
        %v2259 = vpow.pop %v2258
        %v2260 = vmul.f32 %v2211, 1.442695
        %v2261 = vpow.pop %v2260
        %v2262 = vmul.f32 %v2212, 1.442695
        %v2263 = vpow.pop %v2262
        %v2264 = vmul.f32 %v2213, 1.442695
        %v2265 = vpow.pop %v2264
        %v2266 = vmul.f32 %v2214, 1.442695
        %v2267 = vpow.pop %v2266
        %v2268 = vmul.f32 %v2215, 1.442695
        %v2269 = vpow.pop %v2268
        %v2270 = vmul.f32 %v2216, 1.442695
        %v2271 = vpow.pop %v2270
        %v2272 = vmul.f32 %v2217, 1.442695
        %v2273 = vpow.pop %v2272
        %v2274 = vmul.f32 %v2218, 1.442695
        %v2275 = vpow.pop %v2274
        %v2276 = vmul.f32 %v2219, 1.442695
        %v2277 = vpow.pop %v2276
        %v2278 = vmul.f32 %v2220, 1.442695
        %v2279 = vpow.pop %v2278
        %v2280 = vmul.f32 %v2221, 1.442695
        %v2281 = vpow.pop %v2280
        %v2282 = vmul.f32 %v2222, 1.442695
        %v2283 = vpow.pop %v2282
        %v2284 = vmul.f32 %v2223, 1.442695
        %v2285 = vpow.pop %v2284
        %v2286 = vmul.f32 %v2224, 1.442695
        %v2287 = vpow.pop %v2286
        %v2288 = vmul.f32 %v2225, 1.442695
        %v2289 = vpow.pop %v2288
        %v2290 = vmul.f32 %v2226, 1.442695
        %v2291 = vpow.pop %v2290
        %v2292 = vmul.f32 %v2227, 1.442695
        %v2293 = vpow.pop %v2292
        %v2294 = vmul.f32 %v2228, 1.442695
        %v2295 = vpow.pop %v2294
        %v2296 = vmul.f32 %v2229, 1.442695
        %v2297 = vpow.pop %v2296
        %v2298 = vmul.f32 %v2230, 1.442695
        %v2299 = vpow.pop %v2298
        %v2300 = vmul.f32 %v2231, 1.442695
        %v2301 = vpow.pop %v2300
        %v2302 = vmul.f32 %v2232, 1.442695
        %v2303 = vpow.pop %v2302
        %v2304 = vmul.f32 %v2233, 1.442695
        %v2305 = vpow.pop %v2304
        %2306 = vadd.xlane.f32.xlu0 %v2235
        %v2307 = vpop.xlane.xlu0 %2306
        %2308 = vadd.xlane.f32.xlu0 %v2237
        %v2309 = vpop.xlane.xlu0 %2308
        %2310 = vadd.xlane.f32.xlu0 %v2239
        %v2311 = vpop.xlane.xlu0 %2310
        %2312 = vadd.xlane.f32.xlu0 %v2241
        %v2313 = vpop.xlane.xlu0 %2312
        %2314 = vadd.xlane.f32.xlu0 %v2243
        %v2315 = vpop.xlane.xlu0 %2314
        %2316 = vadd.xlane.f32.xlu0 %v2245
        %v2317 = vpop.xlane.xlu0 %2316
        %2318 = vadd.xlane.f32.xlu0 %v2247
        %v2319 = vpop.xlane.xlu0 %2318
        %2320 = vadd.xlane.f32.xlu0 %v2249
        %v2321 = vpop.xlane.xlu0 %2320
        %2322 = vadd.xlane.f32.xlu0 %v2251
        %v2323 = vpop.xlane.xlu0 %2322
        %2324 = vadd.xlane.f32.xlu0 %v2253
        %v2325 = vpop.xlane.xlu0 %2324
        %2326 = vadd.xlane.f32.xlu0 %v2255
        %v2327 = vpop.xlane.xlu0 %2326
        %2328 = vadd.xlane.f32.xlu0 %v2257
        %v2329 = vpop.xlane.xlu0 %2328
        %2330 = vadd.xlane.f32.xlu0 %v2259
        %v2331 = vpop.xlane.xlu0 %2330
        %2332 = vadd.xlane.f32.xlu0 %v2261
        %v2333 = vpop.xlane.xlu0 %2332
        %2334 = vadd.xlane.f32.xlu0 %v2263
        %v2335 = vpop.xlane.xlu0 %2334
        %2336 = vadd.xlane.f32.xlu0 %v2265
        %v2337 = vpop.xlane.xlu0 %2336
        %2338 = vadd.xlane.f32.xlu0 %v2267
        %v2339 = vpop.xlane.xlu0 %2338
        %2340 = vadd.xlane.f32.xlu0 %v2269
        %v2341 = vpop.xlane.xlu0 %2340
        %2342 = vadd.xlane.f32.xlu0 %v2271
        %v2343 = vpop.xlane.xlu0 %2342
        %2344 = vadd.xlane.f32.xlu0 %v2273
        %v2345 = vpop.xlane.xlu0 %2344
        %2346 = vadd.xlane.f32.xlu0 %v2275
        %v2347 = vpop.xlane.xlu0 %2346
        %2348 = vadd.xlane.f32.xlu0 %v2277
        %v2349 = vpop.xlane.xlu0 %2348
        %2350 = vadd.xlane.f32.xlu0 %v2279
        %v2351 = vpop.xlane.xlu0 %2350
        %2352 = vadd.xlane.f32.xlu0 %v2281
        %v2353 = vpop.xlane.xlu0 %2352
        %2354 = vadd.xlane.f32.xlu0 %v2283
        %v2355 = vpop.xlane.xlu0 %2354
        %2356 = vadd.xlane.f32.xlu0 %v2285
        %v2357 = vpop.xlane.xlu0 %2356
        %2358 = vadd.xlane.f32.xlu0 %v2287
        %v2359 = vpop.xlane.xlu0 %2358
        %2360 = vadd.xlane.f32.xlu0 %v2289
        %v2361 = vpop.xlane.xlu0 %2360
        %2362 = vadd.xlane.f32.xlu0 %v2291
        %v2363 = vpop.xlane.xlu0 %2362
        %2364 = vadd.xlane.f32.xlu0 %v2293
        %v2365 = vpop.xlane.xlu0 %2364
        %2366 = vadd.xlane.f32.xlu0 %v2295
        %v2367 = vpop.xlane.xlu0 %2366
        %2368 = vadd.xlane.f32.xlu0 %v2297
        %v2369 = vpop.xlane.xlu0 %2368
        %2370 = vadd.xlane.f32.xlu0 %v2299
        %v2371 = vpop.xlane.xlu0 %2370
        %2372 = vadd.xlane.f32.xlu0 %v2301
        %v2373 = vpop.xlane.xlu0 %2372
        %2374 = vadd.xlane.f32.xlu0 %v2303
        %v2375 = vpop.xlane.xlu0 %2374
        %2376 = vadd.xlane.f32.xlu0 %v2305
        %v2377 = vpop.xlane.xlu0 %2376
        %v2378 = vrcp.pop %v2307
        %v2379 = vmul.f32 %v2235, %v2378
        %v2380 = vrcp.pop %v2309
        %v2381 = vmul.f32 %v2237, %v2380
        %v2382 = vrcp.pop %v2311
        %v2383 = vmul.f32 %v2239, %v2382
        %v2384 = vrcp.pop %v2313
        %v2385 = vmul.f32 %v2241, %v2384
        %v2386 = vrcp.pop %v2315
        %v2387 = vmul.f32 %v2243, %v2386
        %v2388 = vrcp.pop %v2317
        %v2389 = vmul.f32 %v2245, %v2388
        %v2390 = vrcp.pop %v2319
        %v2391 = vmul.f32 %v2247, %v2390
        %v2392 = vrcp.pop %v2321
        %v2393 = vmul.f32 %v2249, %v2392
        %v2394 = vrcp.pop %v2323
        %v2395 = vmul.f32 %v2251, %v2394
        %v2396 = vrcp.pop %v2325
        %v2397 = vmul.f32 %v2253, %v2396
        %v2398 = vrcp.pop %v2327
        %v2399 = vmul.f32 %v2255, %v2398
        %v2400 = vrcp.pop %v2329
        %v2401 = vmul.f32 %v2257, %v2400
        %v2402 = vrcp.pop %v2331
        %v2403 = vmul.f32 %v2259, %v2402
        %v2404 = vrcp.pop %v2333
        %v2405 = vmul.f32 %v2261, %v2404
        %v2406 = vrcp.pop %v2335
        %v2407 = vmul.f32 %v2263, %v2406
        %v2408 = vrcp.pop %v2337
        %v2409 = vmul.f32 %v2265, %v2408
        %v2410 = vrcp.pop %v2339
        %v2411 = vmul.f32 %v2267, %v2410
        %v2412 = vrcp.pop %v2341
        %v2413 = vmul.f32 %v2269, %v2412
        %v2414 = vrcp.pop %v2343
        %v2415 = vmul.f32 %v2271, %v2414
        %v2416 = vrcp.pop %v2345
        %v2417 = vmul.f32 %v2273, %v2416
        %v2418 = vrcp.pop %v2347
        %v2419 = vmul.f32 %v2275, %v2418
        %v2420 = vrcp.pop %v2349
        %v2421 = vmul.f32 %v2277, %v2420
        %v2422 = vrcp.pop %v2351
        %v2423 = vmul.f32 %v2279, %v2422
        %v2424 = vrcp.pop %v2353
        %v2425 = vmul.f32 %v2281, %v2424
        %v2426 = vrcp.pop %v2355
        %v2427 = vmul.f32 %v2283, %v2426
        %v2428 = vrcp.pop %v2357
        %v2429 = vmul.f32 %v2285, %v2428
        %v2430 = vrcp.pop %v2359
        %v2431 = vmul.f32 %v2287, %v2430
        %v2432 = vrcp.pop %v2361
        %v2433 = vmul.f32 %v2289, %v2432
        %v2434 = vrcp.pop %v2363
        %v2435 = vmul.f32 %v2291, %v2434
        %v2436 = vrcp.pop %v2365
        %v2437 = vmul.f32 %v2293, %v2436
        %v2438 = vrcp.pop %v2367
        %v2439 = vmul.f32 %v2295, %v2438
        %v2440 = vrcp.pop %v2369
        %v2441 = vmul.f32 %v2297, %v2440
        %v2442 = vrcp.pop %v2371
        %v2443 = vmul.f32 %v2299, %v2442
        %v2444 = vrcp.pop %v2373
        %v2445 = vmul.f32 %v2301, %v2444
        %v2446 = vrcp.pop %v2375
        %v2447 = vmul.f32 %v2303, %v2446
        %v2448 = vrcp.pop %v2377
        %v2449 = vmul.f32 %v2305, %v2448
        %v2450 = vpack.c.bf16 %v1409, %v1407
        %v2451 = vpack.c.bf16 %v592, %v588
        %v2452 = vpack.c.bf16 %v1733, %v1731
        %v2453 = vpack.c.bf16 %v2057, %v2055
        %v2454 = vpack.c.bf16 %v2381, %v2379
        %v2455 = vpack.c.bf16 %v1413, %v1411
        %v2456 = vpack.c.bf16 %v602, %v598
        %v2457 = vpack.c.bf16 %v1737, %v1735
        %v2458 = vpack.c.bf16 %v2061, %v2059
        %v2459 = vpack.c.bf16 %v2385, %v2383
        %v2460 = vpack.c.bf16 %v1417, %v1415
        %v2461 = vpack.c.bf16 %v612, %v608
        %v2462 = vpack.c.bf16 %v1741, %v1739
        %v2463 = vpack.c.bf16 %v2065, %v2063
        %v2464 = vpack.c.bf16 %v2389, %v2387
        %v2465 = vpack.c.bf16 %v1421, %v1419
        %v2466 = vpack.c.bf16 %v622, %v618
        %v2467 = vpack.c.bf16 %v1745, %v1743
        %v2468 = vpack.c.bf16 %v2069, %v2067
        %v2469 = vpack.c.bf16 %v2393, %v2391
        %v2470 = vpack.c.bf16 %v1425, %v1423
        %v2471 = vpack.c.bf16 %v632, %v628
        %v2472 = vpack.c.bf16 %v1749, %v1747
        %v2473 = vpack.c.bf16 %v2073, %v2071
        %v2474 = vpack.c.bf16 %v2397, %v2395
        %v2475 = vpack.c.bf16 %v1429, %v1427
        %v2476 = vpack.c.bf16 %v642, %v638
        %v2477 = vpack.c.bf16 %v1753, %v1751
        %v2478 = vpack.c.bf16 %v2077, %v2075
        %v2479 = vpack.c.bf16 %v2401, %v2399
        %v2480 = vpack.c.bf16 %v1433, %v1431
        %v2481 = vpack.c.bf16 %v652, %v648
        %v2482 = vpack.c.bf16 %v1757, %v1755
        %v2483 = vpack.c.bf16 %v2081, %v2079
        %v2484 = vpack.c.bf16 %v2405, %v2403
        %v2485 = vpack.c.bf16 %v1437, %v1435
        %v2486 = vpack.c.bf16 %v662, %v658
        %v2487 = vpack.c.bf16 %v1761, %v1759
        %v2488 = vpack.c.bf16 %v2085, %v2083
        %v2489 = vpack.c.bf16 %v2409, %v2407
        %v2490 = vpack.c.bf16 %v1441, %v1439
        %v2491 = vpack.c.bf16 %v672, %v668
        %v2492 = vpack.c.bf16 %v1765, %v1763
        %v2493 = vpack.c.bf16 %v2089, %v2087
        %v2494 = vpack.c.bf16 %v2413, %v2411
        %v2495 = vpack.c.bf16 %v1445, %v1443
        %v2496 = vpack.c.bf16 %v682, %v678
        %v2497 = vpack.c.bf16 %v1769, %v1767
        %v2498 = vpack.c.bf16 %v2093, %v2091
        %v2499 = vpack.c.bf16 %v2417, %v2415
        %v2500 = vpack.c.bf16 %v1449, %v1447
        %v2501 = vpack.c.bf16 %v692, %v688
        %v2502 = vpack.c.bf16 %v1773, %v1771
        %v2503 = vpack.c.bf16 %v2097, %v2095
        %v2504 = vpack.c.bf16 %v2421, %v2419
        %v2505 = vpack.c.bf16 %v1453, %v1451
        %v2506 = vpack.c.bf16 %v702, %v698
        %v2507 = vpack.c.bf16 %v1777, %v1775
        %v2508 = vpack.c.bf16 %v2101, %v2099
        %v2509 = vpack.c.bf16 %v2425, %v2423
        %v2510 = vpack.c.bf16 %v1457, %v1455
        %v2511 = vpack.c.bf16 %v712, %v708
        %v2512 = vpack.c.bf16 %v1781, %v1779
        %v2513 = vpack.c.bf16 %v2105, %v2103
        %v2514 = vpack.c.bf16 %v2429, %v2427
        %v2515 = vpack.c.bf16 %v1461, %v1459
        %v2516 = vpack.c.bf16 %v722, %v718
        %v2517 = vpack.c.bf16 %v1785, %v1783
        %v2518 = vpack.c.bf16 %v2109, %v2107
        %v2519 = vpack.c.bf16 %v2433, %v2431
        %v2520 = vpack.c.bf16 %v1465, %v1463
        %v2521 = vpack.c.bf16 %v732, %v728
        %v2522 = vpack.c.bf16 %v1789, %v1787
        %v2523 = vpack.c.bf16 %v2113, %v2111
        %v2524 = vpack.c.bf16 %v2437, %v2435
        %v2525 = vpack.c.bf16 %v1469, %v1467
        %v2526 = vpack.c.bf16 %v742, %v738
        %v2527 = vpack.c.bf16 %v1793, %v1791
        %v2528 = vpack.c.bf16 %v2117, %v2115
        %v2529 = vpack.c.bf16 %v2441, %v2439
        %v2530 = vpack.c.bf16 %v1473, %v1471
        %v2531 = vpack.c.bf16 %v752, %v748
        %v2532 = vpack.c.bf16 %v1797, %v1795
        %v2533 = vpack.c.bf16 %v2121, %v2119
        %v2534 = vpack.c.bf16 %v2445, %v2443
        %v2535 = vpack.c.bf16 %v1477, %v1475
        %v2536 = vpack.c.bf16 %v762, %v758
        %v2537 = vpack.c.bf16 %v1801, %v1799
        %v2538 = vpack.c.bf16 %v2125, %v2123
        %v2539 = vpack.c.bf16 %v2449, %v2447
        %v2540 = vld [vmem:[%s3] sm:$0xf]
        %v2541 = vld [vmem:[%s3 + $0x4] sm:$0xf]
        %v2542 = vld [vmem:[%s3 + $0x8] sm:$0xf]
        %v2543 = vld [vmem:[%s3 + $0xc] sm:$0xf]
        %v2544 = vld [vmem:[%s3 + $0x10] sm:$0xf]
        %v2545 = vld [vmem:[%s3 + $0x14] sm:$0xf]
        %v2546 = vld [vmem:[%s3 + $0x18] sm:$0xf]
        %v2547 = vld [vmem:[%s3 + $0x1c] sm:$0xf]
        %v2548 = vld [vmem:[%s3 + $0x20] sm:$0xf]
        %v2549 = vld [vmem:[%s3 + $0x24] sm:$0xf]
        %v2550 = vld [vmem:[%s3 + $0x28] sm:$0xf]
        %v2551 = vld [vmem:[%s3 + $0x2c] sm:$0xf]
        %v2552 = vld [vmem:[%s3 + $0x30] sm:$0xf]
        %v2553 = vld [vmem:[%s3 + $0x34] sm:$0xf]
        %v2554 = vld [vmem:[%s3 + $0x38] sm:$0xf]
        %v2555 = vld [vmem:[%s3 + $0x3c] sm:$0xf]
        %v2556 = vld [vmem:[%s3 + $0x40] sm:$0xf]
        %v2557 = vld [vmem:[%s3 + $0x44] sm:$0xf]
        %v2558 = vld [vmem:[%s3 + $0x48] sm:$0xf]
        %v2559 = vld [vmem:[%s3 + $0x4c] sm:$0xf]
        %v2560 = vld [vmem:[%s3 + $0x50] sm:$0xf]
        %v2561 = vld [vmem:[%s3 + $0x54] sm:$0xf]
        %v2562 = vld [vmem:[%s3 + $0x58] sm:$0xf]
        %v2563 = vld [vmem:[%s3 + $0x5c] sm:$0xf]
        %v2564 = vld [vmem:[%s3 + $0x60] sm:$0xf]
        %v2565 = vld [vmem:[%s3 + $0x64] sm:$0xf]
        %v2566 = vld [vmem:[%s3 + $0x68] sm:$0xf]
        %v2567 = vld [vmem:[%s3 + $0x6c] sm:$0xf]
        %v2568 = vld [vmem:[%s3 + $0x70] sm:$0xf]
        %v2569 = vld [vmem:[%s3 + $0x74] sm:$0xf]
        %v2570 = vld [vmem:[%s3 + $0x78] sm:$0xf]
        %v2571 = vld [vmem:[%s3 + $0x7c] sm:$0xf]
        %v2572 = vld [vmem:[%s3 + $0x80] sm:$0xf]
        %v2573 = vld [vmem:[%s3 + $0x84] sm:$0xf]
        %v2574 = vld [vmem:[%s3 + $0x88] sm:$0xf]
        %v2575 = vld [vmem:[%s3 + $0x8c] sm:$0xf]
        %v2576 = vld [vmem:[%s3 + $0x90] sm:$0xf]
        %v2577 = vld [vmem:[%s3 + $0x94] sm:$0xf]
        %v2578 = vld [vmem:[%s3 + $0x98] sm:$0xf]
        %v2579 = vld [vmem:[%s3 + $0x9c] sm:$0xf]
        %v2580 = vld [vmem:[%s3 + $0xa0] sm:$0xf]
        %v2581 = vld [vmem:[%s3 + $0xa4] sm:$0xf]
        %v2582 = vld [vmem:[%s3 + $0xa8] sm:$0xf]
        %v2583 = vld [vmem:[%s3 + $0xac] sm:$0xf]
        %v2584 = vld [vmem:[%s3 + $0xb0] sm:$0xf]
        %v2585 = vld [vmem:[%s3 + $0xb4] sm:$0xf]
        %v2586 = vld [vmem:[%s3 + $0xb8] sm:$0xf]
        %v2587 = vld [vmem:[%s3 + $0xbc] sm:$0xf]
        %v2588 = vld [vmem:[%s3 + $0xc0] sm:$0xf]
        %v2589 = vld [vmem:[%s3 + $0xc4] sm:$0xf]
        %v2590 = vld [vmem:[%s3 + $0xc8] sm:$0xf]
        %v2591 = vld [vmem:[%s3 + $0xcc] sm:$0xf]
        %v2592 = vld [vmem:[%s3 + $0xd0] sm:$0xf]
        %v2593 = vld [vmem:[%s3 + $0xd4] sm:$0xf]
        %v2594 = vld [vmem:[%s3 + $0xd8] sm:$0xf]
        %v2595 = vld [vmem:[%s3 + $0xdc] sm:$0xf]
        %v2596 = vld [vmem:[%s3 + $0xe0] sm:$0xf]
        %v2597 = vld [vmem:[%s3 + $0xe4] sm:$0xf]
        %v2598 = vld [vmem:[%s3 + $0xe8] sm:$0xf]
        %v2599 = vld [vmem:[%s3 + $0xec] sm:$0xf]
        %v2600 = vld [vmem:[%s3 + $0xf0] sm:$0xf]
        %v2601 = vld [vmem:[%s3 + $0xf4] sm:$0xf]
        %v2602 = vld [vmem:[%s3 + $0xf8] sm:$0xf]
        %v2603 = vld [vmem:[%s3 + $0xfc] sm:$0xf]
        %v2604 = vld [vmem:[%s3 + $0x100] sm:$0xf]
        %v2605 = vld [vmem:[%s3 + $0x104] sm:$0xf]
        %v2606 = vld [vmem:[%s3 + $0x108] sm:$0xf]
        %v2607 = vld [vmem:[%s3 + $0x10c] sm:$0xf]
        %v2608 = vld [vmem:[%s3 + $0x110] sm:$0xf]
        %v2609 = vld [vmem:[%s3 + $0x114] sm:$0xf]
        %v2610 = vld [vmem:[%s3 + $0x118] sm:$0xf]
        %v2611 = vld [vmem:[%s3 + $0x11c] sm:$0xf]
        %v2612 = vld [vmem:[%s3 + $0x120] sm:$0xf]
        %v2613 = vld [vmem:[%s3 + $0x124] sm:$0xf]
        %v2614 = vld [vmem:[%s3 + $0x128] sm:$0xf]
        %v2615 = vld [vmem:[%s3 + $0x12c] sm:$0xf]
        %v2616 = vld [vmem:[%s3 + $0x130] sm:$0xf]
        %v2617 = vld [vmem:[%s3 + $0x134] sm:$0xf]
        %v2618 = vld [vmem:[%s3 + $0x138] sm:$0xf]
        %v2619 = vld [vmem:[%s3 + $0x13c] sm:$0xf]
        %v2700 = vunpack.c.l.b16 %v2540
        %v2701 = vunpack.c.l.b16 %v2541
        %v2702 = vunpack.c.l.b16 %v2542
        %v2703 = vunpack.c.l.b16 %v2543
        %v2704 = vunpack.c.l.b16 %v2544
        %v2705 = vunpack.c.l.b16 %v2545
        %v2706 = vunpack.c.l.b16 %v2546
        %v2707 = vunpack.c.l.b16 %v2547
        %v2708 = vunpack.c.l.b16 %v2548
        %v2709 = vunpack.c.l.b16 %v2549
        %v2710 = vunpack.c.l.b16 %v2550
        %v2711 = vunpack.c.l.b16 %v2551
        %v2712 = vunpack.c.l.b16 %v2552
        %v2713 = vunpack.c.l.b16 %v2553
        %v2714 = vunpack.c.l.b16 %v2554
        %v2715 = vunpack.c.l.b16 %v2555
        %v2716 = vunpack.c.l.b16 %v2556
        %v2717 = vunpack.c.l.b16 %v2557
        %v2718 = vunpack.c.l.b16 %v2558
        %v2719 = vunpack.c.l.b16 %v2559
        %v2720 = vunpack.c.l.b16 %v2560
        %v2721 = vunpack.c.l.b16 %v2561
        %v2722 = vunpack.c.l.b16 %v2562
        %v2723 = vunpack.c.l.b16 %v2563
        %v2724 = vunpack.c.l.b16 %v2564
        %v2725 = vunpack.c.l.b16 %v2565
        %v2726 = vunpack.c.l.b16 %v2566
        %v2727 = vunpack.c.l.b16 %v2567
        %v2728 = vunpack.c.l.b16 %v2568
        %v2729 = vunpack.c.l.b16 %v2569
        %v2730 = vunpack.c.l.b16 %v2570
        %v2731 = vunpack.c.l.b16 %v2571
        %v2732 = vunpack.c.l.b16 %v2572
        %v2733 = vunpack.c.l.b16 %v2573
        %v2734 = vunpack.c.l.b16 %v2574
        %v2735 = vunpack.c.l.b16 %v2575
        %v2736 = vunpack.c.l.b16 %v2576
        %v2737 = vunpack.c.l.b16 %v2577
        %v2738 = vunpack.c.l.b16 %v2578
        %v2739 = vunpack.c.l.b16 %v2579
        %v2740 = vunpack.c.l.b16 %v2580
        %v2741 = vunpack.c.l.b16 %v2581
        %v2742 = vunpack.c.l.b16 %v2582
        %v2743 = vunpack.c.l.b16 %v2583
        %v2744 = vunpack.c.l.b16 %v2584
        %v2745 = vunpack.c.l.b16 %v2585
        %v2746 = vunpack.c.l.b16 %v2586
        %v2747 = vunpack.c.l.b16 %v2587
        %v2748 = vunpack.c.l.b16 %v2588
        %v2749 = vunpack.c.l.b16 %v2589
        %v2750 = vunpack.c.l.b16 %v2590
        %v2751 = vunpack.c.l.b16 %v2591
        %v2752 = vunpack.c.l.b16 %v2592
        %v2753 = vunpack.c.l.b16 %v2593
        %v2754 = vunpack.c.l.b16 %v2594
        %v2755 = vunpack.c.l.b16 %v2595
        %v2756 = vunpack.c.l.b16 %v2596
        %v2757 = vunpack.c.l.b16 %v2597
        %v2758 = vunpack.c.l.b16 %v2598
        %v2759 = vunpack.c.l.b16 %v2599
        %v2760 = vunpack.c.l.b16 %v2600
        %v2761 = vunpack.c.l.b16 %v2601
        %v2762 = vunpack.c.l.b16 %v2602
        %v2763 = vunpack.c.l.b16 %v2603
        %v2764 = vunpack.c.l.b16 %v2604
        %v2765 = vunpack.c.l.b16 %v2605
        %v2766 = vunpack.c.l.b16 %v2606
        %v2767 = vunpack.c.l.b16 %v2607
        %v2768 = vunpack.c.l.b16 %v2608
        %v2769 = vunpack.c.l.b16 %v2609
        %v2770 = vunpack.c.l.b16 %v2610
        %v2771 = vunpack.c.l.b16 %v2611
        %v2772 = vunpack.c.l.b16 %v2612
        %v2773 = vunpack.c.l.b16 %v2613
        %v2774 = vunpack.c.l.b16 %v2614
        %v2775 = vunpack.c.l.b16 %v2615
        %v2776 = vunpack.c.l.b16 %v2616
        %v2777 = vunpack.c.l.b16 %v2617
        %v2778 = vunpack.c.l.b16 %v2618
        %v2779 = vunpack.c.l.b16 %v2619
        %v2780 = vpack.c.b16 %v2701, %v2700
        %v2781 = vpack.c.b16 %v2703, %v2702
        %v2782 = vpack.c.b16 %v2705, %v2704
        %v2783 = vpack.c.b16 %v2707, %v2706
        %v2784 = vpack.c.b16 %v2709, %v2708
        %v2785 = vpack.c.b16 %v2711, %v2710
        %v2786 = vpack.c.b16 %v2713, %v2712
        %v2787 = vpack.c.b16 %v2715, %v2714
        %v2788 = vpack.c.b16 %v2717, %v2716
        %v2789 = vpack.c.b16 %v2719, %v2718
        %v2790 = vpack.c.b16 %v2721, %v2720
        %v2791 = vpack.c.b16 %v2723, %v2722
        %v2792 = vpack.c.b16 %v2725, %v2724
        %v2793 = vpack.c.b16 %v2727, %v2726
        %v2794 = vpack.c.b16 %v2729, %v2728
        %v2795 = vpack.c.b16 %v2731, %v2730
        %v2796 = vpack.c.b16 %v2733, %v2732
        %v2797 = vpack.c.b16 %v2735, %v2734
        %v2798 = vpack.c.b16 %v2737, %v2736
        %v2799 = vpack.c.b16 %v2739, %v2738
        %v2800 = vpack.c.b16 %v2741, %v2740
        %v2801 = vpack.c.b16 %v2743, %v2742
        %v2802 = vpack.c.b16 %v2745, %v2744
        %v2803 = vpack.c.b16 %v2747, %v2746
        %v2804 = vpack.c.b16 %v2749, %v2748
        %v2805 = vpack.c.b16 %v2751, %v2750
        %v2806 = vpack.c.b16 %v2753, %v2752
        %v2807 = vpack.c.b16 %v2755, %v2754
        %v2808 = vpack.c.b16 %v2757, %v2756
        %v2809 = vpack.c.b16 %v2759, %v2758
        %v2810 = vpack.c.b16 %v2761, %v2760
        %v2811 = vpack.c.b16 %v2763, %v2762
        %v2812 = vpack.c.b16 %v2765, %v2764
        %v2813 = vpack.c.b16 %v2767, %v2766
        %v2814 = vpack.c.b16 %v2769, %v2768
        %v2815 = vpack.c.b16 %v2771, %v2770
        %v2816 = vpack.c.b16 %v2773, %v2772
        %v2817 = vpack.c.b16 %v2775, %v2774
        %v2818 = vpack.c.b16 %v2777, %v2776
        %v2819 = vpack.c.b16 %v2779, %v2778
        %2860 = vmatprep.subr.bf16.mxu0 0
        %2861 = vmatpush1.bf16.msra.mxu0 %v2787
        %2862 = vmatprep.subr.bf16.mxu0 0
        %2863 = vmatpush1.bf16.msra.mxu0 %v2786
        %2864 = vmatprep.subr.bf16.mxu0 0
        %2865 = vmatpush1.bf16.msra.mxu0 %v2785
        %2866 = vmatprep.subr.bf16.mxu0 0
        %2867 = vmatpush1.bf16.msra.mxu0 %v2784
        %2868 = vmatprep.subr.bf16.mxu0 0
        %2869 = vmatpush1.bf16.msra.mxu0 %v2783
        %2870 = vmatprep.subr.bf16.mxu0 0
        %2871 = vmatpush1.bf16.msra.mxu0 %v2782
        %2872 = vmatprep.subr.bf16.mxu0 0
        %2873 = vmatpush1.bf16.msra.mxu0 %v2781
        %2874 = vmatprep.subr.bf16.mxu0 0
        %2875 = vmatpush1.bf16.msra.mxu0 %v2780
        %2876 = vmatprep.subr.bf16.mxu0 0
        %2877 = vmatpush2.bf16.msra.mxu0 %v2795
        %2878 = vmatprep.subr.bf16.mxu0 0
        %2879 = vmatpush2.bf16.msra.mxu0 %v2794
        %2880 = vmatprep.subr.bf16.mxu0 0
        %2881 = vmatpush2.bf16.msra.mxu0 %v2793
        %2882 = vmatprep.subr.bf16.mxu0 0
        %2883 = vmatpush2.bf16.msra.mxu0 %v2792
        %2884 = vmatprep.subr.bf16.mxu0 0
        %2885 = vmatpush2.bf16.msra.mxu0 %v2791
        %2886 = vmatprep.subr.bf16.mxu0 0
        %2887 = vmatpush2.bf16.msra.mxu0 %v2790
        %2888 = vmatprep.subr.bf16.mxu0 0
        %2889 = vmatpush2.bf16.msra.mxu0 %v2789
        %2890 = vmatprep.subr.bf16.mxu0 0
        %2891 = vmatpush2.bf16.msra.mxu0 %v2788
        %2892 = vmatprep.mubr.bf16.mxu0 %v2451
        %2893 = vmatmul.mubr.bf16.gmra.mxu0 %v2450
        %v2894 = vpop.f32.mrf.mxu0
        %v2895 = vadd.f32 0.0, %v2894
        %v2896 = vpop.f32.mrf.mxu0
        %v2897 = vpop.f32.mrf.mxu0
        %v2898 = vadd.f32 0.0, %v2897
        %v2899 = vpop.f32.mrf.mxu0
        %2900 = vmatprep.mubr.bf16.mxu0 %v2456
        %2901 = vmatmul.mubr.bf16.gmra.mxu0 %v2455
        %v2902 = vpop.f32.mrf.mxu0
        %v2903 = vadd.f32 0.0, %v2902
        %v2904 = vpop.f32.mrf.mxu0
        %v2905 = vpop.f32.mrf.mxu0
        %v2906 = vadd.f32 0.0, %v2905
        %v2907 = vpop.f32.mrf.mxu0
        %2908 = vmatprep.mubr.bf16.mxu0 %v2461
        %2909 = vmatmul.mubr.bf16.gmra.mxu0 %v2460
        %v2910 = vpop.f32.mrf.mxu0
        %v2911 = vadd.f32 0.0, %v2910
        %v2912 = vpop.f32.mrf.mxu0
        %v2913 = vpop.f32.mrf.mxu0
        %v2914 = vadd.f32 0.0, %v2913
        %v2915 = vpop.f32.mrf.mxu0
        %2916 = vmatprep.mubr.bf16.mxu0 %v2466
        %2917 = vmatmul.mubr.bf16.gmra.mxu0 %v2465
        %v2918 = vpop.f32.mrf.mxu0
        %v2919 = vadd.f32 0.0, %v2918
        %v2920 = vpop.f32.mrf.mxu0
        %v2921 = vpop.f32.mrf.mxu0
        %v2922 = vadd.f32 0.0, %v2921
        %v2923 = vpop.f32.mrf.mxu0
        %2924 = vmatprep.mubr.bf16.mxu0 %v2471
        %2925 = vmatmul.mubr.bf16.gmra.mxu0 %v2470
        %v2926 = vpop.f32.mrf.mxu0
        %v2927 = vadd.f32 0.0, %v2926
        %v2928 = vpop.f32.mrf.mxu0
        %v2929 = vpop.f32.mrf.mxu0
        %v2930 = vadd.f32 0.0, %v2929
        %v2931 = vpop.f32.mrf.mxu0
        %2932 = vmatprep.mubr.bf16.mxu0 %v2476
        %2933 = vmatmul.mubr.bf16.gmra.mxu0 %v2475
        %v2934 = vpop.f32.mrf.mxu0
        %v2935 = vadd.f32 0.0, %v2934
        %v2936 = vpop.f32.mrf.mxu0
        %v2937 = vpop.f32.mrf.mxu0
        %v2938 = vadd.f32 0.0, %v2937
        %v2939 = vpop.f32.mrf.mxu0
        %2940 = vmatprep.mubr.bf16.mxu0 %v2481
        %2941 = vmatmul.mubr.bf16.gmra.mxu0 %v2480
        %v2942 = vpop.f32.mrf.mxu0
        %v2943 = vadd.f32 0.0, %v2942
        %v2944 = vpop.f32.mrf.mxu0
        %v2945 = vpop.f32.mrf.mxu0
        %v2946 = vadd.f32 0.0, %v2945
        %v2947 = vpop.f32.mrf.mxu0
        %2948 = vmatprep.mubr.bf16.mxu0 %v2486
        %2949 = vmatmul.mubr.bf16.gmra.mxu0 %v2485
        %v2950 = vpop.f32.mrf.mxu0
        %v2951 = vadd.f32 0.0, %v2950
        %v2952 = vpop.f32.mrf.mxu0
        %v2953 = vpop.f32.mrf.mxu0
        %v2954 = vadd.f32 0.0, %v2953
        %v2955 = vpop.f32.mrf.mxu0
        %2956 = vmatprep.mubr.bf16.mxu0 %v2491
        %2957 = vmatmul.mubr.bf16.gmra.mxu0 %v2490
        %v2958 = vpop.f32.mrf.mxu0
        %v2959 = vadd.f32 0.0, %v2958
        %v2960 = vpop.f32.mrf.mxu0
        %v2961 = vpop.f32.mrf.mxu0
        %v2962 = vadd.f32 0.0, %v2961
        %v2963 = vpop.f32.mrf.mxu0
        %2964 = vmatprep.mubr.bf16.mxu0 %v2496
        %2965 = vmatmul.mubr.bf16.gmra.mxu0 %v2495
        %v2966 = vpop.f32.mrf.mxu0
        %v2967 = vadd.f32 0.0, %v2966
        %v2968 = vpop.f32.mrf.mxu0
        %v2969 = vpop.f32.mrf.mxu0
        %v2970 = vadd.f32 0.0, %v2969
        %v2971 = vpop.f32.mrf.mxu0
        %2972 = vmatprep.mubr.bf16.mxu0 %v2501
        %2973 = vmatmul.mubr.bf16.gmra.mxu0 %v2500
        %v2974 = vpop.f32.mrf.mxu0
        %v2975 = vadd.f32 0.0, %v2974
        %v2976 = vpop.f32.mrf.mxu0
        %v2977 = vpop.f32.mrf.mxu0
        %v2978 = vadd.f32 0.0, %v2977
        %v2979 = vpop.f32.mrf.mxu0
        %2980 = vmatprep.mubr.bf16.mxu0 %v2506
        %2981 = vmatmul.mubr.bf16.gmra.mxu0 %v2505
        %v2982 = vpop.f32.mrf.mxu0
        %v2983 = vadd.f32 0.0, %v2982
        %v2984 = vpop.f32.mrf.mxu0
        %v2985 = vpop.f32.mrf.mxu0
        %v2986 = vadd.f32 0.0, %v2985
        %v2987 = vpop.f32.mrf.mxu0
        %2988 = vmatprep.mubr.bf16.mxu0 %v2511
        %2989 = vmatmul.mubr.bf16.gmra.mxu0 %v2510
        %v2990 = vpop.f32.mrf.mxu0
        %v2991 = vadd.f32 0.0, %v2990
        %v2992 = vpop.f32.mrf.mxu0
        %v2993 = vpop.f32.mrf.mxu0
        %v2994 = vadd.f32 0.0, %v2993
        %v2995 = vpop.f32.mrf.mxu0
        %2996 = vmatprep.mubr.bf16.mxu0 %v2516
        %2997 = vmatmul.mubr.bf16.gmra.mxu0 %v2515
        %v2998 = vpop.f32.mrf.mxu0
        %v2999 = vadd.f32 0.0, %v2998
        %v3000 = vpop.f32.mrf.mxu0
        %v3001 = vpop.f32.mrf.mxu0
        %v3002 = vadd.f32 0.0, %v3001
        %v3003 = vpop.f32.mrf.mxu0
        %3004 = vmatprep.mubr.bf16.mxu0 %v2521
        %3005 = vmatmul.mubr.bf16.gmra.mxu0 %v2520
        %v3006 = vpop.f32.mrf.mxu0
        %v3007 = vadd.f32 0.0, %v3006
        %v3008 = vpop.f32.mrf.mxu0
        %v3009 = vpop.f32.mrf.mxu0
        %v3010 = vadd.f32 0.0, %v3009
        %v3011 = vpop.f32.mrf.mxu0
        %3012 = vmatprep.mubr.bf16.mxu0 %v2526
        %3013 = vmatmul.mubr.bf16.gmra.mxu0 %v2525
        %v3014 = vpop.f32.mrf.mxu0
        %v3015 = vadd.f32 0.0, %v3014
        %v3016 = vpop.f32.mrf.mxu0
        %v3017 = vpop.f32.mrf.mxu0
        %v3018 = vadd.f32 0.0, %v3017
        %v3019 = vpop.f32.mrf.mxu0
        %3020 = vmatprep.mubr.bf16.mxu0 %v2531
        %3021 = vmatmul.mubr.bf16.gmra.mxu0 %v2530
        %v3022 = vpop.f32.mrf.mxu0
        %v3023 = vadd.f32 0.0, %v3022
        %v3024 = vpop.f32.mrf.mxu0
        %v3025 = vpop.f32.mrf.mxu0
        %v3026 = vadd.f32 0.0, %v3025
        %v3027 = vpop.f32.mrf.mxu0
        %3028 = vmatprep.mubr.bf16.mxu0 %v2536
        %3029 = vmatmul.mubr.bf16.gmra.mxu0 %v2535
        %v3030 = vpop.f32.mrf.mxu0
        %v3031 = vadd.f32 0.0, %v3030
        %v3032 = vpop.f32.mrf.mxu0
        %v3033 = vpop.f32.mrf.mxu0
        %v3034 = vadd.f32 0.0, %v3033
        %v3035 = vpop.f32.mrf.mxu0
        %3036 = vdwg.mxu0
        %3037 = vmatprep.subr.bf16.mxu0 0
        %3038 = vmatpush1.bf16.msra.mxu0 %v2803
        %3039 = vmatprep.subr.bf16.mxu0 0
        %3040 = vmatpush1.bf16.msra.mxu0 %v2802
        %3041 = vmatprep.subr.bf16.mxu0 0
        %3042 = vmatpush1.bf16.msra.mxu0 %v2801
        %3043 = vmatprep.subr.bf16.mxu0 0
        %3044 = vmatpush1.bf16.msra.mxu0 %v2800
        %3045 = vmatprep.subr.bf16.mxu0 0
        %3046 = vmatpush1.bf16.msra.mxu0 %v2799
        %3047 = vmatprep.subr.bf16.mxu0 0
        %3048 = vmatpush1.bf16.msra.mxu0 %v2798
        %3049 = vmatprep.subr.bf16.mxu0 0
        %3050 = vmatpush1.bf16.msra.mxu0 %v2797
        %3051 = vmatprep.subr.bf16.mxu0 0
        %3052 = vmatpush1.bf16.msra.mxu0 %v2796
        %3053 = vmatprep.subr.bf16.mxu0 0
        %3054 = vmatpush2.bf16.msra.mxu0 %v2811
        %3055 = vmatprep.subr.bf16.mxu0 0
        %3056 = vmatpush2.bf16.msra.mxu0 %v2810
        %3057 = vmatprep.subr.bf16.mxu0 0
        %3058 = vmatpush2.bf16.msra.mxu0 %v2809
        %3059 = vmatprep.subr.bf16.mxu0 0
        %3060 = vmatpush2.bf16.msra.mxu0 %v2808
        %3061 = vmatprep.subr.bf16.mxu0 0
        %3062 = vmatpush2.bf16.msra.mxu0 %v2807
        %3063 = vmatprep.subr.bf16.mxu0 0
        %3064 = vmatpush2.bf16.msra.mxu0 %v2806
        %3065 = vmatprep.subr.bf16.mxu0 0
        %3066 = vmatpush2.bf16.msra.mxu0 %v2805
        %3067 = vmatprep.subr.bf16.mxu0 0
        %3068 = vmatpush2.bf16.msra.mxu0 %v2804
        %3069 = vmatprep.mubr.bf16.mxu0 %v2453
        %3070 = vmatmul.mubr.bf16.gmra.mxu0 %v2452
        %v3071 = vpop.f32.mrf.mxu0
        %v3072 = vadd.f32 %v2895, %v3071
        %v3073 = vpop.f32.mrf.mxu0
        %v3074 = vpop.f32.mrf.mxu0
        %v3075 = vadd.f32 %v2898, %v3074
        %v3076 = vpop.f32.mrf.mxu0
        %3077 = vmatprep.mubr.bf16.mxu0 %v2458
        %3078 = vmatmul.mubr.bf16.gmra.mxu0 %v2457
        %v3079 = vpop.f32.mrf.mxu0
        %v3080 = vadd.f32 %v2903, %v3079
        %v3081 = vpop.f32.mrf.mxu0
        %v3082 = vpop.f32.mrf.mxu0
        %v3083 = vadd.f32 %v2906, %v3082
        %v3084 = vpop.f32.mrf.mxu0
        %3085 = vmatprep.mubr.bf16.mxu0 %v2463
        %3086 = vmatmul.mubr.bf16.gmra.mxu0 %v2462
        %v3087 = vpop.f32.mrf.mxu0
        %v3088 = vadd.f32 %v2911, %v3087
        %v3089 = vpop.f32.mrf.mxu0
        %v3090 = vpop.f32.mrf.mxu0
        %v3091 = vadd.f32 %v2914, %v3090
        %v3092 = vpop.f32.mrf.mxu0
        %3093 = vmatprep.mubr.bf16.mxu0 %v2468
        %3094 = vmatmul.mubr.bf16.gmra.mxu0 %v2467
        %v3095 = vpop.f32.mrf.mxu0
        %v3096 = vadd.f32 %v2919, %v3095
        %v3097 = vpop.f32.mrf.mxu0
        %v3098 = vpop.f32.mrf.mxu0
        %v3099 = vadd.f32 %v2922, %v3098
        %v3100 = vpop.f32.mrf.mxu0
        %3101 = vmatprep.mubr.bf16.mxu0 %v2473
        %3102 = vmatmul.mubr.bf16.gmra.mxu0 %v2472
        %v3103 = vpop.f32.mrf.mxu0
        %v3104 = vadd.f32 %v2927, %v3103
        %v3105 = vpop.f32.mrf.mxu0
        %v3106 = vpop.f32.mrf.mxu0
        %v3107 = vadd.f32 %v2930, %v3106
        %v3108 = vpop.f32.mrf.mxu0
        %3109 = vmatprep.mubr.bf16.mxu0 %v2478
        %3110 = vmatmul.mubr.bf16.gmra.mxu0 %v2477
        %v3111 = vpop.f32.mrf.mxu0
        %v3112 = vadd.f32 %v2935, %v3111
        %v3113 = vpop.f32.mrf.mxu0
        %v3114 = vpop.f32.mrf.mxu0
        %v3115 = vadd.f32 %v2938, %v3114
        %v3116 = vpop.f32.mrf.mxu0
        %3117 = vmatprep.mubr.bf16.mxu0 %v2483
        %3118 = vmatmul.mubr.bf16.gmra.mxu0 %v2482
        %v3119 = vpop.f32.mrf.mxu0
        %v3120 = vadd.f32 %v2943, %v3119
        %v3121 = vpop.f32.mrf.mxu0
        %v3122 = vpop.f32.mrf.mxu0
        %v3123 = vadd.f32 %v2946, %v3122
        %v3124 = vpop.f32.mrf.mxu0
        %3125 = vmatprep.mubr.bf16.mxu0 %v2488
        %3126 = vmatmul.mubr.bf16.gmra.mxu0 %v2487
        %v3127 = vpop.f32.mrf.mxu0
        %v3128 = vadd.f32 %v2951, %v3127
        %v3129 = vpop.f32.mrf.mxu0
        %v3130 = vpop.f32.mrf.mxu0
        %v3131 = vadd.f32 %v2954, %v3130
        %v3132 = vpop.f32.mrf.mxu0
        %3133 = vmatprep.mubr.bf16.mxu0 %v2493
        %3134 = vmatmul.mubr.bf16.gmra.mxu0 %v2492
        %v3135 = vpop.f32.mrf.mxu0
        %v3136 = vadd.f32 %v2959, %v3135
        %v3137 = vpop.f32.mrf.mxu0
        %v3138 = vpop.f32.mrf.mxu0
        %v3139 = vadd.f32 %v2962, %v3138
        %v3140 = vpop.f32.mrf.mxu0
        %3141 = vmatprep.mubr.bf16.mxu0 %v2498
        %3142 = vmatmul.mubr.bf16.gmra.mxu0 %v2497
        %v3143 = vpop.f32.mrf.mxu0
        %v3144 = vadd.f32 %v2967, %v3143
        %v3145 = vpop.f32.mrf.mxu0
        %v3146 = vpop.f32.mrf.mxu0
        %v3147 = vadd.f32 %v2970, %v3146
        %v3148 = vpop.f32.mrf.mxu0
        %3149 = vmatprep.mubr.bf16.mxu0 %v2503
        %3150 = vmatmul.mubr.bf16.gmra.mxu0 %v2502
        %v3151 = vpop.f32.mrf.mxu0
        %v3152 = vadd.f32 %v2975, %v3151
        %v3153 = vpop.f32.mrf.mxu0
        %v3154 = vpop.f32.mrf.mxu0
        %v3155 = vadd.f32 %v2978, %v3154
        %v3156 = vpop.f32.mrf.mxu0
        %3157 = vmatprep.mubr.bf16.mxu0 %v2508
        %3158 = vmatmul.mubr.bf16.gmra.mxu0 %v2507
        %v3159 = vpop.f32.mrf.mxu0
        %v3160 = vadd.f32 %v2983, %v3159
        %v3161 = vpop.f32.mrf.mxu0
        %v3162 = vpop.f32.mrf.mxu0
        %v3163 = vadd.f32 %v2986, %v3162
        %v3164 = vpop.f32.mrf.mxu0
        %3165 = vmatprep.mubr.bf16.mxu0 %v2513
        %3166 = vmatmul.mubr.bf16.gmra.mxu0 %v2512
        %v3167 = vpop.f32.mrf.mxu0
        %v3168 = vadd.f32 %v2991, %v3167
        %v3169 = vpop.f32.mrf.mxu0
        %v3170 = vpop.f32.mrf.mxu0
        %v3171 = vadd.f32 %v2994, %v3170
        %v3172 = vpop.f32.mrf.mxu0
        %3173 = vmatprep.mubr.bf16.mxu0 %v2518
        %3174 = vmatmul.mubr.bf16.gmra.mxu0 %v2517
        %v3175 = vpop.f32.mrf.mxu0
        %v3176 = vadd.f32 %v2999, %v3175
        %v3177 = vpop.f32.mrf.mxu0
        %v3178 = vpop.f32.mrf.mxu0
        %v3179 = vadd.f32 %v3002, %v3178
        %v3180 = vpop.f32.mrf.mxu0
        %3181 = vmatprep.mubr.bf16.mxu0 %v2523
        %3182 = vmatmul.mubr.bf16.gmra.mxu0 %v2522
        %v3183 = vpop.f32.mrf.mxu0
        %v3184 = vadd.f32 %v3007, %v3183
        %v3185 = vpop.f32.mrf.mxu0
        %v3186 = vpop.f32.mrf.mxu0
        %v3187 = vadd.f32 %v3010, %v3186
        %v3188 = vpop.f32.mrf.mxu0
        %3189 = vmatprep.mubr.bf16.mxu0 %v2528
        %3190 = vmatmul.mubr.bf16.gmra.mxu0 %v2527
        %v3191 = vpop.f32.mrf.mxu0
        %v3192 = vadd.f32 %v3015, %v3191
        %v3193 = vpop.f32.mrf.mxu0
        %v3194 = vpop.f32.mrf.mxu0
        %v3195 = vadd.f32 %v3018, %v3194
        %v3196 = vpop.f32.mrf.mxu0
        %3197 = vmatprep.mubr.bf16.mxu0 %v2533
        %3198 = vmatmul.mubr.bf16.gmra.mxu0 %v2532
        %v3199 = vpop.f32.mrf.mxu0
        %v3200 = vadd.f32 %v3023, %v3199
        %v3201 = vpop.f32.mrf.mxu0
        %v3202 = vpop.f32.mrf.mxu0
        %v3203 = vadd.f32 %v3026, %v3202
        %v3204 = vpop.f32.mrf.mxu0
        %3205 = vmatprep.mubr.bf16.mxu0 %v2538
        %3206 = vmatmul.mubr.bf16.gmra.mxu0 %v2537
        %v3207 = vpop.f32.mrf.mxu0
        %v3208 = vadd.f32 %v3031, %v3207
        %v3209 = vpop.f32.mrf.mxu0
        %v3210 = vpop.f32.mrf.mxu0
        %v3211 = vadd.f32 %v3034, %v3210
        %v3212 = vpop.f32.mrf.mxu0
        %3213 = vdwg.mxu0
        %3214 = vmatprep.subr.bf16.mxu0 0
        %3215 = vmatpush1.bf16.msra.mxu0 %v2819
        %3216 = vmatprep.subr.bf16.mxu0 0
        %3217 = vmatpush1.bf16.msra.mxu0 %v2818
        %3218 = vmatprep.subr.bf16.mxu0 0
        %3219 = vmatpush1.bf16.msra.mxu0 %v2817
        %3220 = vmatprep.subr.bf16.mxu0 0
        %3221 = vmatpush1.bf16.msra.mxu0 %v2816
        %3222 = vmatprep.subr.bf16.mxu0 0
        %3223 = vmatpush1.bf16.msra.mxu0 %v2815
        %3224 = vmatprep.subr.bf16.mxu0 0
        %3225 = vmatpush1.bf16.msra.mxu0 %v2814
        %3226 = vmatprep.subr.bf16.mxu0 0
        %3227 = vmatpush1.bf16.msra.mxu0 %v2813
        %3228 = vmatprep.subr.bf16.mxu0 0
        %3229 = vmatpush1.bf16.msra.mxu0 %v2812
        %3230 = vmatprep.subr.bf16.mxu0 0
        %3231 = vmatpush2.bf16.msra.mxu0 0
        %3232 = vmatprep.subr.bf16.mxu0 0
        %3233 = vmatpush2.bf16.msra.mxu0 0
        %3234 = vmatprep.subr.bf16.mxu0 0
        %3235 = vmatpush2.bf16.msra.mxu0 0
        %3236 = vmatprep.subr.bf16.mxu0 0
        %3237 = vmatpush2.bf16.msra.mxu0 0
        %3238 = vmatprep.subr.bf16.mxu0 0
        %3239 = vmatpush2.bf16.msra.mxu0 0
        %3240 = vmatprep.subr.bf16.mxu0 0
        %3241 = vmatpush2.bf16.msra.mxu0 0
        %3242 = vmatprep.subr.bf16.mxu0 0
        %3243 = vmatpush2.bf16.msra.mxu0 0
        %3244 = vmatprep.subr.bf16.mxu0 0
        %3245 = vmatpush2.bf16.msra.mxu0 0
        %3246 = vmatprep.mubr.bf16.mxu0 0
        %3247 = vmatmul.mubr.bf16.gmra.mxu0 %v2454
        %v3248 = vpop.f32.mrf.mxu0
        %v3249 = vadd.f32 %v3072, %v3248
        %v3250 = vpop.f32.mrf.mxu0
        %v3251 = vpop.f32.mrf.mxu0
        %v3252 = vadd.f32 %v3075, %v3251
        %v3253 = vpop.f32.mrf.mxu0
        %3254 = vmatprep.mubr.bf16.mxu0 0
        %3255 = vmatmul.mubr.bf16.gmra.mxu0 %v2459
        %v3256 = vpop.f32.mrf.mxu0
        %v3257 = vadd.f32 %v3080, %v3256
        %v3258 = vpop.f32.mrf.mxu0
        %v3259 = vpop.f32.mrf.mxu0
        %v3260 = vadd.f32 %v3083, %v3259
        %v3261 = vpop.f32.mrf.mxu0
        %3262 = vmatprep.mubr.bf16.mxu0 0
        %3263 = vmatmul.mubr.bf16.gmra.mxu0 %v2464
        %v3264 = vpop.f32.mrf.mxu0
        %v3265 = vadd.f32 %v3088, %v3264
        %v3266 = vpop.f32.mrf.mxu0
        %v3267 = vpop.f32.mrf.mxu0
        %v3268 = vadd.f32 %v3091, %v3267
        %v3269 = vpop.f32.mrf.mxu0
        %3270 = vmatprep.mubr.bf16.mxu0 0
        %3271 = vmatmul.mubr.bf16.gmra.mxu0 %v2469
        %v3272 = vpop.f32.mrf.mxu0
        %v3273 = vadd.f32 %v3096, %v3272
        %v3274 = vpop.f32.mrf.mxu0
        %v3275 = vpop.f32.mrf.mxu0
        %v3276 = vadd.f32 %v3099, %v3275
        %v3277 = vpop.f32.mrf.mxu0
        %3278 = vmatprep.mubr.bf16.mxu0 0
        %3279 = vmatmul.mubr.bf16.gmra.mxu0 %v2474
        %v3280 = vpop.f32.mrf.mxu0
        %v3281 = vadd.f32 %v3104, %v3280
        %v3282 = vpop.f32.mrf.mxu0
        %v3283 = vpop.f32.mrf.mxu0
        %v3284 = vadd.f32 %v3107, %v3283
        %v3285 = vpop.f32.mrf.mxu0
        %3286 = vmatprep.mubr.bf16.mxu0 0
        %3287 = vmatmul.mubr.bf16.gmra.mxu0 %v2479
        %v3288 = vpop.f32.mrf.mxu0
        %v3289 = vadd.f32 %v3112, %v3288
        %v3290 = vpop.f32.mrf.mxu0
        %v3291 = vpop.f32.mrf.mxu0
        %v3292 = vadd.f32 %v3115, %v3291
        %v3293 = vpop.f32.mrf.mxu0
        %3294 = vmatprep.mubr.bf16.mxu0 0
        %3295 = vmatmul.mubr.bf16.gmra.mxu0 %v2484
        %v3296 = vpop.f32.mrf.mxu0
        %v3297 = vadd.f32 %v3120, %v3296
        %v3298 = vpop.f32.mrf.mxu0
        %v3299 = vpop.f32.mrf.mxu0
        %v3300 = vadd.f32 %v3123, %v3299
        %v3301 = vpop.f32.mrf.mxu0
        %3302 = vmatprep.mubr.bf16.mxu0 0
        %3303 = vmatmul.mubr.bf16.gmra.mxu0 %v2489
        %v3304 = vpop.f32.mrf.mxu0
        %v3305 = vadd.f32 %v3128, %v3304
        %v3306 = vpop.f32.mrf.mxu0
        %v3307 = vpop.f32.mrf.mxu0
        %v3308 = vadd.f32 %v3131, %v3307
        %v3309 = vpop.f32.mrf.mxu0
        %3310 = vmatprep.mubr.bf16.mxu0 0
        %3311 = vmatmul.mubr.bf16.gmra.mxu0 %v2494
        %v3312 = vpop.f32.mrf.mxu0
        %v3313 = vadd.f32 %v3136, %v3312
        %v3314 = vpop.f32.mrf.mxu0
        %v3315 = vpop.f32.mrf.mxu0
        %v3316 = vadd.f32 %v3139, %v3315
        %v3317 = vpop.f32.mrf.mxu0
        %3318 = vmatprep.mubr.bf16.mxu0 0
        %3319 = vmatmul.mubr.bf16.gmra.mxu0 %v2499
        %v3320 = vpop.f32.mrf.mxu0
        %v3321 = vadd.f32 %v3144, %v3320
        %v3322 = vpop.f32.mrf.mxu0
        %v3323 = vpop.f32.mrf.mxu0
        %v3324 = vadd.f32 %v3147, %v3323
        %v3325 = vpop.f32.mrf.mxu0
        %3326 = vmatprep.mubr.bf16.mxu0 0
        %3327 = vmatmul.mubr.bf16.gmra.mxu0 %v2504
        %v3328 = vpop.f32.mrf.mxu0
        %v3329 = vadd.f32 %v3152, %v3328
        %v3330 = vpop.f32.mrf.mxu0
        %v3331 = vpop.f32.mrf.mxu0
        %v3332 = vadd.f32 %v3155, %v3331
        %v3333 = vpop.f32.mrf.mxu0
        %3334 = vmatprep.mubr.bf16.mxu0 0
        %3335 = vmatmul.mubr.bf16.gmra.mxu0 %v2509
        %v3336 = vpop.f32.mrf.mxu0
        %v3337 = vadd.f32 %v3160, %v3336
        %v3338 = vpop.f32.mrf.mxu0
        %v3339 = vpop.f32.mrf.mxu0
        %v3340 = vadd.f32 %v3163, %v3339
        %v3341 = vpop.f32.mrf.mxu0
        %3342 = vmatprep.mubr.bf16.mxu0 0
        %3343 = vmatmul.mubr.bf16.gmra.mxu0 %v2514
        %v3344 = vpop.f32.mrf.mxu0
        %v3345 = vadd.f32 %v3168, %v3344
        %v3346 = vpop.f32.mrf.mxu0
        %v3347 = vpop.f32.mrf.mxu0
        %v3348 = vadd.f32 %v3171, %v3347
        %v3349 = vpop.f32.mrf.mxu0
        %3350 = vmatprep.mubr.bf16.mxu0 0
        %3351 = vmatmul.mubr.bf16.gmra.mxu0 %v2519
        %v3352 = vpop.f32.mrf.mxu0
        %v3353 = vadd.f32 %v3176, %v3352
        %v3354 = vpop.f32.mrf.mxu0
        %v3355 = vpop.f32.mrf.mxu0
        %v3356 = vadd.f32 %v3179, %v3355
        %v3357 = vpop.f32.mrf.mxu0
        %3358 = vmatprep.mubr.bf16.mxu0 0
        %3359 = vmatmul.mubr.bf16.gmra.mxu0 %v2524
        %v3360 = vpop.f32.mrf.mxu0
        %v3361 = vadd.f32 %v3184, %v3360
        %v3362 = vpop.f32.mrf.mxu0
        %v3363 = vpop.f32.mrf.mxu0
        %v3364 = vadd.f32 %v3187, %v3363
        %v3365 = vpop.f32.mrf.mxu0
        %3366 = vmatprep.mubr.bf16.mxu0 0
        %3367 = vmatmul.mubr.bf16.gmra.mxu0 %v2529
        %v3368 = vpop.f32.mrf.mxu0
        %v3369 = vadd.f32 %v3192, %v3368
        %v3370 = vpop.f32.mrf.mxu0
        %v3371 = vpop.f32.mrf.mxu0
        %v3372 = vadd.f32 %v3195, %v3371
        %v3373 = vpop.f32.mrf.mxu0
        %3374 = vmatprep.mubr.bf16.mxu0 0
        %3375 = vmatmul.mubr.bf16.gmra.mxu0 %v2534
        %v3376 = vpop.f32.mrf.mxu0
        %v3377 = vadd.f32 %v3200, %v3376
        %v3378 = vpop.f32.mrf.mxu0
        %v3379 = vpop.f32.mrf.mxu0
        %v3380 = vadd.f32 %v3203, %v3379
        %v3381 = vpop.f32.mrf.mxu0
        %3382 = vmatprep.mubr.bf16.mxu0 0
        %3383 = vmatmul.mubr.bf16.gmra.mxu0 %v2539
        %v3384 = vpop.f32.mrf.mxu0
        %v3385 = vadd.f32 %v3208, %v3384
        %v3386 = vpop.f32.mrf.mxu0
        %v3387 = vpop.f32.mrf.mxu0
        %v3388 = vadd.f32 %v3211, %v3387
        %v3389 = vpop.f32.mrf.mxu0
        %3390 = vdwg.mxu0
        %v3391 = vpack.c.bf16 %v3252, %v3249
        %v3392 = vpack.c.bf16 %v3260, %v3257
        %v3393 = vpack.c.bf16 %v3268, %v3265
        %v3394 = vpack.c.bf16 %v3276, %v3273
        %v3395 = vpack.c.bf16 %v3284, %v3281
        %v3396 = vpack.c.bf16 %v3292, %v3289
        %v3397 = vpack.c.bf16 %v3300, %v3297
        %v3398 = vpack.c.bf16 %v3308, %v3305
        %v3399 = vpack.c.bf16 %v3316, %v3313
        %v3400 = vpack.c.bf16 %v3324, %v3321
        %v3401 = vpack.c.bf16 %v3332, %v3329
        %v3402 = vpack.c.bf16 %v3340, %v3337
        %v3403 = vpack.c.bf16 %v3348, %v3345
        %v3404 = vpack.c.bf16 %v3356, %v3353
        %v3405 = vpack.c.bf16 %v3364, %v3361
        %v3406 = vpack.c.bf16 %v3372, %v3369
        %v3407 = vpack.c.bf16 %v3380, %v3377
        %v3408 = vpack.c.bf16 %v3388, %v3385
        %v3427 = vunpack.c.l.b16 %v3391
        %v3428 = vunpack.c.h.b16 %v3391
        %v3429 = vunpack.c.l.b16 %v3392
        %v3430 = vunpack.c.h.b16 %v3392
        %v3431 = vunpack.c.l.b16 %v3393
        %v3432 = vunpack.c.h.b16 %v3393
        %v3433 = vunpack.c.l.b16 %v3394
        %v3434 = vunpack.c.h.b16 %v3394
        %v3435 = vunpack.c.l.b16 %v3395
        %v3436 = vunpack.c.h.b16 %v3395
        %v3437 = vunpack.c.l.b16 %v3396
        %v3438 = vunpack.c.h.b16 %v3396
        %v3439 = vunpack.c.l.b16 %v3397
        %v3440 = vunpack.c.h.b16 %v3397
        %v3441 = vunpack.c.l.b16 %v3398
        %v3442 = vunpack.c.h.b16 %v3398
        %v3443 = vunpack.c.l.b16 %v3399
        %v3444 = vunpack.c.h.b16 %v3399
        %v3445 = vunpack.c.l.b16 %v3400
        %v3446 = vunpack.c.h.b16 %v3400
        %v3447 = vunpack.c.l.b16 %v3401
        %v3448 = vunpack.c.h.b16 %v3401
        %v3449 = vunpack.c.l.b16 %v3402
        %v3450 = vunpack.c.h.b16 %v3402
        %v3451 = vunpack.c.l.b16 %v3403
        %v3452 = vunpack.c.h.b16 %v3403
        %v3453 = vunpack.c.l.b16 %v3404
        %v3454 = vunpack.c.h.b16 %v3404
        %v3455 = vunpack.c.l.b16 %v3405
        %v3456 = vunpack.c.h.b16 %v3405
        %v3457 = vunpack.c.l.b16 %v3406
        %v3458 = vunpack.c.h.b16 %v3406
        %v3459 = vunpack.c.l.b16 %v3407
        %v3460 = vunpack.c.h.b16 %v3407
        %v3461 = vunpack.c.l.b16 %v3408
        %v3462 = vunpack.c.h.b16 %v3408
        %v3463 = vpack.c.b16 %v3427, %v3427
        %v3464 = vpack.c.b16 %v3428, %v3428
        %v3465 = vpack.c.b16 %v3429, %v3429
        %v3466 = vpack.c.b16 %v3430, %v3430
        %v3467 = vpack.c.b16 %v3431, %v3431
        %v3468 = vpack.c.b16 %v3432, %v3432
        %v3469 = vpack.c.b16 %v3433, %v3433
        %v3470 = vpack.c.b16 %v3434, %v3434
        %v3471 = vpack.c.b16 %v3435, %v3435
        %v3472 = vpack.c.b16 %v3436, %v3436
        %v3473 = vpack.c.b16 %v3437, %v3437
        %v3474 = vpack.c.b16 %v3438, %v3438
        %v3475 = vpack.c.b16 %v3439, %v3439
        %v3476 = vpack.c.b16 %v3440, %v3440
        %v3477 = vpack.c.b16 %v3441, %v3441
        %v3478 = vpack.c.b16 %v3442, %v3442
        %v3479 = vpack.c.b16 %v3443, %v3443
        %v3480 = vpack.c.b16 %v3444, %v3444
        %v3481 = vpack.c.b16 %v3445, %v3445
        %v3482 = vpack.c.b16 %v3446, %v3446
        %v3483 = vpack.c.b16 %v3447, %v3447
        %v3484 = vpack.c.b16 %v3448, %v3448
        %v3485 = vpack.c.b16 %v3449, %v3449
        %v3486 = vpack.c.b16 %v3450, %v3450
        %v3487 = vpack.c.b16 %v3451, %v3451
        %v3488 = vpack.c.b16 %v3452, %v3452
        %v3489 = vpack.c.b16 %v3453, %v3453
        %v3490 = vpack.c.b16 %v3454, %v3454
        %v3491 = vpack.c.b16 %v3455, %v3455
        %v3492 = vpack.c.b16 %v3456, %v3456
        %v3493 = vpack.c.b16 %v3457, %v3457
        %v3494 = vpack.c.b16 %v3458, %v3458
        %v3495 = vpack.c.b16 %v3459, %v3459
        %v3496 = vpack.c.b16 %v3460, %v3460
        %v3497 = vpack.c.b16 %v3461, %v3461
        %v3498 = vpack.c.b16 %v3462, %v3462
        %3535 = vst [vmem:[%s206] sm:$0xf] %v3463
        %3536 = vst [vmem:[%s206 + $0x4] sm:$0xf] %v3464
        %3537 = vst [vmem:[%s206 + $0x8] sm:$0xf] %v3465
        %3538 = vst [vmem:[%s206 + $0xc] sm:$0xf] %v3466
        %3539 = vst [vmem:[%s206 + $0x10] sm:$0xf] %v3467
        %3540 = vst [vmem:[%s206 + $0x14] sm:$0xf] %v3468
        %3541 = vst [vmem:[%s206 + $0x18] sm:$0xf] %v3469
        %3542 = vst [vmem:[%s206 + $0x1c] sm:$0xf] %v3470
        %3543 = vst [vmem:[%s206 + $0x20] sm:$0xf] %v3471
        %3544 = vst [vmem:[%s206 + $0x24] sm:$0xf] %v3472
        %3545 = vst [vmem:[%s206 + $0x28] sm:$0xf] %v3473
        %3546 = vst [vmem:[%s206 + $0x2c] sm:$0xf] %v3474
        %3547 = vst [vmem:[%s206 + $0x30] sm:$0xf] %v3475
        %3548 = vst [vmem:[%s206 + $0x34] sm:$0xf] %v3476
        %3549 = vst [vmem:[%s206 + $0x38] sm:$0xf] %v3477
        %3550 = vst [vmem:[%s206 + $0x3c] sm:$0xf] %v3478
        %3551 = vst [vmem:[%s206 + $0x40] sm:$0xf] %v3479
        %3552 = vst [vmem:[%s206 + $0x44] sm:$0xf] %v3480
        %3553 = vst [vmem:[%s206 + $0x48] sm:$0xf] %v3481
        %3554 = vst [vmem:[%s206 + $0x4c] sm:$0xf] %v3482
        %3555 = vst [vmem:[%s206 + $0x50] sm:$0xf] %v3483
        %3556 = vst [vmem:[%s206 + $0x54] sm:$0xf] %v3484
        %3557 = vst [vmem:[%s206 + $0x58] sm:$0xf] %v3485
        %3558 = vst [vmem:[%s206 + $0x5c] sm:$0xf] %v3486
        %3559 = vst [vmem:[%s206 + $0x60] sm:$0xf] %v3487
        %3560 = vst [vmem:[%s206 + $0x64] sm:$0xf] %v3488
        %3561 = vst [vmem:[%s206 + $0x68] sm:$0xf] %v3489
        %3562 = vst [vmem:[%s206 + $0x6c] sm:$0xf] %v3490
        %3563 = vst [vmem:[%s206 + $0x70] sm:$0xf] %v3491
        %3564 = vst [vmem:[%s206 + $0x74] sm:$0xf] %v3492
        %3565 = vst [vmem:[%s206 + $0x78] sm:$0xf] %v3493
        %3566 = vst [vmem:[%s206 + $0x7c] sm:$0xf] %v3494
        %3567 = vst [vmem:[%s206 + $0x80] sm:$0xf] %v3495
        %3568 = vst [vmem:[%s206 + $0x84] sm:$0xf] %v3496
        %3569 = vst [vmem:[%s206 + $0x88] sm:$0xf] %v3497
        %3570 = vst [vmem:[%s206 + $0x8c] sm:$0xf] %v3498
        %s3571 = sand.u32 %s116, 1
        %s3572 = scalar_lea.sflag [#allocation4], %s3571
        %s3573 = sand.u32 %s116, 1
        %s3574 = smul.addr %s3573, 144
        %s3575 = scalar_lea.vmem [#allocation5], %s3574
        // Predicated region
        $region41: #{tpu_custom_call.1} parent=35 // pred_check
          %p3576 = pneg %p126
        $region42: #{tpu_custom_call.1} parent=35 // pred_check_branch
          %3578 = sbr.rel (%p3576) target = $region44
        $region43: #{tpu_custom_call.1} parent=35 // pred_region
          %s3579 = smul.u32 36, %s19
          %s3581 = ssub.s32 2304, 2304
          %3582 = vsyncadd %s3572, %s3581
          %s3583 = smul.addr %s3579, 64
          %s3584 = scalar_lea.hbm %s4, %s3583
          %s3585 = sshll.u32 %s3575, 4
          %s3586 = int_to_ptr.vmem [resolvable:$true] %s3585
          %3591 = dma.vmem_to_hbm [thread:$0]  %s3586, 2304, %s3584, %s3572, 64, 64, 4
        $region44: #{tpu_custom_call.1} parent=35 // pred_fallthru
          _
      $region36: #{tpu_custom_call.1} parent=5 // pred_fallthru
        _
      %p3592 = scmp.le.s32.totalorder 2, %s14
      // Predicated region
      $region45: #{tpu_custom_call.1} parent=5 // pred_check
        %p3593 = pneg %p3592
      $region46: #{tpu_custom_call.1} parent=5 // pred_check_branch
        %3595 = sbr.rel (%p3593) target = $region48
      $region47: #{tpu_custom_call.1} parent=5 // pred_region
        %s3596 = ssub.s32 %s14, 2
        // Predicated region
        $region49: #{tpu_custom_call.1} parent=47 // pred_check
          %p3597 = pneg %p132
        $region50: #{tpu_custom_call.1} parent=47 // pred_check_branch
          %3599 = sbr.rel (%p3597) target = $region52
        $region51: #{tpu_custom_call.1} parent=47 // pred_region
          %s3600 = sand.u32 %s117, 1
          %s3601 = scalar_lea.sflag [#allocation4], %s3600
          %s3602 = sand.u32 %s117, 1
          %s3603 = smul.addr %s3602, 144
          %s3604 = scalar_lea.vmem [#allocation5], %s3603
          %3605 = dma.done %s3601, 2304
        $region52: #{tpu_custom_call.1} parent=47 // pred_fallthru
          _
      $region48: #{tpu_custom_call.1} parent=5 // pred_fallthru
        _
    $region6: #{tpu_custom_call.1} parent=1 // loop_footer
      %s18 = sadd.s32 1, %s14
    $region7: #{tpu_custom_call.1} parent=1 // loop_footer_branch
      %13 = sbr.rel target = $region3
    $region8: #{tpu_custom_call.1} parent=1 // loop_exit
      _
    %3606 = vsyncpa [#allocation3], 1
    %s3607 = scalar_lea.sflag [#allocation3], 1
    %3608 = vsyncpa %s3607, 1
    %3609 = vsyncpa [#allocation4], 1
    %s3610 = scalar_lea.sflag [#allocation4], 1
    %3611 = vsyncpa %s3610, 1

</llo_original>
